<compile_context>
chip_gen: v7x
topology: tpu7x:2x2x1
jax: 0.10.0
libtpu: 0.0.40
codegen_flags: <defaults>
</compile_context>

<pallas_src>
import functools
import math

import jax
import jax.numpy as jnp
from jax import lax
from jax.experimental import pallas as pl
from jax.experimental.pallas import tpu as pltpu


def _layer_norm(v, gamma, beta, eps=1e-5):
    mu = jnp.mean(v, axis=-1, keepdims=True)
    var = jnp.mean(jnp.square(v - mu), axis=-1, keepdims=True)
    return (v - mu) * lax.rsqrt(var + eps) * gamma + beta


def _gelu_exact(v):
    # nn.GELU() default = exact erf formulation
    return 0.5 * v * (1.0 + lax.erf(v * (1.0 / math.sqrt(2.0))))


def latent_layer_kernel(x_kv_ref, x_ref, wq_ref, wk_ref, wv_ref, wo_ref, bo_ref,
                        g1_ref, be1_ref, g2_ref, be2_ref,
                        w1_ref, bm1_ref, w2_ref, bm2_ref,
                        o_ref, k_scr, v_scr,
                        *, num_heads, head_dim, tq, tk, hidden_tile,
                        causal, mm_dtype, approx_recip):
    H, Dh = num_heads, head_dim
    HD = H * Dh
    S = x_kv_ref.shape[1]
    D = x_kv_ref.shape[2]
    hidden = w1_ref.shape[1]
    scale = Dh ** (-0.5)

    qi = pl.program_id(1)
    q_start = pl.multiple_of(qi * tq, tq)

    def mm(a, b):
        # MXU matmul with (optionally) downcast operands and f32 accumulation.
        return jnp.dot(a.astype(mm_dtype), b.astype(mm_dtype),
                       preferred_element_type=jnp.float32)

    g1 = g1_ref[...].astype(jnp.float32)
    b1 = be1_ref[...].astype(jnp.float32)

    # ---- K/V pass: once per batch element.  Scratch is head-major (H, S, Dh)
    #      and stored in mm_dtype; it carries across query tiles because the q
    #      grid axis is "arbitrary". ----
    @pl.when(qi == 0)
    def _():
        xn_full = _layer_norm(x_kv_ref[0].astype(jnp.float32), g1, b1)   # (S, D)
        k = mm(xn_full, wk_ref[...])                                     # (S, HD) f32
        v = mm(xn_full, wv_ref[...])
        k_scr[...] = jnp.transpose(k.reshape(S, H, Dh), (1, 0, 2)).astype(mm_dtype)
        v_scr[...] = jnp.transpose(v.reshape(S, H, Dh), (1, 0, 2)).astype(mm_dtype)

    # ---- Q for this query tile ----
    x_q = x_ref[0].astype(jnp.float32)                                   # (tq, D)
    xn_q = _layer_norm(x_q, g1, b1)
    q = mm(xn_q, wq_ref[...])                                            # (tq, HD)
    qh = jnp.transpose(q.reshape(tq, H, Dh), (1, 0, 2)).astype(mm_dtype)  # (H, tq, Dh)

    # ---- flash-style online softmax over key tiles of size tk ----
    if causal:
        row = lax.broadcasted_iota(jnp.int32, (tq, tk), 0) + q_start
        col = lax.broadcasted_iota(jnp.int32, (tq, tk), 1)

    def attn_step(kv, carry):
        m_i, l_i, acc = carry
        k_start = pl.multiple_of(kv * tk, tk)
        kh = k_scr[:, pl.ds(k_start, tk), :]                             # (H, tk, Dh)
        vh = v_scr[:, pl.ds(k_start, tk), :]
        s = jnp.einsum("hqd,hkd->hqk", qh, kh,
                       preferred_element_type=jnp.float32) * scale       # (H, tq, tk)
        if causal:
            s = jnp.where((col + k_start > row)[None, :, :], -1e9, s)
        m_new = jnp.maximum(m_i, jnp.max(s, axis=-1, keepdims=True))
        alpha = jnp.exp(m_i - m_new)
        p = jnp.exp(s - m_new)
        l_new = alpha * l_i + jnp.sum(p, axis=-1, keepdims=True)
        acc_new = alpha * acc + jnp.einsum("hqk,hkd->hqd", p.astype(mm_dtype), vh,
                                           preferred_element_type=jnp.float32)
        return m_new, l_new, acc_new

    n_kv_total = S // tk
    init = (jnp.full((H, tq, 1), -jnp.inf, jnp.float32),
            jnp.zeros((H, tq, 1), jnp.float32),
            jnp.zeros((H, tq, Dh), jnp.float32))
    if causal:
        # Skip key tiles that are entirely in the future of this query tile.
        n_kv = jnp.minimum((q_start + tq + tk - 1) // tk, n_kv_total)
        _, l_i, acc = lax.fori_loop(0, n_kv, attn_step, init)
    else:
        _, l_i, acc = lax.fori_loop(0, n_kv_total, attn_step, init,
                                    unroll=(n_kv_total <= 8))

    ctx = acc * pl.reciprocal(l_i, approx=approx_recip)                  # (H, tq, Dh)
    ctx = jnp.transpose(ctx, (1, 0, 2)).reshape(tq, HD)                  # (tq, HD)
    # attention dropout: identity in eval mode.

    attn_out = mm(ctx, wo_ref[...]) + bo_ref[...].astype(jnp.float32)
    x1 = x_q + attn_out                                                  # (tq, D)

    # ---- MLP branch: hidden dim streamed in lane-aligned chunks ----
    xn2 = _layer_norm(x1, g2_ref[...].astype(jnp.float32),
                      be2_ref[...].astype(jnp.float32))
    xn2_mm = xn2.astype(mm_dtype)

    n_h = hidden // hidden_tile
    if n_h == 1:
        h1 = jnp.dot(xn2_mm, w1_ref[...].astype(mm_dtype),
                     preferred_element_type=jnp.float32) + bm1_ref[...].astype(jnp.float32)
        h1 = _gelu_exact(h1)
        acc_mlp = jnp.dot(h1.astype(mm_dtype), w2_ref[...].astype(mm_dtype),
                          preferred_element_type=jnp.float32)
    else:
        def mlp_step(c, acc_m):
            lo = pl.multiple_of(c * hidden_tile, hidden_tile)
            h1 = jnp.dot(xn2_mm, w1_ref[:, pl.ds(lo, hidden_tile)].astype(mm_dtype),
                         preferred_element_type=jnp.float32)
            h1 = _gelu_exact(h1 + bm1_ref[:, pl.ds(lo, hidden_tile)].astype(jnp.float32))
            return acc_m + jnp.dot(h1.astype(mm_dtype),
                                   w2_ref[pl.ds(lo, hidden_tile), :].astype(mm_dtype),
                                   preferred_element_type=jnp.float32)
        acc_mlp = lax.fori_loop(0, n_h, mlp_step,
                                jnp.zeros((tq, D), jnp.float32), unroll=True)

    mlp = acc_mlp + bm2_ref[...].astype(jnp.float32)
    # mlp dropout: identity in eval mode.
    # TODO(synk): training-mode dropout (attention probs + MLP output) not implemented.

    o_ref[0] = (x1 + mlp).astype(o_ref.dtype)


def latent_transformer_layer(x, p, *, num_heads, head_dim, causal=False,
                             tq=None, tk=None, mm_dtype=None, approx_recip=True,
                             single_buffer_weights=True):
    B, S, D = x.shape
    H, Dh = num_heads, head_dim
    HD = H * Dh
    hidden = p["w1"].shape[1]

    # Query-tile size: bounds the (H, tq, tk) score block and the MLP tile.
    if tq is None:
        tq = S
        for cand in (256, 128):
            if S > cand and S % cand == 0:
                tq = cand
                break
    if S % tq != 0 or (tq != S and tq % 8 != 0):
        raise ValueError(f"tq={tq} must divide S={S} and be a multiple of 8")
    n_q = S // tq

    # Key-tile size for the online-softmax loop.
    if tk is None:
        tk = S
        for cand in (512, 256, 128):
            if S > cand and S % cand == 0:
                tk = cand
                break
    if S % tk != 0 or (tk != S and tk % 8 != 0):
        raise ValueError(f"tk={tk} must divide S={S} and be a multiple of 8")

    # MLP hidden chunk (lane aligned, divides hidden).
    hidden_tile = hidden
    if hidden > 2048:
        for cand in (2048, 1024, 512, 256, 128):
            if hidden % cand == 0:
                hidden_tile = cand
                break

    # bf16 MXU operands + f32 accumulation by default (MXU is bf16-native on
    # v5e/v6e/v7x; f32 operands cost multiple MXU passes).  All elementwise
    # math (LN / softmax / GELU / residuals) stays in f32.
    if mm_dtype is None:
        mm_dtype = jnp.bfloat16

    kern = functools.partial(latent_layer_kernel,
                             num_heads=H, head_dim=Dh, tq=tq, tk=tk,
                             hidden_tile=hidden_tile, causal=causal,
                             mm_dtype=mm_dtype, approx_recip=approx_recip)

    def run(single_buf):
        def const_spec(shape):
            idx_map = lambda b, q, _n=len(shape): (0,) * _n
            if single_buf:
                # Grid-invariant weight blocks: skip double-buffering (their
                # block index never changes, so the 2nd buffer is wasted VMEM).
                return pl.BlockSpec(shape, idx_map, pipeline_mode=pl.Buffered(1))
            return pl.BlockSpec(shape, idx_map)

        in_specs = [
            # full-seq x: block index constant in q -> DMA'd once per batch elt
            pl.BlockSpec((1, S, D), lambda b, q: (b, 0, 0)),
            # per-query-tile x (Q / residual path)
            pl.BlockSpec((1, tq, D), lambda b, q: (b, q, 0)),
            const_spec((D, HD)), const_spec((D, HD)), const_spec((D, HD)),  # Wq Wk Wv
            const_spec((HD, D)), const_spec((1, D)),                # Wo, bo
            const_spec((1, D)), const_spec((1, D)),                 # norm1 gamma/beta
            const_spec((1, D)), const_spec((1, D)),                 # norm2 gamma/beta
            const_spec((D, hidden)), const_spec((1, hidden)),       # mlp W1, b1
            const_spec((hidden, D)), const_spec((1, D)),            # mlp W2, b2
        ]
        out_specs = pl.BlockSpec((1, tq, D), lambda b, q: (b, q, 0))

        scratch_shapes = [pltpu.VMEM((H, S, Dh), mm_dtype),   # K (head-major)
                          pltpu.VMEM((H, S, Dh), mm_dtype)]   # V (head-major)

        # Generation-aware scoped-VMEM budget (~0.8x physical capacity cap).
        phys = 128 * 2 ** 20
        try:
            info = pltpu.get_tpu_info()
            cap_attr = getattr(info, "vmem_capacity_bytes", 0)
            if cap_attr:
                phys = int(cap_attr)
        except Exception:
            pass
        cap = int(0.8 * phys)

        mm_isz = jnp.dtype(mm_dtype).itemsize
        w_isz = jnp.dtype(p["wq"].dtype).itemsize
        x_isz = jnp.dtype(x.dtype).itemsize
        wbuf = 1 if single_buf else 2
        weight_bytes = (3 * D * HD + HD * D + D * hidden + hidden * D) * w_isz * wbuf
        vec_bytes = (6 * D + hidden) * w_isz * wbuf
        io_bytes = (2 * S * D + 4 * tq * D) * x_isz
        scr_bytes = 2 * H * S * Dh * mm_isz
        inter_bytes = (S * D + 2 * S * HD + 3 * tq * HD + 2 * H * tq * tk
                       + 2 * H * tq * Dh + 2 * tq * hidden_tile + 6 * tq * D) * 4
        est = weight_bytes + vec_bytes + io_bytes + scr_bytes + inter_bytes
        vmem_limit = int(min(max(1.5 * est, 16 * 2 ** 20), cap))

        return pl.pallas_call(
            kern,
            out_shape=jax.ShapeDtypeStruct((B, S, D), x.dtype),
            grid_spec=pltpu.PrefetchScalarGridSpec(
                num_scalar_prefetch=0,
                grid=(B, n_q),
                in_specs=in_specs,
                out_specs=out_specs,
                scratch_shapes=scratch_shapes,
            ),
            compiler_params=pltpu.CompilerParams(
                # K/V scratch carries across query tiles -> q axis must stay on
                # one core ("arbitrary"); batch axis feeds the megacore.
                dimension_semantics=("parallel", "arbitrary"),
                vmem_limit_bytes=vmem_limit),
        )(x, x, p["wq"], p["wk"], p["wv"], p["wo"], p["bo"],
          p["g1"], p["be1"], p["g2"], p["be2"],
          p["w1"], p["bm1"], p["w2"], p["bm2"])

    if single_buffer_weights and hasattr(pl, "Buffered"):
        try:
            return run(True)
        except Exception:
            pass  # fall back to default (double-buffered) weight blocks
    return run(False)


def init_params(key, dim, num_heads, head_dim):
    HD = num_heads * head_dim
    hidden = 4 * dim
    ks = jax.random.split(key, 10)
    s = 0.02
    return dict(
        wq=jax.random.normal(ks[0], (dim, HD), jnp.float32) * s,
        wk=jax.random.normal(ks[1], (dim, HD), jnp.float32) * s,
        wv=jax.random.normal(ks[2], (dim, HD), jnp.float32) * s,
        wo=jax.random.normal(ks[3], (HD, dim), jnp.float32) * s,
        bo=jax.random.normal(ks[4], (1, dim), jnp.float32) * s,
        g1=jnp.ones((1, dim), jnp.float32),
        be1=jnp.zeros((1, dim), jnp.float32),
        g2=jnp.ones((1, dim), jnp.float32),
        be2=jnp.zeros((1, dim), jnp.float32),
        w1=jax.random.normal(ks[5], (dim, hidden), jnp.float32) * s,
        bm1=jax.random.normal(ks[6], (1, hidden), jnp.float32) * s,
        w2=jax.random.normal(ks[7], (hidden, dim), jnp.float32) * s,
        bm2=jax.random.normal(ks[8], (1, dim), jnp.float32) * s,
    )


def reference(x, p, *, num_heads, head_dim, causal=False):
    """Pure-JAX reference matching the PyTorch module (eval mode)."""
    B, S, D = x.shape

    def ln(v, g, b):
        mu = jnp.mean(v, axis=-1, keepdims=True)
        var = jnp.mean((v - mu) ** 2, axis=-1, keepdims=True)
        return (v - mu) / jnp.sqrt(var + 1e-5) * g + b

    xn = ln(x, p["g1"][0], p["be1"][0])
    q = (xn @ p["wq"]).reshape(B, S, num_heads, head_dim).transpose(0, 2, 1, 3)
    k = (xn @ p["wk"]).reshape(B, S, num_heads, head_dim).transpose(0, 2, 1, 3)
    v = (xn @ p["wv"]).reshape(B, S, num_heads, head_dim).transpose(0, 2, 1, 3)
    scores = jnp.einsum("bhqd,bhkd->bhqk", q, k) * head_dim ** (-0.5)
    if causal:
        mask = jnp.triu(jnp.ones((S, S), bool), k=1)
        scores = jnp.where(mask, -1e9, scores)
    attn = jax.nn.softmax(scores, axis=-1)
    out = jnp.einsum("bhqk,bhkd->bhqd", attn, v).transpose(0, 2, 1, 3).reshape(B, S, -1)
    x = x + out @ p["wo"] + p["bo"][0]

    xn2 = ln(x, p["g2"][0], p["be2"][0])
    h = xn2 @ p["w1"] + p["bm1"][0]
    h = 0.5 * h * (1.0 + lax.erf(h / math.sqrt(2.0)))
    return x + h @ p["w2"] + p["bm2"][0]


if __name__ == "__main__":
    B, S, dim = 2, 8, 32
    num_heads, head_dim = 4, 8

    key = jax.random.PRNGKey(0)
    kx, kx2, kp = jax.random.split(key, 3)
    x = jax.random.normal(kx, (B, S, dim), jnp.float32)
    params = init_params(kp, dim, num_heads, head_dim)
    ref = reference(x, params, num_heads=num_heads, head_dim=head_dim, causal=False)

    # 1) strict f32 MXU path, non-causal, single query/key tile.
    out1 = latent_transformer_layer(x, params, num_heads=num_heads, head_dim=head_dim,
                                    causal=False, mm_dtype=jnp.float32,
                                    approx_recip=False)
    out1 = jax.block_until_ready(out1)
    assert out1.shape == (B, S, dim)
    assert jnp.allclose(out1, ref, atol=1e-4, rtol=1e-4), "f32 mismatch vs reference"

    # 2) strict f32, causal, multiple query AND key tiles: exercises the hoisted
    #    K/V scratch, the online-softmax loop and the masked-key-tile skip.
    S2, tq2, tk2 = 16, 8, 8
    x2 = jax.random.normal(kx2, (B, S2, dim), jnp.float32)
    out2 = latent_transformer_layer(x2, params, num_heads=num_heads, head_dim=head_dim,
                                    causal=True, tq=tq2, tk=tk2,
                                    mm_dtype=jnp.float32, approx_recip=False)
    out2 = jax.block_until_ready(out2)
    ref2 = reference(x2, params, num_heads=num_heads, head_dim=head_dim, causal=True)
    assert jnp.allclose(out2, ref2, atol=1e-4, rtol=1e-4), "causal/tiled mismatch"

    # 3) default fast path: bf16 MXU operands + approx reciprocal, f32 data.
    out3 = latent_transformer_layer(x, params, num_heads=num_heads, head_dim=head_dim,
                                    causal=False)
    out3 = jax.block_until_ready(out3)
    assert jnp.allclose(out3, ref, atol=5e-2, rtol=5e-2), "bf16-mm fast path mismatch"

    # 4) bf16 activations + weights end-to-end.
    xb = x.astype(jnp.bfloat16)
    pb = {k_: v_.astype(jnp.bfloat16) for k_, v_ in params.items()}
    out4 = latent_transformer_layer(xb, pb, num_heads=num_heads, head_dim=head_dim,
                                    causal=False)
    out4 = jax.block_until_ready(out4)
    assert jnp.allclose(out4.astype(jnp.float32), ref, atol=5e-2, rtol=5e-2), \
        "bf16 mismatch vs reference"

    print("KERNEL_OK")
</pallas_src>

<mosaic_0001>
module attributes {stable_mosaic.version = 11 : i64} {
  func.func @latent_layer_kernel(%arg0: i32, %arg1: i32, %arg2: memref<1x8x32xf32, #tpu.memory_space<vmem>>, %arg3: memref<1x8x32xf32, #tpu.memory_space<vmem>>, %arg4: memref<32x32xf32, #tpu.memory_space<vmem>>, %arg5: memref<32x32xf32, #tpu.memory_space<vmem>>, %arg6: memref<32x32xf32, #tpu.memory_space<vmem>>, %arg7: memref<32x32xf32, #tpu.memory_space<vmem>>, %arg8: memref<1x32xf32, #tpu.memory_space<vmem>>, %arg9: memref<1x32xf32, #tpu.memory_space<vmem>>, %arg10: memref<1x32xf32, #tpu.memory_space<vmem>>, %arg11: memref<1x32xf32, #tpu.memory_space<vmem>>, %arg12: memref<1x32xf32, #tpu.memory_space<vmem>>, %arg13: memref<32x128xf32, #tpu.memory_space<vmem>>, %arg14: memref<1x128xf32, #tpu.memory_space<vmem>>, %arg15: memref<128x32xf32, #tpu.memory_space<vmem>>, %arg16: memref<1x32xf32, #tpu.memory_space<vmem>>, %arg17: memref<1x8x32xf32, #tpu.memory_space<vmem>>, %arg18: memref<4x8x8xf32, #tpu.memory_space<vmem>>, %arg19: memref<4x8x8xf32, #tpu.memory_space<vmem>>) attributes {dimension_semantics = [#tpu.dimension_semantics<parallel>, #tpu.dimension_semantics<arbitrary>], iteration_bounds = array<i64: 2, 1>, scalar_prefetch = 0 : i64, scratch_operands = 2 : i64, tpu.core_type = #tpu.core_type<tc>, window_params = [{transform_indices = @transform_0, window_bounds = array<i64: 1, 8, 32>}, {transform_indices = @transform_1, window_bounds = array<i64: 1, 8, 32>}, {pipeline_mode = #tpu.pipeline_mode<synchronous>, transform_indices = @transform_2, window_bounds = array<i64: 32, 32>}, {pipeline_mode = #tpu.pipeline_mode<synchronous>, transform_indices = @transform_3, window_bounds = array<i64: 32, 32>}, {pipeline_mode = #tpu.pipeline_mode<synchronous>, transform_indices = @transform_4, window_bounds = array<i64: 32, 32>}, {pipeline_mode = #tpu.pipeline_mode<synchronous>, transform_indices = @transform_5, window_bounds = array<i64: 32, 32>}, {pipeline_mode = #tpu.pipeline_mode<synchronous>, transform_indices = @transform_6, window_bounds = array<i64: 1, 32>}, {pipeline_mode = #tpu.pipeline_mode<synchronous>, transform_indices = @transform_7, window_bounds = array<i64: 1, 32>}, {pipeline_mode = #tpu.pipeline_mode<synchronous>, transform_indices = @transform_8, window_bounds = array<i64: 1, 32>}, {pipeline_mode = #tpu.pipeline_mode<synchronous>, transform_indices = @transform_9, window_bounds = array<i64: 1, 32>}, {pipeline_mode = #tpu.pipeline_mode<synchronous>, transform_indices = @transform_10, window_bounds = array<i64: 1, 32>}, {pipeline_mode = #tpu.pipeline_mode<synchronous>, transform_indices = @transform_11, window_bounds = array<i64: 32, 128>}, {pipeline_mode = #tpu.pipeline_mode<synchronous>, transform_indices = @transform_12, window_bounds = array<i64: 1, 128>}, {pipeline_mode = #tpu.pipeline_mode<synchronous>, transform_indices = @transform_13, window_bounds = array<i64: 128, 32>}, {pipeline_mode = #tpu.pipeline_mode<synchronous>, transform_indices = @transform_14, window_bounds = array<i64: 1, 32>}, {transform_indices = @transform_15, window_bounds = array<i64: 1, 8, 32>}]} {
    %c0 = arith.constant 0 : index
    %c0_0 = arith.constant 0 : index
    %0 = vector.load %arg9[%c0, %c0_0] : memref<1x32xf32, #tpu.memory_space<vmem>>, vector<1x32xf32>
    %c0_1 = arith.constant 0 : index
    %c0_2 = arith.constant 0 : index
    %1 = vector.load %arg10[%c0_1, %c0_2] : memref<1x32xf32, #tpu.memory_space<vmem>>, vector<1x32xf32>
    %c0_i32 = arith.constant 0 : i32
    %2 = arith.cmpi eq, %arg1, %c0_i32 : i32
    %3 = arith.extui %2 : i1 to i32
    %c0_i32_3 = arith.constant 0 : i32
    %4 = arith.cmpi ne, %3, %c0_i32_3 : i32
    scf.if %4 {
      %c0_57 = arith.constant 0 : index
      %c0_58 = arith.constant 0 : index
      %c0_59 = arith.constant 0 : index
      %118 = vector.load %arg2[%c0_57, %c0_58, %c0_59] : memref<1x8x32xf32, #tpu.memory_space<vmem>>, vector<1x8x32xf32>
      %119 = vector.shape_cast %118 : vector<1x8x32xf32> to vector<8x32xf32>
      %cst_60 = arith.constant dense<0.000000e+00> : vector<8xf32>
      %120 = vector.multi_reduction <add>, %119, %cst_60 [1] : vector<8x32xf32> to vector<8xf32>
      %121 = vector.shape_cast %120 : vector<8xf32> to vector<8x1xf32>
      %cst_61 = arith.constant 3.200000e+01 : f32
      %122 = vector.broadcast %cst_61 : f32 to vector<8x1xf32>
      %123 = arith.divf %121, %122 : vector<8x1xf32>
      %124 = vector.broadcast %123 : vector<8x1xf32> to vector<8x32xf32>
      %125 = arith.subf %119, %124 : vector<8x32xf32>
      %126 = arith.mulf %125, %125 : vector<8x32xf32>
      %cst_62 = arith.constant dense<0.000000e+00> : vector<8xf32>
      %127 = vector.multi_reduction <add>, %126, %cst_62 [1] : vector<8x32xf32> to vector<8xf32>
      %128 = vector.shape_cast %127 : vector<8xf32> to vector<8x1xf32>
      %cst_63 = arith.constant 3.200000e+01 : f32
      %129 = vector.broadcast %cst_63 : f32 to vector<8x1xf32>
      %130 = arith.divf %128, %129 : vector<8x1xf32>
      %131 = vector.broadcast %123 : vector<8x1xf32> to vector<8x32xf32>
      %132 = arith.subf %119, %131 : vector<8x32xf32>
      %cst_64 = arith.constant 9.99999974E-6 : f32
      %133 = vector.broadcast %cst_64 : f32 to vector<8x1xf32>
      %134 = arith.addf %130, %133 : vector<8x1xf32>
      %135 = math.rsqrt %134 : vector<8x1xf32>
      %136 = vector.broadcast %135 : vector<8x1xf32> to vector<8x32xf32>
      %137 = arith.mulf %132, %136 : vector<8x32xf32>
      %138 = vector.broadcast %0 : vector<1x32xf32> to vector<8x32xf32>
      %139 = arith.mulf %137, %138 : vector<8x32xf32>
      %140 = vector.broadcast %1 : vector<1x32xf32> to vector<8x32xf32>
      %141 = arith.addf %139, %140 : vector<8x32xf32>
      %c0_65 = arith.constant 0 : index
      %c0_66 = arith.constant 0 : index
      %142 = vector.load %arg5[%c0_65, %c0_66] : memref<32x32xf32, #tpu.memory_space<vmem>>, vector<32x32xf32>
      %cst_67 = arith.constant dense<0.000000e+00> : vector<8x32xf32>
      %143 = tpu.matmul %141, %142, %cst_67 {dimension_numbers = #tpu.dot_dimension_numbers<[1], [0], [0], [1], [0, 0, 1, 1], [], []>} : vector<8x32xf32>, vector<32x32xf32>, vector<8x32xf32> -> vector<8x32xf32>
      %c0_68 = arith.constant 0 : index
      %c0_69 = arith.constant 0 : index
      %144 = vector.load %arg6[%c0_68, %c0_69] : memref<32x32xf32, #tpu.memory_space<vmem>>, vector<32x32xf32>
      %cst_70 = arith.constant dense<0.000000e+00> : vector<8x32xf32>
      %145 = tpu.matmul %141, %144, %cst_70 {dimension_numbers = #tpu.dot_dimension_numbers<[1], [0], [0], [1], [0, 0, 1, 1], [], []>} : vector<8x32xf32>, vector<32x32xf32>, vector<8x32xf32> -> vector<8x32xf32>
      %146 = vector.shape_cast %143 : vector<8x32xf32> to vector<8x4x8xf32>
      %147 = tpu.transpose %146, [1, 0, 2] : vector<8x4x8xf32> -> vector<4x8x8xf32>
      %c0_71 = arith.constant 0 : index
      %c0_72 = arith.constant 0 : index
      %c0_73 = arith.constant 0 : index
      %148 = vector.load %arg18[%c0_71, %c0_72, %c0_73] : memref<4x8x8xf32, #tpu.memory_space<vmem>>, vector<4x8x8xf32>
      tpu.vector_store %arg18[%c0_71, %c0_72, %c0_73], %147 {strides = array<i32>} : memref<4x8x8xf32, #tpu.memory_space<vmem>>, vector<4x8x8xf32>,
      %149 = vector.shape_cast %145 : vector<8x32xf32> to vector<8x4x8xf32>
      %150 = tpu.transpose %149, [1, 0, 2] : vector<8x4x8xf32> -> vector<4x8x8xf32>
      %c0_74 = arith.constant 0 : index
      %c0_75 = arith.constant 0 : index
      %c0_76 = arith.constant 0 : index
      %151 = vector.load %arg19[%c0_74, %c0_75, %c0_76] : memref<4x8x8xf32, #tpu.memory_space<vmem>>, vector<4x8x8xf32>
      tpu.vector_store %arg19[%c0_74, %c0_75, %c0_76], %150 {strides = array<i32>} : memref<4x8x8xf32, #tpu.memory_space<vmem>>, vector<4x8x8xf32>,
    } else {
    }
    %c0_4 = arith.constant 0 : index
    %c0_5 = arith.constant 0 : index
    %c0_6 = arith.constant 0 : index
    %5 = vector.load %arg3[%c0_4, %c0_5, %c0_6] : memref<1x8x32xf32, #tpu.memory_space<vmem>>, vector<1x8x32xf32>
    %6 = vector.shape_cast %5 : vector<1x8x32xf32> to vector<8x32xf32>
    %cst = arith.constant dense<0.000000e+00> : vector<8xf32>
    %7 = vector.multi_reduction <add>, %6, %cst [1] : vector<8x32xf32> to vector<8xf32>
    %8 = vector.shape_cast %7 : vector<8xf32> to vector<8x1xf32>
    %cst_7 = arith.constant 3.200000e+01 : f32
    %9 = vector.broadcast %cst_7 : f32 to vector<8x1xf32>
    %10 = arith.divf %8, %9 : vector<8x1xf32>
    %11 = vector.broadcast %10 : vector<8x1xf32> to vector<8x32xf32>
    %12 = arith.subf %6, %11 : vector<8x32xf32>
    %13 = arith.mulf %12, %12 : vector<8x32xf32>
    %cst_8 = arith.constant dense<0.000000e+00> : vector<8xf32>
    %14 = vector.multi_reduction <add>, %13, %cst_8 [1] : vector<8x32xf32> to vector<8xf32>
    %15 = vector.shape_cast %14 : vector<8xf32> to vector<8x1xf32>
    %cst_9 = arith.constant 3.200000e+01 : f32
    %16 = vector.broadcast %cst_9 : f32 to vector<8x1xf32>
    %17 = arith.divf %15, %16 : vector<8x1xf32>
    %18 = vector.broadcast %10 : vector<8x1xf32> to vector<8x32xf32>
    %19 = arith.subf %6, %18 : vector<8x32xf32>
    %cst_10 = arith.constant 9.99999974E-6 : f32
    %20 = vector.broadcast %cst_10 : f32 to vector<8x1xf32>
    %21 = arith.addf %17, %20 : vector<8x1xf32>
    %22 = math.rsqrt %21 : vector<8x1xf32>
    %23 = vector.broadcast %22 : vector<8x1xf32> to vector<8x32xf32>
    %24 = arith.mulf %19, %23 : vector<8x32xf32>
    %25 = vector.broadcast %0 : vector<1x32xf32> to vector<8x32xf32>
    %26 = arith.mulf %24, %25 : vector<8x32xf32>
    %27 = vector.broadcast %1 : vector<1x32xf32> to vector<8x32xf32>
    %28 = arith.addf %26, %27 : vector<8x32xf32>
    %c0_11 = arith.constant 0 : index
    %c0_12 = arith.constant 0 : index
    %29 = vector.load %arg4[%c0_11, %c0_12] : memref<32x32xf32, #tpu.memory_space<vmem>>, vector<32x32xf32>
    %cst_13 = arith.constant dense<0.000000e+00> : vector<8x32xf32>
    %30 = tpu.matmul %28, %29, %cst_13 {dimension_numbers = #tpu.dot_dimension_numbers<[1], [0], [0], [1], [0, 0, 1, 1], [], []>} : vector<8x32xf32>, vector<32x32xf32>, vector<8x32xf32> -> vector<8x32xf32>
    %31 = vector.shape_cast %30 : vector<8x32xf32> to vector<8x4x8xf32>
    %32 = tpu.transpose %31, [1, 0, 2] : vector<8x4x8xf32> -> vector<4x8x8xf32>
    %cst_14 = arith.constant 0xFF800000 : f32
    %33 = vector.broadcast %cst_14 : f32 to vector<4x8x1xf32>
    %cst_15 = arith.constant 0.000000e+00 : f32
    %34 = vector.broadcast %cst_15 : f32 to vector<4x8x1xf32>
    %cst_16 = arith.constant 0.000000e+00 : f32
    %35 = vector.broadcast %cst_16 : f32 to vector<4x8x8xf32>
    %c0_i32_17 = arith.constant 0 : i32
    %c8_i32 = arith.constant 8 : i32
    %36 = arith.muli %c0_i32_17, %c8_i32 : i32
    %37 = tpu.assume_multiple %36, 8 : i32
    %c0_18 = arith.constant 0 : index
    %38 = arith.index_cast %37 : i32 to index
    %c0_19 = arith.constant 0 : index
    %39 = vector.load %arg18[%c0_18, %38, %c0_19] : memref<4x8x8xf32, #tpu.memory_space<vmem>>, vector<4x8x8xf32>
    %c0_20 = arith.constant 0 : index
    %40 = arith.index_cast %37 : i32 to index
    %c0_21 = arith.constant 0 : index
    %41 = vector.load %arg19[%c0_20, %40, %c0_21] : memref<4x8x8xf32, #tpu.memory_space<vmem>>, vector<4x8x8xf32>
    "tpu.trace_start"() <{level = 10 : i32, message = "hqd,hkd->hqk"}> : () -> ()
    %cst_22 = arith.constant dense<0.000000e+00> : vector<4x8x8xf32>
    %42 = tpu.matmul %32, %39, %cst_22 {dimension_numbers = #tpu.dot_dimension_numbers<[2], [2], [1], [1], [0, 0, 0, 1, 1, 1], [0], [0]>} : vector<4x8x8xf32>, vector<4x8x8xf32>, vector<4x8x8xf32> -> vector<4x8x8xf32>
    "tpu.trace_stop"() : () -> ()
    %cst_23 = arith.constant 0.353553385 : f32
    %43 = vector.broadcast %cst_23 : f32 to vector<4x8x8xf32>
    %44 = arith.mulf %42, %43 : vector<4x8x8xf32>
    %cst_24 = arith.constant dense<0xFF800000> : vector<4x8xf32>
    %45 = vector.multi_reduction <maximumf>, %44, %cst_24 [2] : vector<4x8x8xf32> to vector<4x8xf32>
    %46 = vector.shape_cast %45 : vector<4x8xf32> to vector<4x8x1xf32>
    %47 = arith.maximumf %33, %46 : vector<4x8x1xf32>
    %48 = arith.subf %33, %47 : vector<4x8x1xf32>
    %49 = math.exp %48 : vector<4x8x1xf32>
    %50 = vector.broadcast %47 : vector<4x8x1xf32> to vector<4x8x8xf32>
    %51 = arith.subf %44, %50 : vector<4x8x8xf32>
    %52 = math.exp %51 : vector<4x8x8xf32>
    %53 = arith.mulf %49, %34 : vector<4x8x1xf32>
    %cst_25 = arith.constant dense<0.000000e+00> : vector<4x8xf32>
    %54 = vector.multi_reduction <add>, %52, %cst_25 [2] : vector<4x8x8xf32> to vector<4x8xf32>
    %55 = vector.shape_cast %54 : vector<4x8xf32> to vector<4x8x1xf32>
    %56 = arith.addf %53, %55 : vector<4x8x1xf32>
    %57 = vector.broadcast %49 : vector<4x8x1xf32> to vector<4x8x8xf32>
    %58 = arith.mulf %57, %35 : vector<4x8x8xf32>
    "tpu.trace_start"() <{level = 10 : i32, message = "hqk,hkd->hqd"}> : () -> ()
    %cst_26 = arith.constant dense<0.000000e+00> : vector<4x8x8xf32>
    %59 = tpu.matmul %52, %41, %cst_26 {dimension_numbers = #tpu.dot_dimension_numbers<[2], [1], [1], [2], [0, 0, 0, 1, 1, 2], [0], [0]>} : vector<4x8x8xf32>, vector<4x8x8xf32>, vector<4x8x8xf32> -> vector<4x8x8xf32>
    "tpu.trace_stop"() : () -> ()
    %60 = arith.addf %58, %59 : vector<4x8x8xf32>
    %c1_i32 = arith.constant 1 : i32
    %61 = tpu.reciprocal %56 : vector<4x8x1xf32> -> vector<4x8x1xf32>
    %62 = vector.broadcast %61 : vector<4x8x1xf32> to vector<4x8x8xf32>
    %63 = arith.mulf %60, %62 : vector<4x8x8xf32>
    %64 = tpu.transpose %63, [1, 0, 2] : vector<4x8x8xf32> -> vector<8x4x8xf32>
    %65 = vector.shape_cast %64 : vector<8x4x8xf32> to vector<8x32xf32>
    %c0_27 = arith.constant 0 : index
    %c0_28 = arith.constant 0 : index
    %66 = vector.load %arg7[%c0_27, %c0_28] : memref<32x32xf32, #tpu.memory_space<vmem>>, vector<32x32xf32>
    %cst_29 = arith.constant dense<0.000000e+00> : vector<8x32xf32>
    %67 = tpu.matmul %65, %66, %cst_29 {dimension_numbers = #tpu.dot_dimension_numbers<[1], [0], [0], [1], [0, 0, 1, 1], [], []>} : vector<8x32xf32>, vector<32x32xf32>, vector<8x32xf32> -> vector<8x32xf32>
    %c0_30 = arith.constant 0 : index
    %c0_31 = arith.constant 0 : index
    %68 = vector.load %arg8[%c0_30, %c0_31] : memref<1x32xf32, #tpu.memory_space<vmem>>, vector<1x32xf32>
    %69 = vector.broadcast %68 : vector<1x32xf32> to vector<8x32xf32>
    %70 = arith.addf %67, %69 : vector<8x32xf32>
    %71 = arith.addf %6, %70 : vector<8x32xf32>
    %c0_32 = arith.constant 0 : index
    %c0_33 = arith.constant 0 : index
    %72 = vector.load %arg11[%c0_32, %c0_33] : memref<1x32xf32, #tpu.memory_space<vmem>>, vector<1x32xf32>
    %c0_34 = arith.constant 0 : index
    %c0_35 = arith.constant 0 : index
    %73 = vector.load %arg12[%c0_34, %c0_35] : memref<1x32xf32, #tpu.memory_space<vmem>>, vector<1x32xf32>
    %cst_36 = arith.constant dense<0.000000e+00> : vector<8xf32>
    %74 = vector.multi_reduction <add>, %71, %cst_36 [1] : vector<8x32xf32> to vector<8xf32>
    %75 = vector.shape_cast %74 : vector<8xf32> to vector<8x1xf32>
    %cst_37 = arith.constant 3.200000e+01 : f32
    %76 = vector.broadcast %cst_37 : f32 to vector<8x1xf32>
    %77 = arith.divf %75, %76 : vector<8x1xf32>
    %78 = vector.broadcast %77 : vector<8x1xf32> to vector<8x32xf32>
    %79 = arith.subf %71, %78 : vector<8x32xf32>
    %80 = arith.mulf %79, %79 : vector<8x32xf32>
    %cst_38 = arith.constant dense<0.000000e+00> : vector<8xf32>
    %81 = vector.multi_reduction <add>, %80, %cst_38 [1] : vector<8x32xf32> to vector<8xf32>
    %82 = vector.shape_cast %81 : vector<8xf32> to vector<8x1xf32>
    %cst_39 = arith.constant 3.200000e+01 : f32
    %83 = vector.broadcast %cst_39 : f32 to vector<8x1xf32>
    %84 = arith.divf %82, %83 : vector<8x1xf32>
    %85 = vector.broadcast %77 : vector<8x1xf32> to vector<8x32xf32>
    %86 = arith.subf %71, %85 : vector<8x32xf32>
    %cst_40 = arith.constant 9.99999974E-6 : f32
    %87 = vector.broadcast %cst_40 : f32 to vector<8x1xf32>
    %88 = arith.addf %84, %87 : vector<8x1xf32>
    %89 = math.rsqrt %88 : vector<8x1xf32>
    %90 = vector.broadcast %89 : vector<8x1xf32> to vector<8x32xf32>
    %91 = arith.mulf %86, %90 : vector<8x32xf32>
    %92 = vector.broadcast %72 : vector<1x32xf32> to vector<8x32xf32>
    %93 = arith.mulf %91, %92 : vector<8x32xf32>
    %94 = vector.broadcast %73 : vector<1x32xf32> to vector<8x32xf32>
    %95 = arith.addf %93, %94 : vector<8x32xf32>
    %c0_41 = arith.constant 0 : index
    %c0_42 = arith.constant 0 : index
    %96 = vector.load %arg13[%c0_41, %c0_42] : memref<32x128xf32, #tpu.memory_space<vmem>>, vector<32x128xf32>
    %cst_43 = arith.constant dense<0.000000e+00> : vector<8x128xf32>
    %97 = tpu.matmul %95, %96, %cst_43 {dimension_numbers = #tpu.dot_dimension_numbers<[1], [0], [0], [1], [0, 0, 1, 1], [], []>} : vector<8x32xf32>, vector<32x128xf32>, vector<8x128xf32> -> vector<8x128xf32>
    %c0_44 = arith.constant 0 : index
    %c0_45 = arith.constant 0 : index
    %98 = vector.load %arg14[%c0_44, %c0_45] : memref<1x128xf32, #tpu.memory_space<vmem>>, vector<1x128xf32>
    %99 = vector.broadcast %98 : vector<1x128xf32> to vector<8x128xf32>
    %100 = arith.addf %97, %99 : vector<8x128xf32>
    %cst_46 = arith.constant 5.000000e-01 : f32
    %101 = vector.broadcast %cst_46 : f32 to vector<8x128xf32>
    %102 = arith.mulf %101, %100 : vector<8x128xf32>
    %cst_47 = arith.constant 0.707106769 : f32
    %103 = vector.broadcast %cst_47 : f32 to vector<8x128xf32>
    %104 = arith.mulf %100, %103 : vector<8x128xf32>
    %105 = math.erf %104 : vector<8x128xf32>
    %cst_48 = arith.constant 1.000000e+00 : f32
    %106 = vector.broadcast %cst_48 : f32 to vector<8x128xf32>
    %107 = arith.addf %106, %105 : vector<8x128xf32>
    %108 = arith.mulf %102, %107 : vector<8x128xf32>
    %c0_49 = arith.constant 0 : index
    %c0_50 = arith.constant 0 : index
    %109 = vector.load %arg15[%c0_49, %c0_50] : memref<128x32xf32, #tpu.memory_space<vmem>>, vector<128x32xf32>
    %cst_51 = arith.constant dense<0.000000e+00> : vector<8x32xf32>
    %110 = tpu.matmul %108, %109, %cst_51 {dimension_numbers = #tpu.dot_dimension_numbers<[1], [0], [0], [1], [0, 0, 1, 1], [], []>} : vector<8x128xf32>, vector<128x32xf32>, vector<8x32xf32> -> vector<8x32xf32>
    %c0_52 = arith.constant 0 : index
    %c0_53 = arith.constant 0 : index
    %111 = vector.load %arg16[%c0_52, %c0_53] : memref<1x32xf32, #tpu.memory_space<vmem>>, vector<1x32xf32>
    %112 = vector.broadcast %111 : vector<1x32xf32> to vector<8x32xf32>
    %113 = arith.addf %110, %112 : vector<8x32xf32>
    %114 = arith.addf %71, %113 : vector<8x32xf32>
    %c0_54 = arith.constant 0 : index
    %c0_55 = arith.constant 0 : index
    %c0_56 = arith.constant 0 : index
    %115 = vector.load %arg17[%c0_54, %c0_55, %c0_56] : memref<1x8x32xf32, #tpu.memory_space<vmem>>, vector<1x8x32xf32>
    %116 = vector.shape_cast %115 : vector<1x8x32xf32> to vector<8x32xf32>
    %117 = vector.shape_cast %114 : vector<8x32xf32> to vector<1x8x32xf32>
    tpu.vector_store %arg17[%c0_54, %c0_55, %c0_56], %117 {strides = array<i32>} : memref<1x8x32xf32, #tpu.memory_space<vmem>>, vector<1x8x32xf32>,
    return
  }
  func.func @transform_0(%arg0: i32, %arg1: i32) -> (i32, i32, i32) {
    %c0_i32 = arith.constant 0 : i32
    %c0_i32_0 = arith.constant 0 : i32
    %c0_i32_1 = arith.constant 0 : i32
    return %arg0, %c0_i32, %c0_i32_0 : i32, i32, i32
  }
  func.func @transform_1(%arg0: i32, %arg1: i32) -> (i32, i32, i32) {
    %c0_i32 = arith.constant 0 : i32
    %c0_i32_0 = arith.constant 0 : i32
    return %arg0, %arg1, %c0_i32 : i32, i32, i32
  }
  func.func @transform_2(%arg0: i32, %arg1: i32) -> (i32, i32) {
    %c0_i32 = arith.constant 0 : i32
    %c0_i32_0 = arith.constant 0 : i32
    %c0_i32_1 = arith.constant 0 : i32
    return %c0_i32, %c0_i32_0 : i32, i32
  }
  func.func @transform_3(%arg0: i32, %arg1: i32) -> (i32, i32) {
    %c0_i32 = arith.constant 0 : i32
    %c0_i32_0 = arith.constant 0 : i32
    %c0_i32_1 = arith.constant 0 : i32
    return %c0_i32, %c0_i32_0 : i32, i32
  }
  func.func @transform_4(%arg0: i32, %arg1: i32) -> (i32, i32) {
    %c0_i32 = arith.constant 0 : i32
    %c0_i32_0 = arith.constant 0 : i32
    %c0_i32_1 = arith.constant 0 : i32
    return %c0_i32, %c0_i32_0 : i32, i32
  }
  func.func @transform_5(%arg0: i32, %arg1: i32) -> (i32, i32) {
    %c0_i32 = arith.constant 0 : i32
    %c0_i32_0 = arith.constant 0 : i32
    %c0_i32_1 = arith.constant 0 : i32
    return %c0_i32, %c0_i32_0 : i32, i32
  }
  func.func @transform_6(%arg0: i32, %arg1: i32) -> (i32, i32) {
    %c0_i32 = arith.constant 0 : i32
    %c0_i32_0 = arith.constant 0 : i32
    %c0_i32_1 = arith.constant 0 : i32
    return %c0_i32, %c0_i32_0 : i32, i32
  }
  func.func @transform_7(%arg0: i32, %arg1: i32) -> (i32, i32) {
    %c0_i32 = arith.constant 0 : i32
    %c0_i32_0 = arith.constant 0 : i32
    %c0_i32_1 = arith.constant 0 : i32
    return %c0_i32, %c0_i32_0 : i32, i32
  }
  func.func @transform_8(%arg0: i32, %arg1: i32) -> (i32, i32) {
    %c0_i32 = arith.constant 0 : i32
    %c0_i32_0 = arith.constant 0 : i32
    %c0_i32_1 = arith.constant 0 : i32
    return %c0_i32, %c0_i32_0 : i32, i32
  }
  func.func @transform_9(%arg0: i32, %arg1: i32) -> (i32, i32) {
    %c0_i32 = arith.constant 0 : i32
    %c0_i32_0 = arith.constant 0 : i32
    %c0_i32_1 = arith.constant 0 : i32
    return %c0_i32, %c0_i32_0 : i32, i32
  }
  func.func @transform_10(%arg0: i32, %arg1: i32) -> (i32, i32) {
    %c0_i32 = arith.constant 0 : i32
    %c0_i32_0 = arith.constant 0 : i32
    %c0_i32_1 = arith.constant 0 : i32
    return %c0_i32, %c0_i32_0 : i32, i32
  }
  func.func @transform_11(%arg0: i32, %arg1: i32) -> (i32, i32) {
    %c0_i32 = arith.constant 0 : i32
    %c0_i32_0 = arith.constant 0 : i32
    %c0_i32_1 = arith.constant 0 : i32
    return %c0_i32, %c0_i32_0 : i32, i32
  }
  func.func @transform_12(%arg0: i32, %arg1: i32) -> (i32, i32) {
    %c0_i32 = arith.constant 0 : i32
    %c0_i32_0 = arith.constant 0 : i32
    %c0_i32_1 = arith.constant 0 : i32
    return %c0_i32, %c0_i32_0 : i32, i32
  }
  func.func @transform_13(%arg0: i32, %arg1: i32) -> (i32, i32) {
    %c0_i32 = arith.constant 0 : i32
    %c0_i32_0 = arith.constant 0 : i32
    %c0_i32_1 = arith.constant 0 : i32
    return %c0_i32, %c0_i32_0 : i32, i32
  }
  func.func @transform_14(%arg0: i32, %arg1: i32) -> (i32, i32) {
    %c0_i32 = arith.constant 0 : i32
    %c0_i32_0 = arith.constant 0 : i32
    %c0_i32_1 = arith.constant 0 : i32
    return %c0_i32, %c0_i32_0 : i32, i32
  }
  func.func @transform_15(%arg0: i32, %arg1: i32) -> (i32, i32, i32) {
    %c0_i32 = arith.constant 0 : i32
    %c0_i32_0 = arith.constant 0 : i32
    return %arg0, %arg1, %c0_i32 : i32, i32, i32
  }
}

module attributes {stable_mosaic.version = 11 : i64} {
  func.func @latent_layer_kernel(%arg0: i32, %arg1: i32, %arg2: memref<1x8x32xf32, #tpu.memory_space<vmem>>, %arg3: memref<1x8x32xf32, #tpu.memory_space<vmem>>, %arg4: memref<32x32xf32, #tpu.memory_space<vmem>>, %arg5: memref<32x32xf32, #tpu.memory_space<vmem>>, %arg6: memref<32x32xf32, #tpu.memory_space<vmem>>, %arg7: memref<32x32xf32, #tpu.memory_space<vmem>>, %arg8: memref<1x32xf32, #tpu.memory_space<vmem>>, %arg9: memref<1x32xf32, #tpu.memory_space<vmem>>, %arg10: memref<1x32xf32, #tpu.memory_space<vmem>>, %arg11: memref<1x32xf32, #tpu.memory_space<vmem>>, %arg12: memref<1x32xf32, #tpu.memory_space<vmem>>, %arg13: memref<32x128xf32, #tpu.memory_space<vmem>>, %arg14: memref<1x128xf32, #tpu.memory_space<vmem>>, %arg15: memref<128x32xf32, #tpu.memory_space<vmem>>, %arg16: memref<1x32xf32, #tpu.memory_space<vmem>>, %arg17: memref<1x8x32xf32, #tpu.memory_space<vmem>>, %arg18: memref<4x8x8xf32, #tpu.memory_space<vmem>>, %arg19: memref<4x8x8xf32, #tpu.memory_space<vmem>>) attributes {dimension_semantics = [#tpu.dimension_semantics<parallel>, #tpu.dimension_semantics<arbitrary>], iteration_bounds = array<i64: 2, 1>, scalar_prefetch = 0 : i64, scratch_operands = 2 : i64, tpu.core_type = #tpu.core_type<tc>, window_params = [{transform_indices = @transform_0, window_bounds = array<i64: 1, 8, 32>}, {transform_indices = @transform_1, window_bounds = array<i64: 1, 8, 32>}, {pipeline_mode = #tpu.pipeline_mode<synchronous>, transform_indices = @transform_2, window_bounds = array<i64: 32, 32>}, {pipeline_mode = #tpu.pipeline_mode<synchronous>, transform_indices = @transform_3, window_bounds = array<i64: 32, 32>}, {pipeline_mode = #tpu.pipeline_mode<synchronous>, transform_indices = @transform_4, window_bounds = array<i64: 32, 32>}, {pipeline_mode = #tpu.pipeline_mode<synchronous>, transform_indices = @transform_5, window_bounds = array<i64: 32, 32>}, {pipeline_mode = #tpu.pipeline_mode<synchronous>, transform_indices = @transform_6, window_bounds = array<i64: 1, 32>}, {pipeline_mode = #tpu.pipeline_mode<synchronous>, transform_indices = @transform_7, window_bounds = array<i64: 1, 32>}, {pipeline_mode = #tpu.pipeline_mode<synchronous>, transform_indices = @transform_8, window_bounds = array<i64: 1, 32>}, {pipeline_mode = #tpu.pipeline_mode<synchronous>, transform_indices = @transform_9, window_bounds = array<i64: 1, 32>}, {pipeline_mode = #tpu.pipeline_mode<synchronous>, transform_indices = @transform_10, window_bounds = array<i64: 1, 32>}, {pipeline_mode = #tpu.pipeline_mode<synchronous>, transform_indices = @transform_11, window_bounds = array<i64: 32, 128>}, {pipeline_mode = #tpu.pipeline_mode<synchronous>, transform_indices = @transform_12, window_bounds = array<i64: 1, 128>}, {pipeline_mode = #tpu.pipeline_mode<synchronous>, transform_indices = @transform_13, window_bounds = array<i64: 128, 32>}, {pipeline_mode = #tpu.pipeline_mode<synchronous>, transform_indices = @transform_14, window_bounds = array<i64: 1, 32>}, {transform_indices = @transform_15, window_bounds = array<i64: 1, 8, 32>}]} {
    %c0 = arith.constant 0 : index
    %c0_0 = arith.constant 0 : index
    %0 = vector.load %arg9[%c0, %c0_0] : memref<1x32xf32, #tpu.memory_space<vmem>>, vector<1x32xf32>
    %c0_1 = arith.constant 0 : index
    %c0_2 = arith.constant 0 : index
    %1 = vector.load %arg10[%c0_1, %c0_2] : memref<1x32xf32, #tpu.memory_space<vmem>>, vector<1x32xf32>
    %c0_i32 = arith.constant 0 : i32
    %2 = arith.cmpi eq, %arg1, %c0_i32 : i32
    %3 = arith.extui %2 : i1 to i32
    %c0_i32_3 = arith.constant 0 : i32
    %4 = arith.cmpi ne, %3, %c0_i32_3 : i32
    scf.if %4 {
      %c0_57 = arith.constant 0 : index
      %c0_58 = arith.constant 0 : index
      %c0_59 = arith.constant 0 : index
      %118 = vector.load %arg2[%c0_57, %c0_58, %c0_59] : memref<1x8x32xf32, #tpu.memory_space<vmem>>, vector<1x8x32xf32>
      %119 = vector.shape_cast %118 : vector<1x8x32xf32> to vector<8x32xf32>
      %cst_60 = arith.constant dense<0.000000e+00> : vector<8xf32>
      %120 = vector.multi_reduction <add>, %119, %cst_60 [1] : vector<8x32xf32> to vector<8xf32>
      %121 = vector.shape_cast %120 : vector<8xf32> to vector<8x1xf32>
      %cst_61 = arith.constant 3.200000e+01 : f32
      %122 = vector.broadcast %cst_61 : f32 to vector<8x1xf32>
      %123 = arith.divf %121, %122 : vector<8x1xf32>
      %124 = vector.broadcast %123 : vector<8x1xf32> to vector<8x32xf32>
      %125 = arith.subf %119, %124 : vector<8x32xf32>
      %126 = arith.mulf %125, %125 : vector<8x32xf32>
      %cst_62 = arith.constant dense<0.000000e+00> : vector<8xf32>
      %127 = vector.multi_reduction <add>, %126, %cst_62 [1] : vector<8x32xf32> to vector<8xf32>
      %128 = vector.shape_cast %127 : vector<8xf32> to vector<8x1xf32>
      %cst_63 = arith.constant 3.200000e+01 : f32
      %129 = vector.broadcast %cst_63 : f32 to vector<8x1xf32>
      %130 = arith.divf %128, %129 : vector<8x1xf32>
      %131 = vector.broadcast %123 : vector<8x1xf32> to vector<8x32xf32>
      %132 = arith.subf %119, %131 : vector<8x32xf32>
      %cst_64 = arith.constant 9.99999974E-6 : f32
      %133 = vector.broadcast %cst_64 : f32 to vector<8x1xf32>
      %134 = arith.addf %130, %133 : vector<8x1xf32>
      %135 = math.rsqrt %134 : vector<8x1xf32>
      %136 = vector.broadcast %135 : vector<8x1xf32> to vector<8x32xf32>
      %137 = arith.mulf %132, %136 : vector<8x32xf32>
      %138 = vector.broadcast %0 : vector<1x32xf32> to vector<8x32xf32>
      %139 = arith.mulf %137, %138 : vector<8x32xf32>
      %140 = vector.broadcast %1 : vector<1x32xf32> to vector<8x32xf32>
      %141 = arith.addf %139, %140 : vector<8x32xf32>
      %c0_65 = arith.constant 0 : index
      %c0_66 = arith.constant 0 : index
      %142 = vector.load %arg5[%c0_65, %c0_66] : memref<32x32xf32, #tpu.memory_space<vmem>>, vector<32x32xf32>
      %cst_67 = arith.constant dense<0.000000e+00> : vector<8x32xf32>
      %143 = tpu.matmul %141, %142, %cst_67 {dimension_numbers = #tpu.dot_dimension_numbers<[1], [0], [0], [1], [0, 0, 1, 1], [], []>} : vector<8x32xf32>, vector<32x32xf32>, vector<8x32xf32> -> vector<8x32xf32>
      %c0_68 = arith.constant 0 : index
      %c0_69 = arith.constant 0 : index
      %144 = vector.load %arg6[%c0_68, %c0_69] : memref<32x32xf32, #tpu.memory_space<vmem>>, vector<32x32xf32>
      %cst_70 = arith.constant dense<0.000000e+00> : vector<8x32xf32>
      %145 = tpu.matmul %141, %144, %cst_70 {dimension_numbers = #tpu.dot_dimension_numbers<[1], [0], [0], [1], [0, 0, 1, 1], [], []>} : vector<8x32xf32>, vector<32x32xf32>, vector<8x32xf32> -> vector<8x32xf32>
      %146 = vector.shape_cast %143 : vector<8x32xf32> to vector<8x4x8xf32>
      %147 = tpu.transpose %146, [1, 0, 2] : vector<8x4x8xf32> -> vector<4x8x8xf32>
      %c0_71 = arith.constant 0 : index
      %c0_72 = arith.constant 0 : index
      %c0_73 = arith.constant 0 : index
      %148 = vector.load %arg18[%c0_71, %c0_72, %c0_73] : memref<4x8x8xf32, #tpu.memory_space<vmem>>, vector<4x8x8xf32>
      tpu.vector_store %arg18[%c0_71, %c0_72, %c0_73], %147 {strides = array<i32>} : memref<4x8x8xf32, #tpu.memory_space<vmem>>, vector<4x8x8xf32>,
      %149 = vector.shape_cast %145 : vector<8x32xf32> to vector<8x4x8xf32>
      %150 = tpu.transpose %149, [1, 0, 2] : vector<8x4x8xf32> -> vector<4x8x8xf32>
      %c0_74 = arith.constant 0 : index
      %c0_75 = arith.constant 0 : index
      %c0_76 = arith.constant 0 : index
      %151 = vector.load %arg19[%c0_74, %c0_75, %c0_76] : memref<4x8x8xf32, #tpu.memory_space<vmem>>, vector<4x8x8xf32>
      tpu.vector_store %arg19[%c0_74, %c0_75, %c0_76], %150 {strides = array<i32>} : memref<4x8x8xf32, #tpu.memory_space<vmem>>, vector<4x8x8xf32>,
    } else {
    }
    %c0_4 = arith.constant 0 : index
    %c0_5 = arith.constant 0 : index
    %c0_6 = arith.constant 0 : index
    %5 = vector.load %arg3[%c0_4, %c0_5, %c0_6] : memref<1x8x32xf32, #tpu.memory_space<vmem>>, vector<1x8x32xf32>
    %6 = vector.shape_cast %5 : vector<1x8x32xf32> to vector<8x32xf32>
    %cst = arith.constant dense<0.000000e+00> : vector<8xf32>
    %7 = vector.multi_reduction <add>, %6, %cst [1] : vector<8x32xf32> to vector<8xf32>
    %8 = vector.shape_cast %7 : vector<8xf32> to vector<8x1xf32>
    %cst_7 = arith.constant 3.200000e+01 : f32
    %9 = vector.broadcast %cst_7 : f32 to vector<8x1xf32>
    %10 = arith.divf %8, %9 : vector<8x1xf32>
    %11 = vector.broadcast %10 : vector<8x1xf32> to vector<8x32xf32>
    %12 = arith.subf %6, %11 : vector<8x32xf32>
    %13 = arith.mulf %12, %12 : vector<8x32xf32>
    %cst_8 = arith.constant dense<0.000000e+00> : vector<8xf32>
    %14 = vector.multi_reduction <add>, %13, %cst_8 [1] : vector<8x32xf32> to vector<8xf32>
    %15 = vector.shape_cast %14 : vector<8xf32> to vector<8x1xf32>
    %cst_9 = arith.constant 3.200000e+01 : f32
    %16 = vector.broadcast %cst_9 : f32 to vector<8x1xf32>
    %17 = arith.divf %15, %16 : vector<8x1xf32>
    %18 = vector.broadcast %10 : vector<8x1xf32> to vector<8x32xf32>
    %19 = arith.subf %6, %18 : vector<8x32xf32>
    %cst_10 = arith.constant 9.99999974E-6 : f32
    %20 = vector.broadcast %cst_10 : f32 to vector<8x1xf32>
    %21 = arith.addf %17, %20 : vector<8x1xf32>
    %22 = math.rsqrt %21 : vector<8x1xf32>
    %23 = vector.broadcast %22 : vector<8x1xf32> to vector<8x32xf32>
    %24 = arith.mulf %19, %23 : vector<8x32xf32>
    %25 = vector.broadcast %0 : vector<1x32xf32> to vector<8x32xf32>
    %26 = arith.mulf %24, %25 : vector<8x32xf32>
    %27 = vector.broadcast %1 : vector<1x32xf32> to vector<8x32xf32>
    %28 = arith.addf %26, %27 : vector<8x32xf32>
    %c0_11 = arith.constant 0 : index
    %c0_12 = arith.constant 0 : index
    %29 = vector.load %arg4[%c0_11, %c0_12] : memref<32x32xf32, #tpu.memory_space<vmem>>, vector<32x32xf32>
    %cst_13 = arith.constant dense<0.000000e+00> : vector<8x32xf32>
    %30 = tpu.matmul %28, %29, %cst_13 {dimension_numbers = #tpu.dot_dimension_numbers<[1], [0], [0], [1], [0, 0, 1, 1], [], []>} : vector<8x32xf32>, vector<32x32xf32>, vector<8x32xf32> -> vector<8x32xf32>
    %31 = vector.shape_cast %30 : vector<8x32xf32> to vector<8x4x8xf32>
    %32 = tpu.transpose %31, [1, 0, 2] : vector<8x4x8xf32> -> vector<4x8x8xf32>
    %cst_14 = arith.constant 0xFF800000 : f32
    %33 = vector.broadcast %cst_14 : f32 to vector<4x8x1xf32>
    %cst_15 = arith.constant 0.000000e+00 : f32
    %34 = vector.broadcast %cst_15 : f32 to vector<4x8x1xf32>
    %cst_16 = arith.constant 0.000000e+00 : f32
    %35 = vector.broadcast %cst_16 : f32 to vector<4x8x8xf32>
    %c0_i32_17 = arith.constant 0 : i32
    %c8_i32 = arith.constant 8 : i32
    %36 = arith.muli %c0_i32_17, %c8_i32 : i32
    %37 = tpu.assume_multiple %36, 8 : i32
    %c0_18 = arith.constant 0 : index
    %38 = arith.index_cast %37 : i32 to index
    %c0_19 = arith.constant 0 : index
    %39 = vector.load %arg18[%c0_18, %38, %c0_19] : memref<4x8x8xf32, #tpu.memory_space<vmem>>, vector<4x8x8xf32>
    %c0_20 = arith.constant 0 : index
    %40 = arith.index_cast %37 : i32 to index
    %c0_21 = arith.constant 0 : index
    %41 = vector.load %arg19[%c0_20, %40, %c0_21] : memref<4x8x8xf32, #tpu.memory_space<vmem>>, vector<4x8x8xf32>
    "tpu.trace_start"() <{level = 10 : i32, message = "hqd,hkd->hqk"}> : () -> ()
    %cst_22 = arith.constant dense<0.000000e+00> : vector<4x8x8xf32>
    %42 = tpu.matmul %32, %39, %cst_22 {dimension_numbers = #tpu.dot_dimension_numbers<[2], [2], [1], [1], [0, 0, 0, 1, 1, 1], [0], [0]>} : vector<4x8x8xf32>, vector<4x8x8xf32>, vector<4x8x8xf32> -> vector<4x8x8xf32>
    "tpu.trace_stop"() : () -> ()
    %cst_23 = arith.constant 0.353553385 : f32
    %43 = vector.broadcast %cst_23 : f32 to vector<4x8x8xf32>
    %44 = arith.mulf %42, %43 : vector<4x8x8xf32>
    %cst_24 = arith.constant dense<0xFF800000> : vector<4x8xf32>
    %45 = vector.multi_reduction <maximumf>, %44, %cst_24 [2] : vector<4x8x8xf32> to vector<4x8xf32>
    %46 = vector.shape_cast %45 : vector<4x8xf32> to vector<4x8x1xf32>
    %47 = arith.maximumf %33, %46 : vector<4x8x1xf32>
    %48 = arith.subf %33, %47 : vector<4x8x1xf32>
    %49 = math.exp %48 : vector<4x8x1xf32>
    %50 = vector.broadcast %47 : vector<4x8x1xf32> to vector<4x8x8xf32>
    %51 = arith.subf %44, %50 : vector<4x8x8xf32>
    %52 = math.exp %51 : vector<4x8x8xf32>
    %53 = arith.mulf %49, %34 : vector<4x8x1xf32>
    %cst_25 = arith.constant dense<0.000000e+00> : vector<4x8xf32>
    %54 = vector.multi_reduction <add>, %52, %cst_25 [2] : vector<4x8x8xf32> to vector<4x8xf32>
    %55 = vector.shape_cast %54 : vector<4x8xf32> to vector<4x8x1xf32>
    %56 = arith.addf %53, %55 : vector<4x8x1xf32>
    %57 = vector.broadcast %49 : vector<4x8x1xf32> to vector<4x8x8xf32>
    %58 = arith.mulf %57, %35 : vector<4x8x8xf32>
    "tpu.trace_start"() <{level = 10 : i32, message = "hqk,hkd->hqd"}> : () -> ()
    %cst_26 = arith.constant dense<0.000000e+00> : vector<4x8x8xf32>
    %59 = tpu.matmul %52, %41, %cst_26 {dimension_numbers = #tpu.dot_dimension_numbers<[2], [1], [1], [2], [0, 0, 0, 1, 1, 2], [0], [0]>} : vector<4x8x8xf32>, vector<4x8x8xf32>, vector<4x8x8xf32> -> vector<4x8x8xf32>
    "tpu.trace_stop"() : () -> ()
    %60 = arith.addf %58, %59 : vector<4x8x8xf32>
    %c1_i32 = arith.constant 1 : i32
    %61 = tpu.reciprocal %56 : vector<4x8x1xf32> -> vector<4x8x1xf32>
    %62 = vector.broadcast %61 : vector<4x8x1xf32> to vector<4x8x8xf32>
    %63 = arith.mulf %60, %62 : vector<4x8x8xf32>
    %64 = tpu.transpose %63, [1, 0, 2] : vector<4x8x8xf32> -> vector<8x4x8xf32>
    %65 = vector.shape_cast %64 : vector<8x4x8xf32> to vector<8x32xf32>
    %c0_27 = arith.constant 0 : index
    %c0_28 = arith.constant 0 : index
    %66 = vector.load %arg7[%c0_27, %c0_28] : memref<32x32xf32, #tpu.memory_space<vmem>>, vector<32x32xf32>
    %cst_29 = arith.constant dense<0.000000e+00> : vector<8x32xf32>
    %67 = tpu.matmul %65, %66, %cst_29 {dimension_numbers = #tpu.dot_dimension_numbers<[1], [0], [0], [1], [0, 0, 1, 1], [], []>} : vector<8x32xf32>, vector<32x32xf32>, vector<8x32xf32> -> vector<8x32xf32>
    %c0_30 = arith.constant 0 : index
    %c0_31 = arith.constant 0 : index
    %68 = vector.load %arg8[%c0_30, %c0_31] : memref<1x32xf32, #tpu.memory_space<vmem>>, vector<1x32xf32>
    %69 = vector.broadcast %68 : vector<1x32xf32> to vector<8x32xf32>
    %70 = arith.addf %67, %69 : vector<8x32xf32>
    %71 = arith.addf %6, %70 : vector<8x32xf32>
    %c0_32 = arith.constant 0 : index
    %c0_33 = arith.constant 0 : index
    %72 = vector.load %arg11[%c0_32, %c0_33] : memref<1x32xf32, #tpu.memory_space<vmem>>, vector<1x32xf32>
    %c0_34 = arith.constant 0 : index
    %c0_35 = arith.constant 0 : index
    %73 = vector.load %arg12[%c0_34, %c0_35] : memref<1x32xf32, #tpu.memory_space<vmem>>, vector<1x32xf32>
    %cst_36 = arith.constant dense<0.000000e+00> : vector<8xf32>
    %74 = vector.multi_reduction <add>, %71, %cst_36 [1] : vector<8x32xf32> to vector<8xf32>
    %75 = vector.shape_cast %74 : vector<8xf32> to vector<8x1xf32>
    %cst_37 = arith.constant 3.200000e+01 : f32
    %76 = vector.broadcast %cst_37 : f32 to vector<8x1xf32>
    %77 = arith.divf %75, %76 : vector<8x1xf32>
    %78 = vector.broadcast %77 : vector<8x1xf32> to vector<8x32xf32>
    %79 = arith.subf %71, %78 : vector<8x32xf32>
    %80 = arith.mulf %79, %79 : vector<8x32xf32>
    %cst_38 = arith.constant dense<0.000000e+00> : vector<8xf32>
    %81 = vector.multi_reduction <add>, %80, %cst_38 [1] : vector<8x32xf32> to vector<8xf32>
    %82 = vector.shape_cast %81 : vector<8xf32> to vector<8x1xf32>
    %cst_39 = arith.constant 3.200000e+01 : f32
    %83 = vector.broadcast %cst_39 : f32 to vector<8x1xf32>
    %84 = arith.divf %82, %83 : vector<8x1xf32>
    %85 = vector.broadcast %77 : vector<8x1xf32> to vector<8x32xf32>
    %86 = arith.subf %71, %85 : vector<8x32xf32>
    %cst_40 = arith.constant 9.99999974E-6 : f32
    %87 = vector.broadcast %cst_40 : f32 to vector<8x1xf32>
    %88 = arith.addf %84, %87 : vector<8x1xf32>
    %89 = math.rsqrt %88 : vector<8x1xf32>
    %90 = vector.broadcast %89 : vector<8x1xf32> to vector<8x32xf32>
    %91 = arith.mulf %86, %90 : vector<8x32xf32>
    %92 = vector.broadcast %72 : vector<1x32xf32> to vector<8x32xf32>
    %93 = arith.mulf %91, %92 : vector<8x32xf32>
    %94 = vector.broadcast %73 : vector<1x32xf32> to vector<8x32xf32>
    %95 = arith.addf %93, %94 : vector<8x32xf32>
    %c0_41 = arith.constant 0 : index
    %c0_42 = arith.constant 0 : index
    %96 = vector.load %arg13[%c0_41, %c0_42] : memref<32x128xf32, #tpu.memory_space<vmem>>, vector<32x128xf32>
    %cst_43 = arith.constant dense<0.000000e+00> : vector<8x128xf32>
    %97 = tpu.matmul %95, %96, %cst_43 {dimension_numbers = #tpu.dot_dimension_numbers<[1], [0], [0], [1], [0, 0, 1, 1], [], []>} : vector<8x32xf32>, vector<32x128xf32>, vector<8x128xf32> -> vector<8x128xf32>
    %c0_44 = arith.constant 0 : index
    %c0_45 = arith.constant 0 : index
    %98 = vector.load %arg14[%c0_44, %c0_45] : memref<1x128xf32, #tpu.memory_space<vmem>>, vector<1x128xf32>
    %99 = vector.broadcast %98 : vector<1x128xf32> to vector<8x128xf32>
    %100 = arith.addf %97, %99 : vector<8x128xf32>
    %cst_46 = arith.constant 5.000000e-01 : f32
    %101 = vector.broadcast %cst_46 : f32 to vector<8x128xf32>
    %102 = arith.mulf %101, %100 : vector<8x128xf32>
    %cst_47 = arith.constant 0.707106769 : f32
    %103 = vector.broadcast %cst_47 : f32 to vector<8x128xf32>
    %104 = arith.mulf %100, %103 : vector<8x128xf32>
    %105 = math.erf %104 : vector<8x128xf32>
    %cst_48 = arith.constant 1.000000e+00 : f32
    %106 = vector.broadcast %cst_48 : f32 to vector<8x128xf32>
    %107 = arith.addf %106, %105 : vector<8x128xf32>
    %108 = arith.mulf %102, %107 : vector<8x128xf32>
    %c0_49 = arith.constant 0 : index
    %c0_50 = arith.constant 0 : index
    %109 = vector.load %arg15[%c0_49, %c0_50] : memref<128x32xf32, #tpu.memory_space<vmem>>, vector<128x32xf32>
    %cst_51 = arith.constant dense<0.000000e+00> : vector<8x32xf32>
    %110 = tpu.matmul %108, %109, %cst_51 {dimension_numbers = #tpu.dot_dimension_numbers<[1], [0], [0], [1], [0, 0, 1, 1], [], []>} : vector<8x128xf32>, vector<128x32xf32>, vector<8x32xf32> -> vector<8x32xf32>
    %c0_52 = arith.constant 0 : index
    %c0_53 = arith.constant 0 : index
    %111 = vector.load %arg16[%c0_52, %c0_53] : memref<1x32xf32, #tpu.memory_space<vmem>>, vector<1x32xf32>
    %112 = vector.broadcast %111 : vector<1x32xf32> to vector<8x32xf32>
    %113 = arith.addf %110, %112 : vector<8x32xf32>
    %114 = arith.addf %71, %113 : vector<8x32xf32>
    %c0_54 = arith.constant 0 : index
    %c0_55 = arith.constant 0 : index
    %c0_56 = arith.constant 0 : index
    %115 = vector.load %arg17[%c0_54, %c0_55, %c0_56] : memref<1x8x32xf32, #tpu.memory_space<vmem>>, vector<1x8x32xf32>
    %116 = vector.shape_cast %115 : vector<1x8x32xf32> to vector<8x32xf32>
    %117 = vector.shape_cast %114 : vector<8x32xf32> to vector<1x8x32xf32>
    tpu.vector_store %arg17[%c0_54, %c0_55, %c0_56], %117 {strides = array<i32>} : memref<1x8x32xf32, #tpu.memory_space<vmem>>, vector<1x8x32xf32>,
    return
  }
  func.func @transform_0(%arg0: i32, %arg1: i32) -> (i32, i32, i32) {
    %c0_i32 = arith.constant 0 : i32
    %c0_i32_0 = arith.constant 0 : i32
    %c0_i32_1 = arith.constant 0 : i32
    return %arg0, %c0_i32, %c0_i32_0 : i32, i32, i32
  }
  func.func @transform_1(%arg0: i32, %arg1: i32) -> (i32, i32, i32) {
    %c0_i32 = arith.constant 0 : i32
    %c0_i32_0 = arith.constant 0 : i32
    return %arg0, %arg1, %c0_i32 : i32, i32, i32
  }
  func.func @transform_2(%arg0: i32, %arg1: i32) -> (i32, i32) {
    %c0_i32 = arith.constant 0 : i32
    %c0_i32_0 = arith.constant 0 : i32
    %c0_i32_1 = arith.constant 0 : i32
    return %c0_i32, %c0_i32_0 : i32, i32
  }
  func.func @transform_3(%arg0: i32, %arg1: i32) -> (i32, i32) {
    %c0_i32 = arith.constant 0 : i32
    %c0_i32_0 = arith.constant 0 : i32
    %c0_i32_1 = arith.constant 0 : i32
    return %c0_i32, %c0_i32_0 : i32, i32
  }
  func.func @transform_4(%arg0: i32, %arg1: i32) -> (i32, i32) {
    %c0_i32 = arith.constant 0 : i32
    %c0_i32_0 = arith.constant 0 : i32
    %c0_i32_1 = arith.constant 0 : i32
    return %c0_i32, %c0_i32_0 : i32, i32
  }
  func.func @transform_5(%arg0: i32, %arg1: i32) -> (i32, i32) {
    %c0_i32 = arith.constant 0 : i32
    %c0_i32_0 = arith.constant 0 : i32
    %c0_i32_1 = arith.constant 0 : i32
    return %c0_i32, %c0_i32_0 : i32, i32
  }
  func.func @transform_6(%arg0: i32, %arg1: i32) -> (i32, i32) {
    %c0_i32 = arith.constant 0 : i32
    %c0_i32_0 = arith.constant 0 : i32
    %c0_i32_1 = arith.constant 0 : i32
    return %c0_i32, %c0_i32_0 : i32, i32
  }
  func.func @transform_7(%arg0: i32, %arg1: i32) -> (i32, i32) {
    %c0_i32 = arith.constant 0 : i32
    %c0_i32_0 = arith.constant 0 : i32
    %c0_i32_1 = arith.constant 0 : i32
    return %c0_i32, %c0_i32_0 : i32, i32
  }
  func.func @transform_8(%arg0: i32, %arg1: i32) -> (i32, i32) {
    %c0_i32 = arith.constant 0 : i32
    %c0_i32_0 = arith.constant 0 : i32
    %c0_i32_1 = arith.constant 0 : i32
    return %c0_i32, %c0_i32_0 : i32, i32
  }
  func.func @transform_9(%arg0: i32, %arg1: i32) -> (i32, i32) {
    %c0_i32 = arith.constant 0 : i32
    %c0_i32_0 = arith.constant 0 : i32
    %c0_i32_1 = arith.constant 0 : i32
    return %c0_i32, %c0_i32_0 : i32, i32
  }
  func.func @transform_10(%arg0: i32, %arg1: i32) -> (i32, i32) {
    %c0_i32 = arith.constant 0 : i32
    %c0_i32_0 = arith.constant 0 : i32
    %c0_i32_1 = arith.constant 0 : i32
    return %c0_i32, %c0_i32_0 : i32, i32
  }
  func.func @transform_11(%arg0: i32, %arg1: i32) -> (i32, i32) {
    %c0_i32 = arith.constant 0 : i32
    %c0_i32_0 = arith.constant 0 : i32
    %c0_i32_1 = arith.constant 0 : i32
    return %c0_i32, %c0_i32_0 : i32, i32
  }
  func.func @transform_12(%arg0: i32, %arg1: i32) -> (i32, i32) {
    %c0_i32 = arith.constant 0 : i32
    %c0_i32_0 = arith.constant 0 : i32
    %c0_i32_1 = arith.constant 0 : i32
    return %c0_i32, %c0_i32_0 : i32, i32
  }
  func.func @transform_13(%arg0: i32, %arg1: i32) -> (i32, i32) {
    %c0_i32 = arith.constant 0 : i32
    %c0_i32_0 = arith.constant 0 : i32
    %c0_i32_1 = arith.constant 0 : i32
    return %c0_i32, %c0_i32_0 : i32, i32
  }
  func.func @transform_14(%arg0: i32, %arg1: i32) -> (i32, i32) {
    %c0_i32 = arith.constant 0 : i32
    %c0_i32_0 = arith.constant 0 : i32
    %c0_i32_1 = arith.constant 0 : i32
    return %c0_i32, %c0_i32_0 : i32, i32
  }
  func.func @transform_15(%arg0: i32, %arg1: i32) -> (i32, i32, i32) {
    %c0_i32 = arith.constant 0 : i32
    %c0_i32_0 = arith.constant 0 : i32
    return %arg0, %arg1, %c0_i32 : i32, i32, i32
  }
}

</mosaic_0001>

<llo_original>
// kernel: tpu_custom_call.1
$region0: #{tpu_custom_call.1}
  #allocation0 [shape = 'u32[]', space=smem, size = 0x4, offset = 0x4, fixed_abs, tag = 'smem constant byte address 0x4 - core index']
  #allocation1 [shape = 'u32[144,128]{1,0:T(1,128)}', space=vmem, size = 0x12000, scoped, tag = 'internal scratch']
  #allocation2 [shape = 'f32[4,8,8]{2,1,0:T(8,128)}', space=vmem, size = 0x4000, scoped, tag = 'scratch operand']
  #allocation3 [shape = 'f32[4,8,8]{2,1,0:T(8,128)}', space=vmem, size = 0x4000, scoped, tag = 'scratch operand']
  %s0 = inlined_call_operand.hbm [shape: f32[2,8,32], index: 0, kind: input, shape index: {}]
  %s1 = inlined_call_operand.hbm [shape: f32[2,8,32], index: 1, kind: input, shape index: {}]
  %s2 = inlined_call_operand.vmem [shape: f32[32,32], index: 2, kind: input, shape index: {}]
  %s3 = inlined_call_operand.vmem [shape: f32[32,32], index: 3, kind: input, shape index: {}]
  %s4 = inlined_call_operand.vmem [shape: f32[32,32], index: 4, kind: input, shape index: {}]
  %s5 = inlined_call_operand.vmem [shape: f32[32,32], index: 5, kind: input, shape index: {}]
  %s6 = inlined_call_operand.vmem [shape: f32[1,32], index: 6, kind: input, shape index: {}]
  %s7 = inlined_call_operand.vmem [shape: f32[1,32], index: 7, kind: input, shape index: {}]
  %s8 = inlined_call_operand.vmem [shape: f32[1,32], index: 8, kind: input, shape index: {}]
  %s9 = inlined_call_operand.vmem [shape: f32[1,32], index: 9, kind: input, shape index: {}]
  %s10 = inlined_call_operand.vmem [shape: f32[1,32], index: 10, kind: input, shape index: {}]
  %s11 = inlined_call_operand.vmem [shape: f32[32,128], index: 11, kind: input, shape index: {}]
  %s12 = inlined_call_operand.vmem [shape: f32[1,128], index: 12, kind: input, shape index: {}]
  %s13 = inlined_call_operand.vmem [shape: f32[128,32], index: 13, kind: input, shape index: {}]
  %s14 = inlined_call_operand.vmem [shape: f32[1,32], index: 14, kind: input, shape index: {}]
  %s15 = inlined_call_operand.hbm [shape: f32[2,8,32], index: 15, kind: output, shape index: {}]
  %s16 = sld [smem:[#allocation0]]
  $region105: #{tpu_custom_call.1} parent=0
    _
  %s18 = ssub.s32 1, %s16
  %s19 = scalar_select 0, %s18, %s16
  $region1: #{tpu_custom_call.1} parent=0
    #allocation4 [shape = 'u8[8192]{0}', space=vmem, size = 0x2000, scoped, tag = 'input window, operand 0']
    #allocation5 [shape = 's32[2]{0}', space=sflag, size = 0x8, scoped, tag = 'scoped memory for tpu_custom_call.1']
    #allocation6 [shape = 's32[2]{0}', space=sflag, size = 0x8, scoped, tag = 'scoped memory for tpu_custom_call.1']
    #allocation7 [shape = 'u8[8192]{0}', space=vmem, size = 0x2000, scoped, tag = 'input window, operand 1']
    #allocation8 [shape = 's32[2]{0}', space=sflag, size = 0x8, scoped, tag = 'scoped memory for tpu_custom_call.1']
    #allocation9 [shape = 'u8[8192]{0}', space=vmem, size = 0x2000, scoped, tag = 'output window, operand 0']
    %20 = vsyncpa [#allocation5], 0
    %s21 = scalar_lea.sflag [#allocation5], 1
    %22 = vsyncpa %s21, 0
    %23 = vsyncpa [#allocation8], 0
    %s24 = scalar_lea.sflag [#allocation8], 1
    %25 = vsyncpa %s24, 0
    %26 = vsyncpa [#allocation6], 0
    %s27 = scalar_lea.sflag [#allocation6], 1
    %28 = vsyncpa %s27, 0
    loop: start=0, step=1, limit=4
    $region2: #{tpu_custom_call.1} parent=1 // loop_pre_header
      _
    $region3: #{tpu_custom_call.1} parent=1 // loop_header
      %s30 = sphi 0, %s34
      %p31 = scmp.ge.s32.totalorder %s30, 4
      %s37 = sphi 0, %s49
      %s38 = sphi 0, %s45
      %s39 = sphi 0, %s37
      %s40 = sphi 0, %s38
      %s41 = sphi 0, %s39
      %s42 = sphi 0, %s40
      %s52 = sphi 0, %s54
      %s55 = sphi 0, %s52
      %s56 = sphi 0, %s55
      %s72 = sphi 0, %s56
      %s80 = sphi 0, %s82
      %s83 = sphi 0, %s80
      %s84 = sphi 0, %s83
      %s100 = sphi 0, %s84
      %s104 = sphi 0, %s104
      %s106 = sphi 0, %s104
      %s107 = sphi 0, %s106
      %s121 = sphi 0, %s107
      %s125 = sphi 0, %s125
      %s127 = sphi 0, %s125
      %s128 = sphi 0, %s127
      %s142 = sphi 0, %s128
      %s146 = sphi 0, %s146
      %s148 = sphi 0, %s146
      %s149 = sphi 0, %s148
      %s163 = sphi 0, %s149
      %s167 = sphi 0, %s167
      %s169 = sphi 0, %s167
      %s170 = sphi 0, %s169
      %s184 = sphi 0, %s170
      %s188 = sphi 0, %s188
      %s190 = sphi 0, %s188
      %s191 = sphi 0, %s190
      %s205 = sphi 0, %s191
      %s209 = sphi 0, %s209
      %s211 = sphi 0, %s209
      %s212 = sphi 0, %s211
      %s226 = sphi 0, %s212
      %s230 = sphi 0, %s230
      %s232 = sphi 0, %s230
      %s233 = sphi 0, %s232
      %s247 = sphi 0, %s233
      %s251 = sphi 0, %s251
      %s253 = sphi 0, %s251
      %s254 = sphi 0, %s253
      %s268 = sphi 0, %s254
      %s272 = sphi 0, %s272
      %s274 = sphi 0, %s272
      %s275 = sphi 0, %s274
      %s289 = sphi 0, %s275
      %s293 = sphi 0, %s293
      %s295 = sphi 0, %s293
      %s296 = sphi 0, %s295
      %s310 = sphi 0, %s296
      %s314 = sphi 0, %s314
      %s316 = sphi 0, %s314
      %s317 = sphi 0, %s316
      %s331 = sphi 0, %s317
      %s335 = sphi 0, %s335
      %s337 = sphi 0, %s335
      %s338 = sphi 0, %s337
      %s352 = sphi 0, %s338
      %s356 = sphi 0, %s356
      %s358 = sphi 0, %s356
      %s359 = sphi 0, %s358
      %s373 = sphi 0, %s359
      %s381 = sphi 0, %s383
      %s384 = sphi 0, %s381
      %s385 = sphi 0, %s384
      %s401 = sphi 0, %s385
    $region4: #{tpu_custom_call.1} parent=1 // loop_header_branch
      %33 = sbr.rel (%p31) target = $region8
    $region5: #{tpu_custom_call.1} parent=1 // loop_body
      %s35 = ssub.s32 %s30, 1
      %s36 = ssub.s32 %s30, 2
      %s43 = sadd.s32 1, %s38
      %p44 = scmp.ge.s32.totalorder %s43, 1
      %s45 = scalar_select %p44, 0, %s43
      %s46 = sadd.s32 1, %s37
      %s47 = scalar_select %p44, %s46, %s37
      %p48 = scmp.ge.s32.totalorder %s47, 2
      %s49 = scalar_select %p48, 0, %s47
      %s50 = ssub.s32 %s37, %s49
      %p51 = scmp.eq.s32.totalorder %s50, 0
      %s53 = sadd.s32 %s52, 1
      %s54 = scalar_select %p51, %s52, %s53
      %p57 = pneg %p51
      %p58 = scmp.eq.s32.totalorder %s30, 1
      %p59 = por %p57, %p58
      %p60 = scmp.ne.s32.totalorder %s52, %s55
      %p61 = scmp.eq.s32.totalorder %s30, 0
      %p62 = por %p60, %p61
      %p63 = scmp.ne.s32.totalorder %s52, %s55
      %p64 = scmp.eq.s32.totalorder %s35, 1
      %p65 = por %p63, %p64
      %p66 = scmp.ne.s32.totalorder %s55, %s56
      %p67 = scmp.eq.s32.totalorder %s35, 0
      %p68 = por %p66, %p67
      %p69 = scmp.ne.s32.totalorder %s55, %s56
      %p70 = scmp.eq.s32.totalorder %s36, 1
      %p71 = por %p69, %p70
      %p73 = scmp.ne.s32.totalorder %s56, %s72
      %p74 = scmp.eq.s32.totalorder %s36, 0
      %p75 = por %p73, %p74
      %s76 = ssub.s32 %s37, %s49
      %s77 = ssub.s32 %s38, %s45
      %s78 = sor.u32 %s76, %s77
      %p79 = scmp.eq.s32.totalorder %s78, 0
      %s81 = sadd.s32 %s80, 1
      %s82 = scalar_select %p79, %s80, %s81
      %p85 = pneg %p79
      %p86 = scmp.eq.s32.totalorder %s30, 1
      %p87 = por %p85, %p86
      %p88 = scmp.ne.s32.totalorder %s80, %s83
      %p89 = scmp.eq.s32.totalorder %s30, 0
      %p90 = por %p88, %p89
      %p91 = scmp.ne.s32.totalorder %s80, %s83
      %p92 = scmp.eq.s32.totalorder %s35, 1
      %p93 = por %p91, %p92
      %p94 = scmp.ne.s32.totalorder %s83, %s84
      %p95 = scmp.eq.s32.totalorder %s35, 0
      %p96 = por %p94, %p95
      %p97 = scmp.ne.s32.totalorder %s83, %s84
      %p98 = scmp.eq.s32.totalorder %s36, 1
      %p99 = por %p97, %p98
      %p101 = scmp.ne.s32.totalorder %s84, %s100
      %p102 = scmp.eq.s32.totalorder %s36, 0
      %p103 = por %p101, %p102
      %s105 = sadd.s32 %s104, 1
      %p108 = scmp.eq.s32.totalorder %s30, 1
      %p109 = scmp.ne.s32.totalorder %s104, %s106
      %p110 = scmp.eq.s32.totalorder %s30, 0
      %p111 = por %p109, %p110
      %p112 = scmp.ne.s32.totalorder %s104, %s106
      %p113 = scmp.eq.s32.totalorder %s35, 1
      %p114 = por %p112, %p113
      %p115 = scmp.ne.s32.totalorder %s106, %s107
      %p116 = scmp.eq.s32.totalorder %s35, 0
      %p117 = por %p115, %p116
      %p118 = scmp.ne.s32.totalorder %s106, %s107
      %p119 = scmp.eq.s32.totalorder %s36, 1
      %p120 = por %p118, %p119
      %p122 = scmp.ne.s32.totalorder %s107, %s121
      %p123 = scmp.eq.s32.totalorder %s36, 0
      %p124 = por %p122, %p123
      %s126 = sadd.s32 %s125, 1
      %p129 = scmp.eq.s32.totalorder %s30, 1
      %p130 = scmp.ne.s32.totalorder %s125, %s127
      %p131 = scmp.eq.s32.totalorder %s30, 0
      %p132 = por %p130, %p131
      %p133 = scmp.ne.s32.totalorder %s125, %s127
      %p134 = scmp.eq.s32.totalorder %s35, 1
      %p135 = por %p133, %p134
      %p136 = scmp.ne.s32.totalorder %s127, %s128
      %p137 = scmp.eq.s32.totalorder %s35, 0
      %p138 = por %p136, %p137
      %p139 = scmp.ne.s32.totalorder %s127, %s128
      %p140 = scmp.eq.s32.totalorder %s36, 1
      %p141 = por %p139, %p140
      %p143 = scmp.ne.s32.totalorder %s128, %s142
      %p144 = scmp.eq.s32.totalorder %s36, 0
      %p145 = por %p143, %p144
      %s147 = sadd.s32 %s146, 1
      %p150 = scmp.eq.s32.totalorder %s30, 1
      %p151 = scmp.ne.s32.totalorder %s146, %s148
      %p152 = scmp.eq.s32.totalorder %s30, 0
      %p153 = por %p151, %p152
      %p154 = scmp.ne.s32.totalorder %s146, %s148
      %p155 = scmp.eq.s32.totalorder %s35, 1
      %p156 = por %p154, %p155
      %p157 = scmp.ne.s32.totalorder %s148, %s149
      %p158 = scmp.eq.s32.totalorder %s35, 0
      %p159 = por %p157, %p158
      %p160 = scmp.ne.s32.totalorder %s148, %s149
      %p161 = scmp.eq.s32.totalorder %s36, 1
      %p162 = por %p160, %p161
      %p164 = scmp.ne.s32.totalorder %s149, %s163
      %p165 = scmp.eq.s32.totalorder %s36, 0
      %p166 = por %p164, %p165
      %s168 = sadd.s32 %s167, 1
      %p171 = scmp.eq.s32.totalorder %s30, 1
      %p172 = scmp.ne.s32.totalorder %s167, %s169
      %p173 = scmp.eq.s32.totalorder %s30, 0
      %p174 = por %p172, %p173
      %p175 = scmp.ne.s32.totalorder %s167, %s169
      %p176 = scmp.eq.s32.totalorder %s35, 1
      %p177 = por %p175, %p176
      %p178 = scmp.ne.s32.totalorder %s169, %s170
      %p179 = scmp.eq.s32.totalorder %s35, 0
      %p180 = por %p178, %p179
      %p181 = scmp.ne.s32.totalorder %s169, %s170
      %p182 = scmp.eq.s32.totalorder %s36, 1
      %p183 = por %p181, %p182
      %p185 = scmp.ne.s32.totalorder %s170, %s184
      %p186 = scmp.eq.s32.totalorder %s36, 0
      %p187 = por %p185, %p186
      %s189 = sadd.s32 %s188, 1
      %p192 = scmp.eq.s32.totalorder %s30, 1
      %p193 = scmp.ne.s32.totalorder %s188, %s190
      %p194 = scmp.eq.s32.totalorder %s30, 0
      %p195 = por %p193, %p194
      %p196 = scmp.ne.s32.totalorder %s188, %s190
      %p197 = scmp.eq.s32.totalorder %s35, 1
      %p198 = por %p196, %p197
      %p199 = scmp.ne.s32.totalorder %s190, %s191
      %p200 = scmp.eq.s32.totalorder %s35, 0
      %p201 = por %p199, %p200
      %p202 = scmp.ne.s32.totalorder %s190, %s191
      %p203 = scmp.eq.s32.totalorder %s36, 1
      %p204 = por %p202, %p203
      %p206 = scmp.ne.s32.totalorder %s191, %s205
      %p207 = scmp.eq.s32.totalorder %s36, 0
      %p208 = por %p206, %p207
      %s210 = sadd.s32 %s209, 1
      %p213 = scmp.eq.s32.totalorder %s30, 1
      %p214 = scmp.ne.s32.totalorder %s209, %s211
      %p215 = scmp.eq.s32.totalorder %s30, 0
      %p216 = por %p214, %p215
      %p217 = scmp.ne.s32.totalorder %s209, %s211
      %p218 = scmp.eq.s32.totalorder %s35, 1
      %p219 = por %p217, %p218
      %p220 = scmp.ne.s32.totalorder %s211, %s212
      %p221 = scmp.eq.s32.totalorder %s35, 0
      %p222 = por %p220, %p221
      %p223 = scmp.ne.s32.totalorder %s211, %s212
      %p224 = scmp.eq.s32.totalorder %s36, 1
      %p225 = por %p223, %p224
      %p227 = scmp.ne.s32.totalorder %s212, %s226
      %p228 = scmp.eq.s32.totalorder %s36, 0
      %p229 = por %p227, %p228
      %s231 = sadd.s32 %s230, 1
      %p234 = scmp.eq.s32.totalorder %s30, 1
      %p235 = scmp.ne.s32.totalorder %s230, %s232
      %p236 = scmp.eq.s32.totalorder %s30, 0
      %p237 = por %p235, %p236
      %p238 = scmp.ne.s32.totalorder %s230, %s232
      %p239 = scmp.eq.s32.totalorder %s35, 1
      %p240 = por %p238, %p239
      %p241 = scmp.ne.s32.totalorder %s232, %s233
      %p242 = scmp.eq.s32.totalorder %s35, 0
      %p243 = por %p241, %p242
      %p244 = scmp.ne.s32.totalorder %s232, %s233
      %p245 = scmp.eq.s32.totalorder %s36, 1
      %p246 = por %p244, %p245
      %p248 = scmp.ne.s32.totalorder %s233, %s247
      %p249 = scmp.eq.s32.totalorder %s36, 0
      %p250 = por %p248, %p249
      %s252 = sadd.s32 %s251, 1
      %p255 = scmp.eq.s32.totalorder %s30, 1
      %p256 = scmp.ne.s32.totalorder %s251, %s253
      %p257 = scmp.eq.s32.totalorder %s30, 0
      %p258 = por %p256, %p257
      %p259 = scmp.ne.s32.totalorder %s251, %s253
      %p260 = scmp.eq.s32.totalorder %s35, 1
      %p261 = por %p259, %p260
      %p262 = scmp.ne.s32.totalorder %s253, %s254
      %p263 = scmp.eq.s32.totalorder %s35, 0
      %p264 = por %p262, %p263
      %p265 = scmp.ne.s32.totalorder %s253, %s254
      %p266 = scmp.eq.s32.totalorder %s36, 1
      %p267 = por %p265, %p266
      %p269 = scmp.ne.s32.totalorder %s254, %s268
      %p270 = scmp.eq.s32.totalorder %s36, 0
      %p271 = por %p269, %p270
      %s273 = sadd.s32 %s272, 1
      %p276 = scmp.eq.s32.totalorder %s30, 1
      %p277 = scmp.ne.s32.totalorder %s272, %s274
      %p278 = scmp.eq.s32.totalorder %s30, 0
      %p279 = por %p277, %p278
      %p280 = scmp.ne.s32.totalorder %s272, %s274
      %p281 = scmp.eq.s32.totalorder %s35, 1
      %p282 = por %p280, %p281
      %p283 = scmp.ne.s32.totalorder %s274, %s275
      %p284 = scmp.eq.s32.totalorder %s35, 0
      %p285 = por %p283, %p284
      %p286 = scmp.ne.s32.totalorder %s274, %s275
      %p287 = scmp.eq.s32.totalorder %s36, 1
      %p288 = por %p286, %p287
      %p290 = scmp.ne.s32.totalorder %s275, %s289
      %p291 = scmp.eq.s32.totalorder %s36, 0
      %p292 = por %p290, %p291
      %s294 = sadd.s32 %s293, 1
      %p297 = scmp.eq.s32.totalorder %s30, 1
      %p298 = scmp.ne.s32.totalorder %s293, %s295
      %p299 = scmp.eq.s32.totalorder %s30, 0
      %p300 = por %p298, %p299
      %p301 = scmp.ne.s32.totalorder %s293, %s295
      %p302 = scmp.eq.s32.totalorder %s35, 1
      %p303 = por %p301, %p302
      %p304 = scmp.ne.s32.totalorder %s295, %s296
      %p305 = scmp.eq.s32.totalorder %s35, 0
      %p306 = por %p304, %p305
      %p307 = scmp.ne.s32.totalorder %s295, %s296
      %p308 = scmp.eq.s32.totalorder %s36, 1
      %p309 = por %p307, %p308
      %p311 = scmp.ne.s32.totalorder %s296, %s310
      %p312 = scmp.eq.s32.totalorder %s36, 0
      %p313 = por %p311, %p312
      %s315 = sadd.s32 %s314, 1
      %p318 = scmp.eq.s32.totalorder %s30, 1
      %p319 = scmp.ne.s32.totalorder %s314, %s316
      %p320 = scmp.eq.s32.totalorder %s30, 0
      %p321 = por %p319, %p320
      %p322 = scmp.ne.s32.totalorder %s314, %s316
      %p323 = scmp.eq.s32.totalorder %s35, 1
      %p324 = por %p322, %p323
      %p325 = scmp.ne.s32.totalorder %s316, %s317
      %p326 = scmp.eq.s32.totalorder %s35, 0
      %p327 = por %p325, %p326
      %p328 = scmp.ne.s32.totalorder %s316, %s317
      %p329 = scmp.eq.s32.totalorder %s36, 1
      %p330 = por %p328, %p329
      %p332 = scmp.ne.s32.totalorder %s317, %s331
      %p333 = scmp.eq.s32.totalorder %s36, 0
      %p334 = por %p332, %p333
      %s336 = sadd.s32 %s335, 1
      %p339 = scmp.eq.s32.totalorder %s30, 1
      %p340 = scmp.ne.s32.totalorder %s335, %s337
      %p341 = scmp.eq.s32.totalorder %s30, 0
      %p342 = por %p340, %p341
      %p343 = scmp.ne.s32.totalorder %s335, %s337
      %p344 = scmp.eq.s32.totalorder %s35, 1
      %p345 = por %p343, %p344
      %p346 = scmp.ne.s32.totalorder %s337, %s338
      %p347 = scmp.eq.s32.totalorder %s35, 0
      %p348 = por %p346, %p347
      %p349 = scmp.ne.s32.totalorder %s337, %s338
      %p350 = scmp.eq.s32.totalorder %s36, 1
      %p351 = por %p349, %p350
      %p353 = scmp.ne.s32.totalorder %s338, %s352
      %p354 = scmp.eq.s32.totalorder %s36, 0
      %p355 = por %p353, %p354
      %s357 = sadd.s32 %s356, 1
      %p360 = scmp.eq.s32.totalorder %s30, 1
      %p361 = scmp.ne.s32.totalorder %s356, %s358
      %p362 = scmp.eq.s32.totalorder %s30, 0
      %p363 = por %p361, %p362
      %p364 = scmp.ne.s32.totalorder %s356, %s358
      %p365 = scmp.eq.s32.totalorder %s35, 1
      %p366 = por %p364, %p365
      %p367 = scmp.ne.s32.totalorder %s358, %s359
      %p368 = scmp.eq.s32.totalorder %s35, 0
      %p369 = por %p367, %p368
      %p370 = scmp.ne.s32.totalorder %s358, %s359
      %p371 = scmp.eq.s32.totalorder %s36, 1
      %p372 = por %p370, %p371
      %p374 = scmp.ne.s32.totalorder %s359, %s373
      %p375 = scmp.eq.s32.totalorder %s36, 0
      %p376 = por %p374, %p375
      %s377 = ssub.s32 %s37, %s49
      %s378 = ssub.s32 %s38, %s45
      %s379 = sor.u32 %s377, %s378
      %p380 = scmp.eq.s32.totalorder %s379, 0
      %s382 = sadd.s32 %s381, 1
      %s383 = scalar_select %p380, %s381, %s382
      %p386 = pneg %p380
      %p387 = scmp.eq.s32.totalorder %s30, 1
      %p388 = por %p386, %p387
      %p389 = scmp.ne.s32.totalorder %s381, %s384
      %p390 = scmp.eq.s32.totalorder %s30, 0
      %p391 = por %p389, %p390
      %p392 = scmp.ne.s32.totalorder %s381, %s384
      %p393 = scmp.eq.s32.totalorder %s35, 1
      %p394 = por %p392, %p393
      %p395 = scmp.ne.s32.totalorder %s384, %s385
      %p396 = scmp.eq.s32.totalorder %s35, 0
      %p397 = por %p395, %p396
      %p398 = scmp.ne.s32.totalorder %s384, %s385
      %p399 = scmp.eq.s32.totalorder %s36, 1
      %p400 = por %p398, %p399
      %p402 = scmp.ne.s32.totalorder %s385, %s401
      %p403 = scmp.eq.s32.totalorder %s36, 0
      %p404 = por %p402, %p403
      %p405 = scmp.le.s32.totalorder 1, %s30
      %p406 = scmp.lt.s32.totalorder %s30, 3
      %p407 = pnand %p405, %p406
      %p408 = pneg %p407
      // Predicated region
      $region9: #{tpu_custom_call.1} parent=5 // pred_check
        _
      $region10: #{tpu_custom_call.1} parent=5 // pred_check_branch
        %410 = sbr.rel (%p407) target = $region12
      $region11: #{tpu_custom_call.1} parent=5 // pred_region
        %s411 = ssub.s32 %s30, 1
        // Predicated region
        $region13: #{tpu_custom_call.1} parent=11 // pred_check
          %p412 = pneg %p117
        $region14: #{tpu_custom_call.1} parent=11 // pred_check_branch
          %414 = sbr.rel (%p412) target = $region16
        $region15: #{tpu_custom_call.1} parent=11 // pred_region
          _
        $region16: #{tpu_custom_call.1} parent=11 // pred_fallthru
          _
        // Predicated region
        $region17: #{tpu_custom_call.1} parent=11 // pred_check
          %p415 = pneg %p138
        $region18: #{tpu_custom_call.1} parent=11 // pred_check_branch
          %417 = sbr.rel (%p415) target = $region20
        $region19: #{tpu_custom_call.1} parent=11 // pred_region
          _
        $region20: #{tpu_custom_call.1} parent=11 // pred_fallthru
          _
        // Predicated region
        $region21: #{tpu_custom_call.1} parent=11 // pred_check
          %p418 = pneg %p159
        $region22: #{tpu_custom_call.1} parent=11 // pred_check_branch
          %420 = sbr.rel (%p418) target = $region24
        $region23: #{tpu_custom_call.1} parent=11 // pred_region
          _
        $region24: #{tpu_custom_call.1} parent=11 // pred_fallthru
          _
        // Predicated region
        $region25: #{tpu_custom_call.1} parent=11 // pred_check
          %p421 = pneg %p180
        $region26: #{tpu_custom_call.1} parent=11 // pred_check_branch
          %423 = sbr.rel (%p421) target = $region28
        $region27: #{tpu_custom_call.1} parent=11 // pred_region
          _
        $region28: #{tpu_custom_call.1} parent=11 // pred_fallthru
          _
        // Predicated region
        $region29: #{tpu_custom_call.1} parent=11 // pred_check
          %p424 = pneg %p201
        $region30: #{tpu_custom_call.1} parent=11 // pred_check_branch
          %426 = sbr.rel (%p424) target = $region32
        $region31: #{tpu_custom_call.1} parent=11 // pred_region
          _
        $region32: #{tpu_custom_call.1} parent=11 // pred_fallthru
          _
        // Predicated region
        $region33: #{tpu_custom_call.1} parent=11 // pred_check
          %p427 = pneg %p222
        $region34: #{tpu_custom_call.1} parent=11 // pred_check_branch
          %429 = sbr.rel (%p427) target = $region36
        $region35: #{tpu_custom_call.1} parent=11 // pred_region
          _
        $region36: #{tpu_custom_call.1} parent=11 // pred_fallthru
          _
        // Predicated region
        $region37: #{tpu_custom_call.1} parent=11 // pred_check
          %p430 = pneg %p243
        $region38: #{tpu_custom_call.1} parent=11 // pred_check_branch
          %432 = sbr.rel (%p430) target = $region40
        $region39: #{tpu_custom_call.1} parent=11 // pred_region
          _
        $region40: #{tpu_custom_call.1} parent=11 // pred_fallthru
          _
        // Predicated region
        $region41: #{tpu_custom_call.1} parent=11 // pred_check
          %p433 = pneg %p264
        $region42: #{tpu_custom_call.1} parent=11 // pred_check_branch
          %435 = sbr.rel (%p433) target = $region44
        $region43: #{tpu_custom_call.1} parent=11 // pred_region
          _
        $region44: #{tpu_custom_call.1} parent=11 // pred_fallthru
          _
        // Predicated region
        $region45: #{tpu_custom_call.1} parent=11 // pred_check
          %p436 = pneg %p285
        $region46: #{tpu_custom_call.1} parent=11 // pred_check_branch
          %438 = sbr.rel (%p436) target = $region48
        $region47: #{tpu_custom_call.1} parent=11 // pred_region
          _
        $region48: #{tpu_custom_call.1} parent=11 // pred_fallthru
          _
        // Predicated region
        $region49: #{tpu_custom_call.1} parent=11 // pred_check
          %p439 = pneg %p306
        $region50: #{tpu_custom_call.1} parent=11 // pred_check_branch
          %441 = sbr.rel (%p439) target = $region52
        $region51: #{tpu_custom_call.1} parent=11 // pred_region
          _
        $region52: #{tpu_custom_call.1} parent=11 // pred_fallthru
          _
        // Predicated region
        $region53: #{tpu_custom_call.1} parent=11 // pred_check
          %p442 = pneg %p327
        $region54: #{tpu_custom_call.1} parent=11 // pred_check_branch
          %444 = sbr.rel (%p442) target = $region56
        $region55: #{tpu_custom_call.1} parent=11 // pred_region
          _
        $region56: #{tpu_custom_call.1} parent=11 // pred_fallthru
          _
        // Predicated region
        $region57: #{tpu_custom_call.1} parent=11 // pred_check
          %p445 = pneg %p348
        $region58: #{tpu_custom_call.1} parent=11 // pred_check_branch
          %447 = sbr.rel (%p445) target = $region60
        $region59: #{tpu_custom_call.1} parent=11 // pred_region
          _
        $region60: #{tpu_custom_call.1} parent=11 // pred_fallthru
          _
        // Predicated region
        $region61: #{tpu_custom_call.1} parent=11 // pred_check
          %p448 = pneg %p369
        $region62: #{tpu_custom_call.1} parent=11 // pred_check_branch
          %450 = sbr.rel (%p448) target = $region64
        $region63: #{tpu_custom_call.1} parent=11 // pred_region
          _
        $region64: #{tpu_custom_call.1} parent=11 // pred_fallthru
          _
      $region12: #{tpu_custom_call.1} parent=5 // pred_fallthru
        _
      %p451 = scmp.lt.s32.totalorder %s30, 2
      // Predicated region
      $region65: #{tpu_custom_call.1} parent=5 // pred_check
        %p452 = pneg %p451
      $region66: #{tpu_custom_call.1} parent=5 // pred_check_branch
        %454 = sbr.rel (%p452) target = $region68
      $region67: #{tpu_custom_call.1} parent=5 // pred_region
        // Predicated region
        $region69: #{tpu_custom_call.1} parent=67 // pred_check
          %p455 = pneg %p62
        $region70: #{tpu_custom_call.1} parent=67 // pred_check_branch
          %457 = sbr.rel (%p455) target = $region72
        $region71: #{tpu_custom_call.1} parent=67 // pred_region
          %s458 = sand.u32 %s52, 1
          %s459 = scalar_lea.sflag [#allocation5], %s458
          %s460 = sand.u32 %s52, 1
          %s461 = smul.addr %s460, 8
          %s462 = scalar_lea.vmem [#allocation4], %s461
          %s464 = ssub.s32 128, 128
          %465 = vsyncadd %s459, %s464
          %s466 = smul.addr %s37, 128
          %s467 = scalar_lea.hbm %s0, %s466
          %s469 = sshll.u32 %s462, 4
          %s470 = int_to_ptr.vmem [resolvable:$true] %s469
          %472 = dma.hbm_to_vmem [thread:$0]  %s467, 128, %s470, %s459
        $region72: #{tpu_custom_call.1} parent=67 // pred_fallthru
          _
        // Predicated region
        $region73: #{tpu_custom_call.1} parent=67 // pred_check
          %p473 = pneg %p90
        $region74: #{tpu_custom_call.1} parent=67 // pred_check_branch
          %475 = sbr.rel (%p473) target = $region76
        $region75: #{tpu_custom_call.1} parent=67 // pred_region
          %s476 = sand.u32 %s80, 1
          %s477 = scalar_lea.sflag [#allocation8], %s476
          %s478 = sand.u32 %s80, 1
          %s479 = smul.addr %s478, 8
          %s480 = scalar_lea.vmem [#allocation7], %s479
          %s482 = ssub.s32 128, 128
          %483 = vsyncadd %s477, %s482
          %s484 = sadd.s32 %s38, %s37
          %s485 = smul.addr %s484, 128
          %s486 = scalar_lea.hbm %s1, %s485
          %s488 = sshll.u32 %s480, 4
          %s489 = int_to_ptr.vmem [resolvable:$true] %s488
          %491 = dma.hbm_to_vmem [thread:$0]  %s486, 128, %s489, %s477
        $region76: #{tpu_custom_call.1} parent=67 // pred_fallthru
          _
      $region68: #{tpu_custom_call.1} parent=5 // pred_fallthru
        _
      %p492 = scmp.le.s32.totalorder 1, %s30
      %p493 = scmp.lt.s32.totalorder %s30, 3
      %p494 = pnand %p492, %p493
      %p495 = pneg %p494
      // Predicated region
      $region77: #{tpu_custom_call.1} parent=5 // pred_check
        _
      $region78: #{tpu_custom_call.1} parent=5 // pred_check_branch
        %497 = sbr.rel (%p494) target = $region80
      $region79: #{tpu_custom_call.1} parent=5 // pred_region
        %s498 = ssub.s32 %s30, 1
        %s499 = sand.u32 %s55, 1
        %s500 = scalar_lea.sflag [#allocation5], %s499
        %s501 = sand.u32 %s55, 1
        %s502 = smul.addr %s501, 8
        %s503 = scalar_lea.vmem [#allocation4], %s502
        // Predicated region
        $region81: #{tpu_custom_call.1} parent=79 // pred_check
          %p504 = pneg %p68
        $region82: #{tpu_custom_call.1} parent=79 // pred_check_branch
          %506 = sbr.rel (%p504) target = $region84
        $region83: #{tpu_custom_call.1} parent=79 // pred_region
          %507 = dma.done %s500, 128
        $region84: #{tpu_custom_call.1} parent=79 // pred_fallthru
          _
        %s508 = sand.u32 %s83, 1
        %s509 = scalar_lea.sflag [#allocation8], %s508
        %s510 = sand.u32 %s83, 1
        %s511 = smul.addr %s510, 8
        %s512 = scalar_lea.vmem [#allocation7], %s511
        // Predicated region
        $region85: #{tpu_custom_call.1} parent=79 // pred_check
          %p513 = pneg %p96
        $region86: #{tpu_custom_call.1} parent=79 // pred_check_branch
          %515 = sbr.rel (%p513) target = $region88
        $region87: #{tpu_custom_call.1} parent=79 // pred_region
          %516 = dma.done %s509, 128
        $region88: #{tpu_custom_call.1} parent=79 // pred_fallthru
          _
        %s517 = sand.u32 %s55, 1
        %s518 = scalar_lea.sflag [#allocation5], %s517
        %s519 = sand.u32 %s55, 1
        %s520 = smul.addr %s519, 8
        %s521 = scalar_lea.vmem [#allocation4], %s520
        %p522 = pneg %p68
        %p523 = pneg %p65
        %s524 = sand.u32 %s83, 1
        %s525 = scalar_lea.sflag [#allocation8], %s524
        %s526 = sand.u32 %s83, 1
        %s527 = smul.addr %s526, 8
        %s528 = scalar_lea.vmem [#allocation7], %s527
        %p529 = pneg %p96
        %p530 = pneg %p93
        %p531 = pneg %p117
        %p532 = pneg %p114
        %p533 = pneg %p138
        %p534 = pneg %p135
        %p535 = pneg %p159
        %p536 = pneg %p156
        %p537 = pneg %p180
        %p538 = pneg %p177
        %p539 = pneg %p201
        %p540 = pneg %p198
        %p541 = pneg %p222
        %p542 = pneg %p219
        %p543 = pneg %p243
        %p544 = pneg %p240
        %p545 = pneg %p264
        %p546 = pneg %p261
        %p547 = pneg %p285
        %p548 = pneg %p282
        %p549 = pneg %p306
        %p550 = pneg %p303
        %p551 = pneg %p327
        %p552 = pneg %p324
        %p553 = pneg %p348
        %p554 = pneg %p345
        %p555 = pneg %p369
        %p556 = pneg %p366
        %p557 = pneg %p397
        %p558 = pneg %p394
        %s559 = sand.u32 %s384, 1
        %s560 = scalar_lea.sflag [#allocation6], %s559
        %s561 = sand.u32 %s384, 1
        %s562 = smul.addr %s561, 8
        %s563 = scalar_lea.vmem [#allocation9], %s562
        %v564 = vld [vmem:[%s7] sm:$0x1]
        %v565 = vld [vmem:[%s8] sm:$0x1]
        %p566 = scmp.eq.s32.totalorder %s40, 0
        // Predicated region
        $region89: #{tpu_custom_call.1} parent=79 // pred_check
          %p567 = pneg %p566
        $region90: #{tpu_custom_call.1} parent=79 // pred_check_branch
          %569 = sbr.rel (%p567) target = $region92
        $region91: #{tpu_custom_call.1} parent=79 // pred_region
          %v570 = vld [vmem:[%s503] sm:$0xff]
          %vm571 = vcmask 261120
          %v572 = vsel %vm571, %v570, 0.0
          %573 = vadd.xlane.f32.xlu0 %v572
          %v574 = vpop.xlane.xlu0 %573
          %v575 = vrcp.pop 32.0
          %v576 = vmul.f32 %v574, %v575
          %v577 = vsub.f32 %v570, %v576
          %v578 = vmul.f32 %v577, %v577
          %v579 = vsel %vm571, %v578, 0.0
          %580 = vadd.xlane.f32.xlu0 %v579
          %v581 = vpop.xlane.xlu0 %580
          %v582 = vmul.f32 %v581, %v575
          %v583 = vadd.f32 %v582, 1e-05
          %v584 = vrsqrt.pop %v583
          %v585 = vmul.f32 %v577, %v584
          %v587 = vlaneseq
          %v588 = vshrl.u32 %v587, 7
          %v589 = vsub.s32 0, %v588
          %v590 = vrot.slane %v564, %v589
          %v592 = vmul.f32 %v585, %v590
          %v594 = vlaneseq
          %v595 = vshrl.u32 %v594, 7
          %v596 = vsub.s32 0, %v595
          %v597 = vrot.slane %v565, %v596
          %v599 = vadd.f32 %v592, %v597
          %v600 = vld [vmem:[%s3] sm:$0xff]
          %v601 = vld [vmem:[%s3 + $0x8] sm:$0xff]
          %v602 = vld [vmem:[%s3 + $0x10] sm:$0xff]
          %v603 = vld [vmem:[%s3 + $0x18] sm:$0xff]
          %v605 = vsel %vm571, %v599, 0
          %607 = vmatprep.subr.mxu0 0.0
          %608 = vmatpush1.msra.mxu0 %v600
          %609 = vmatprep.subr.mxu0 0.0
          %610 = vmatpush1.msra.mxu0 %v601
          %611 = vmatprep.subr.mxu0 0.0
          %612 = vmatpush1.msra.mxu0 %v602
          %613 = vmatprep.subr.mxu0 0.0
          %614 = vmatpush1.msra.mxu0 %v603
          %615 = vmatprep.subr.mxu0 0.0
          %616 = vmatpush1.msra.mxu0 0.0
          %617 = vmatprep.subr.mxu0 0.0
          %618 = vmatpush1.msra.mxu0 0.0
          %619 = vmatprep.subr.mxu0 0.0
          %620 = vmatpush1.msra.mxu0 0.0
          %621 = vmatprep.subr.mxu0 0.0
          %622 = vmatpush1.msra.mxu0 0.0
          %623 = vmatprep.subr.mxu0 0.0
          %624 = vmatpush1.msra.mxu0 0.0
          %625 = vmatprep.subr.mxu0 0.0
          %626 = vmatpush1.msra.mxu0 0.0
          %627 = vmatprep.subr.mxu0 0.0
          %628 = vmatpush1.msra.mxu0 0.0
          %629 = vmatprep.subr.mxu0 0.0
          %630 = vmatpush1.msra.mxu0 0.0
          %631 = vmatprep.subr.mxu0 0.0
          %632 = vmatpush1.msra.mxu0 0.0
          %633 = vmatprep.subr.mxu0 0.0
          %634 = vmatpush1.msra.mxu0 0.0
          %635 = vmatprep.subr.mxu0 0.0
          %636 = vmatpush1.msra.mxu0 0.0
          %637 = vmatprep.subr.mxu0 0.0
          %638 = vmatpush1.msra.mxu0 0.0
          %639 = vmatprep.subr.mxu0 0.0
          %640 = vmatpush1.msra.mxu0 0.0
          %641 = vmatprep.subr.mxu0 0.0
          %642 = vmatpush1.msra.mxu0 0.0
          %643 = vmatprep.subr.mxu0 0.0
          %644 = vmatpush1.msra.mxu0 0.0
          %645 = vmatprep.subr.mxu0 0.0
          %646 = vmatpush1.msra.mxu0 0.0
          %647 = vmatprep.subr.mxu0 0.0
          %648 = vmatpush1.msra.mxu0 0.0
          %649 = vmatprep.subr.mxu0 0.0
          %650 = vmatpush1.msra.mxu0 0.0
          %651 = vmatprep.subr.mxu0 0.0
          %652 = vmatpush1.msra.mxu0 0.0
          %653 = vmatprep.subr.mxu0 0.0
          %654 = vmatpush1.msra.mxu0 0.0
          %655 = vmatprep.subr.mxu0 0.0
          %656 = vmatpush1.msra.mxu0 0.0
          %657 = vmatprep.subr.mxu0 0.0
          %658 = vmatpush1.msra.mxu0 0.0
          %659 = vmatprep.subr.mxu0 0.0
          %660 = vmatpush1.msra.mxu0 0.0
          %661 = vmatprep.subr.mxu0 0.0
          %662 = vmatpush1.msra.mxu0 0.0
          %663 = vmatprep.subr.mxu0 0.0
          %664 = vmatpush1.msra.mxu0 0.0
          %665 = vmatprep.subr.mxu0 0.0
          %666 = vmatpush1.msra.mxu0 0.0
          %667 = vmatprep.subr.mxu0 0.0
          %668 = vmatpush1.msra.mxu0 0.0
          %669 = vmatprep.subr.mxu0 0.0
          %670 = vmatpush1.msra.mxu0 0.0
          %671 = vmatprep.mubr.f32.mxu0 0.0
          %672 = vmatmul.mubr.f32.gmra.mrb[0].mxu0 %v605
          %v673 = vpop.f32.mrb[0].mxu0
          %v674 = vadd.f32 0.0, %v673
          %v675 = vpop.f32.mrb[0].mxu0
          %676 = vdwg.mxu0
          %v677 = vld [vmem:[%s4] sm:$0xff]
          %v678 = vld [vmem:[%s4 + $0x8] sm:$0xff]
          %v679 = vld [vmem:[%s4 + $0x10] sm:$0xff]
          %v680 = vld [vmem:[%s4 + $0x18] sm:$0xff]
          %681 = vmatprep.subr.mxu0 0.0
          %682 = vmatpush1.msra.mxu0 %v677
          %683 = vmatprep.subr.mxu0 0.0
          %684 = vmatpush1.msra.mxu0 %v678
          %685 = vmatprep.subr.mxu0 0.0
          %686 = vmatpush1.msra.mxu0 %v679
          %687 = vmatprep.subr.mxu0 0.0
          %688 = vmatpush1.msra.mxu0 %v680
          %689 = vmatprep.subr.mxu0 0.0
          %690 = vmatpush1.msra.mxu0 0.0
          %691 = vmatprep.subr.mxu0 0.0
          %692 = vmatpush1.msra.mxu0 0.0
          %693 = vmatprep.subr.mxu0 0.0
          %694 = vmatpush1.msra.mxu0 0.0
          %695 = vmatprep.subr.mxu0 0.0
          %696 = vmatpush1.msra.mxu0 0.0
          %697 = vmatprep.subr.mxu0 0.0
          %698 = vmatpush1.msra.mxu0 0.0
          %699 = vmatprep.subr.mxu0 0.0
          %700 = vmatpush1.msra.mxu0 0.0
          %701 = vmatprep.subr.mxu0 0.0
          %702 = vmatpush1.msra.mxu0 0.0
          %703 = vmatprep.subr.mxu0 0.0
          %704 = vmatpush1.msra.mxu0 0.0
          %705 = vmatprep.subr.mxu0 0.0
          %706 = vmatpush1.msra.mxu0 0.0
          %707 = vmatprep.subr.mxu0 0.0
          %708 = vmatpush1.msra.mxu0 0.0
          %709 = vmatprep.subr.mxu0 0.0
          %710 = vmatpush1.msra.mxu0 0.0
          %711 = vmatprep.subr.mxu0 0.0
          %712 = vmatpush1.msra.mxu0 0.0
          %713 = vmatprep.subr.mxu0 0.0
          %714 = vmatpush1.msra.mxu0 0.0
          %715 = vmatprep.subr.mxu0 0.0
          %716 = vmatpush1.msra.mxu0 0.0
          %717 = vmatprep.subr.mxu0 0.0
          %718 = vmatpush1.msra.mxu0 0.0
          %719 = vmatprep.subr.mxu0 0.0
          %720 = vmatpush1.msra.mxu0 0.0
          %721 = vmatprep.subr.mxu0 0.0
          %722 = vmatpush1.msra.mxu0 0.0
          %723 = vmatprep.subr.mxu0 0.0
          %724 = vmatpush1.msra.mxu0 0.0
          %725 = vmatprep.subr.mxu0 0.0
          %726 = vmatpush1.msra.mxu0 0.0
          %727 = vmatprep.subr.mxu0 0.0
          %728 = vmatpush1.msra.mxu0 0.0
          %729 = vmatprep.subr.mxu0 0.0
          %730 = vmatpush1.msra.mxu0 0.0
          %731 = vmatprep.subr.mxu0 0.0
          %732 = vmatpush1.msra.mxu0 0.0
          %733 = vmatprep.subr.mxu0 0.0
          %734 = vmatpush1.msra.mxu0 0.0
          %735 = vmatprep.subr.mxu0 0.0
          %736 = vmatpush1.msra.mxu0 0.0
          %737 = vmatprep.subr.mxu0 0.0
          %738 = vmatpush1.msra.mxu0 0.0
          %739 = vmatprep.subr.mxu0 0.0
          %740 = vmatpush1.msra.mxu0 0.0
          %741 = vmatprep.subr.mxu0 0.0
          %742 = vmatpush1.msra.mxu0 0.0
          %743 = vmatprep.subr.mxu0 0.0
          %744 = vmatpush1.msra.mxu0 0.0
          %745 = vmatprep.mubr.f32.mxu0 0.0
          %746 = vmatmul.mubr.f32.gmra.mrb[0].mxu0 %v605
          %v747 = vpop.f32.mrb[0].mxu0
          %v748 = vadd.f32 0.0, %v747
          %v749 = vpop.f32.mrb[0].mxu0
          %750 = vdwg.mxu0
          %752 = vrot.lane.b32.xlu0 %v674, 120
          %v753 = vpop.permute.xlu0 %752
          %755 = vrot.lane.b32.xlu0 %v674, 112
          %v756 = vpop.permute.xlu0 %755
          %758 = vrot.lane.b32.xlu0 %v674, 104
          %v759 = vpop.permute.xlu0 %758
          %v761 = vcombine.low %v674, %v756
          %v762 = vcombine.high %v674, %v756
          %v764 = vunpack.c.l.s4 1983009808
          %v765 = vunpack.c.0.s8 %v764
          %v766 = vlaneseq
          %v767 = vshrl.u32 %v766, 7
          %v768 = vsub.s32 %v765, %v767
          %v769 = vrot.slane %v761, %v768
          %v771 = vunpack.c.l.s4 1983009808
          %v772 = vunpack.c.0.s8 %v771
          %v773 = vlaneseq
          %v774 = vshrl.u32 %v773, 7
          %v775 = vsub.s32 %v772, %v774
          %v776 = vrot.slane %v762, %v775
          %v777 = vcombine.low %v753, %v759
          %v778 = vcombine.high %v753, %v759
          %v780 = vunpack.c.l.s4 1983009808
          %v781 = vunpack.c.0.s8 %v780
          %v782 = vlaneseq
          %v783 = vshrl.u32 %v782, 7
          %v784 = vsub.s32 %v781, %v783
          %v785 = vrot.slane %v777, %v784
          %v787 = vunpack.c.l.s4 1983009808
          %v788 = vunpack.c.0.s8 %v787
          %v789 = vlaneseq
          %v790 = vshrl.u32 %v789, 7
          %v791 = vsub.s32 %v788, %v790
          %v792 = vrot.slane %v778, %v791
          %v793 = vcombine.low %v769, %v785
          %v794 = vcombine.high %v769, %v785
          %v796 = vunpack.c.l.s4 1934713408
          %v797 = vunpack.c.0.s8 %v796
          %v798 = vlaneseq
          %v799 = vshrl.u32 %v798, 7
          %v800 = vsub.s32 %v797, %v799
          %v801 = vrot.slane %v793, %v800
          %v803 = vunpack.c.l.s4 1934713408
          %v804 = vunpack.c.0.s8 %v803
          %v805 = vlaneseq
          %v806 = vshrl.u32 %v805, 7
          %v807 = vsub.s32 %v804, %v806
          %v808 = vrot.slane %v794, %v807
          %v809 = vcombine.low %v776, %v792
          %v810 = vcombine.high %v776, %v792
          %v812 = vunpack.c.l.s4 1934713408
          %v813 = vunpack.c.0.s8 %v812
          %v814 = vlaneseq
          %v815 = vshrl.u32 %v814, 7
          %v816 = vsub.s32 %v813, %v815
          %v817 = vrot.slane %v809, %v816
          %v819 = vunpack.c.l.s4 1934713408
          %v820 = vunpack.c.0.s8 %v819
          %v821 = vlaneseq
          %v822 = vshrl.u32 %v821, 7
          %v823 = vsub.s32 %v820, %v822
          %v824 = vrot.slane %v810, %v823
          %v825 = vcombine.high %v801, 0.0
          %v826 = vcombine.high %v808, 0.0
          %v827 = vcombine.high %v817, 0.0
          %v828 = vcombine.high %v824, 0.0
          %v829 = vcombine.low %v801, %v808
          %v831 = vunpack.c.l.s4 1983009808
          %v832 = vunpack.c.0.s8 %v831
          %v833 = vlaneseq
          %v834 = vshrl.u32 %v833, 7
          %v835 = vsub.s32 %v832, %v834
          %v836 = vrot.slane %v829, %v835
          %v837 = vcombine.low %v825, %v826
          %v839 = vunpack.c.l.s4 1983009808
          %v840 = vunpack.c.0.s8 %v839
          %v841 = vlaneseq
          %v842 = vshrl.u32 %v841, 7
          %v843 = vsub.s32 %v840, %v842
          %v844 = vrot.slane %v837, %v843
          %v845 = vcombine.low %v817, %v824
          %v847 = vunpack.c.l.s4 1983009808
          %v848 = vunpack.c.0.s8 %v847
          %v849 = vlaneseq
          %v850 = vshrl.u32 %v849, 7
          %v851 = vsub.s32 %v848, %v850
          %v852 = vrot.slane %v845, %v851
          %v853 = vcombine.low %v827, %v828
          %v855 = vunpack.c.l.s4 1983009808
          %v856 = vunpack.c.0.s8 %v855
          %v857 = vlaneseq
          %v858 = vshrl.u32 %v857, 7
          %v859 = vsub.s32 %v856, %v858
          %v860 = vrot.slane %v853, %v859
          %v861 = vcombine.low %v836, %v844
          %v862 = vcombine.high %v836, %v844
          %v864 = vunpack.c.l.s4 1934713408
          %v865 = vunpack.c.0.s8 %v864
          %v866 = vlaneseq
          %v867 = vshrl.u32 %v866, 7
          %v868 = vsub.s32 %v865, %v867
          %v869 = vrot.slane %v861, %v868
          %v871 = vunpack.c.l.s4 1934713408
          %v872 = vunpack.c.0.s8 %v871
          %v873 = vlaneseq
          %v874 = vshrl.u32 %v873, 7
          %v875 = vsub.s32 %v872, %v874
          %v876 = vrot.slane %v862, %v875
          %v877 = vcombine.low %v852, %v860
          %v878 = vcombine.high %v852, %v860
          %v880 = vunpack.c.l.s4 1934713408
          %v881 = vunpack.c.0.s8 %v880
          %v882 = vlaneseq
          %v883 = vshrl.u32 %v882, 7
          %v884 = vsub.s32 %v881, %v883
          %v885 = vrot.slane %v877, %v884
          %v887 = vunpack.c.l.s4 1934713408
          %v888 = vunpack.c.0.s8 %v887
          %v889 = vlaneseq
          %v890 = vshrl.u32 %v889, 7
          %v891 = vsub.s32 %v888, %v890
          %v892 = vrot.slane %v878, %v891
          %v893 = vcombine.low %v869, %v885
          %v894 = vcombine.high %v869, %v885
          %v895 = vcombine.low %v876, %v892
          %v896 = vcombine.high %v876, %v892
          %vm897 = vcmask 64512
          %898 = vst.msk [vmem:[#allocation2] sm:$0xff] %vm897, %v893
          %899 = vst.msk [vmem:[#allocation2 + $0x8] sm:$0xff] %vm897, %v894
          %900 = vst.msk [vmem:[#allocation2 + $0x10] sm:$0xff] %vm897, %v895
          %901 = vst.msk [vmem:[#allocation2 + $0x18] sm:$0xff] %vm897, %v896
          %903 = vrot.lane.b32.xlu0 %v748, 120
          %v904 = vpop.permute.xlu0 %903
          %906 = vrot.lane.b32.xlu0 %v748, 112
          %v907 = vpop.permute.xlu0 %906
          %909 = vrot.lane.b32.xlu0 %v748, 104
          %v910 = vpop.permute.xlu0 %909
          %v912 = vcombine.low %v748, %v907
          %v913 = vcombine.high %v748, %v907
          %v915 = vunpack.c.l.s4 1983009808
          %v916 = vunpack.c.0.s8 %v915
          %v917 = vlaneseq
          %v918 = vshrl.u32 %v917, 7
          %v919 = vsub.s32 %v916, %v918
          %v920 = vrot.slane %v912, %v919
          %v922 = vunpack.c.l.s4 1983009808
          %v923 = vunpack.c.0.s8 %v922
          %v924 = vlaneseq
          %v925 = vshrl.u32 %v924, 7
          %v926 = vsub.s32 %v923, %v925
          %v927 = vrot.slane %v913, %v926
          %v928 = vcombine.low %v904, %v910
          %v929 = vcombine.high %v904, %v910
          %v931 = vunpack.c.l.s4 1983009808
          %v932 = vunpack.c.0.s8 %v931
          %v933 = vlaneseq
          %v934 = vshrl.u32 %v933, 7
          %v935 = vsub.s32 %v932, %v934
          %v936 = vrot.slane %v928, %v935
          %v938 = vunpack.c.l.s4 1983009808
          %v939 = vunpack.c.0.s8 %v938
          %v940 = vlaneseq
          %v941 = vshrl.u32 %v940, 7
          %v942 = vsub.s32 %v939, %v941
          %v943 = vrot.slane %v929, %v942
          %v944 = vcombine.low %v920, %v936
          %v945 = vcombine.high %v920, %v936
          %v947 = vunpack.c.l.s4 1934713408
          %v948 = vunpack.c.0.s8 %v947
          %v949 = vlaneseq
          %v950 = vshrl.u32 %v949, 7
          %v951 = vsub.s32 %v948, %v950
          %v952 = vrot.slane %v944, %v951
          %v954 = vunpack.c.l.s4 1934713408
          %v955 = vunpack.c.0.s8 %v954
          %v956 = vlaneseq
          %v957 = vshrl.u32 %v956, 7
          %v958 = vsub.s32 %v955, %v957
          %v959 = vrot.slane %v945, %v958
          %v960 = vcombine.low %v927, %v943
          %v961 = vcombine.high %v927, %v943
          %v963 = vunpack.c.l.s4 1934713408
          %v964 = vunpack.c.0.s8 %v963
          %v965 = vlaneseq
          %v966 = vshrl.u32 %v965, 7
          %v967 = vsub.s32 %v964, %v966
          %v968 = vrot.slane %v960, %v967
          %v970 = vunpack.c.l.s4 1934713408
          %v971 = vunpack.c.0.s8 %v970
          %v972 = vlaneseq
          %v973 = vshrl.u32 %v972, 7
          %v974 = vsub.s32 %v971, %v973
          %v975 = vrot.slane %v961, %v974
          %v976 = vcombine.high %v952, 0.0
          %v977 = vcombine.high %v959, 0.0
          %v978 = vcombine.high %v968, 0.0
          %v979 = vcombine.high %v975, 0.0
          %v980 = vcombine.low %v952, %v959
          %v982 = vunpack.c.l.s4 1983009808
          %v983 = vunpack.c.0.s8 %v982
          %v984 = vlaneseq
          %v985 = vshrl.u32 %v984, 7
          %v986 = vsub.s32 %v983, %v985
          %v987 = vrot.slane %v980, %v986
          %v988 = vcombine.low %v976, %v977
          %v990 = vunpack.c.l.s4 1983009808
          %v991 = vunpack.c.0.s8 %v990
          %v992 = vlaneseq
          %v993 = vshrl.u32 %v992, 7
          %v994 = vsub.s32 %v991, %v993
          %v995 = vrot.slane %v988, %v994
          %v996 = vcombine.low %v968, %v975
          %v998 = vunpack.c.l.s4 1983009808
          %v999 = vunpack.c.0.s8 %v998
          %v1000 = vlaneseq
          %v1001 = vshrl.u32 %v1000, 7
          %v1002 = vsub.s32 %v999, %v1001
          %v1003 = vrot.slane %v996, %v1002
          %v1004 = vcombine.low %v978, %v979
          %v1006 = vunpack.c.l.s4 1983009808
          %v1007 = vunpack.c.0.s8 %v1006
          %v1008 = vlaneseq
          %v1009 = vshrl.u32 %v1008, 7
          %v1010 = vsub.s32 %v1007, %v1009
          %v1011 = vrot.slane %v1004, %v1010
          %v1012 = vcombine.low %v987, %v995
          %v1013 = vcombine.high %v987, %v995
          %v1015 = vunpack.c.l.s4 1934713408
          %v1016 = vunpack.c.0.s8 %v1015
          %v1017 = vlaneseq
          %v1018 = vshrl.u32 %v1017, 7
          %v1019 = vsub.s32 %v1016, %v1018
          %v1020 = vrot.slane %v1012, %v1019
          %v1022 = vunpack.c.l.s4 1934713408
          %v1023 = vunpack.c.0.s8 %v1022
          %v1024 = vlaneseq
          %v1025 = vshrl.u32 %v1024, 7
          %v1026 = vsub.s32 %v1023, %v1025
          %v1027 = vrot.slane %v1013, %v1026
          %v1028 = vcombine.low %v1003, %v1011
          %v1029 = vcombine.high %v1003, %v1011
          %v1031 = vunpack.c.l.s4 1934713408
          %v1032 = vunpack.c.0.s8 %v1031
          %v1033 = vlaneseq
          %v1034 = vshrl.u32 %v1033, 7
          %v1035 = vsub.s32 %v1032, %v1034
          %v1036 = vrot.slane %v1028, %v1035
          %v1038 = vunpack.c.l.s4 1934713408
          %v1039 = vunpack.c.0.s8 %v1038
          %v1040 = vlaneseq
          %v1041 = vshrl.u32 %v1040, 7
          %v1042 = vsub.s32 %v1039, %v1041
          %v1043 = vrot.slane %v1029, %v1042
          %v1044 = vcombine.low %v1020, %v1036
          %v1045 = vcombine.high %v1020, %v1036
          %v1046 = vcombine.low %v1027, %v1043
          %v1047 = vcombine.high %v1027, %v1043
          %1048 = vst.msk [vmem:[#allocation3] sm:$0xff] %vm897, %v1044
          %1049 = vst.msk [vmem:[#allocation3 + $0x8] sm:$0xff] %vm897, %v1045
          %1050 = vst.msk [vmem:[#allocation3 + $0x10] sm:$0xff] %vm897, %v1046
          %1051 = vst.msk [vmem:[#allocation3 + $0x18] sm:$0xff] %vm897, %v1047
        $region92: #{tpu_custom_call.1} parent=79 // pred_fallthru
          _
        %v1052 = vld [vmem:[%s512] sm:$0xff]
        %vm1053 = vcmask 261120
        %v1054 = vsel %vm1053, %v1052, 0.0
        %1055 = vadd.xlane.f32.xlu0 %v1054
        %v1056 = vpop.xlane.xlu0 %1055
        %v1057 = vrcp.pop 32.0
        %v1058 = vmul.f32 %v1056, %v1057
        %v1059 = vsub.f32 %v1052, %v1058
        %v1060 = vmul.f32 %v1059, %v1059
        %v1061 = vsel %vm1053, %v1060, 0.0
        %1062 = vadd.xlane.f32.xlu0 %v1061
        %v1063 = vpop.xlane.xlu0 %1062
        %v1064 = vmul.f32 %v1063, %v1057
        %v1065 = vadd.f32 %v1064, 1e-05
        %v1066 = vrsqrt.pop %v1065
        %v1067 = vmul.f32 %v1059, %v1066
        %v1069 = vlaneseq
        %v1070 = vshrl.u32 %v1069, 7
        %v1071 = vsub.s32 0, %v1070
        %v1072 = vrot.slane %v564, %v1071
        %v1074 = vmul.f32 %v1067, %v1072
        %v1076 = vlaneseq
        %v1077 = vshrl.u32 %v1076, 7
        %v1078 = vsub.s32 0, %v1077
        %v1079 = vrot.slane %v565, %v1078
        %v1081 = vadd.f32 %v1074, %v1079
        %v1082 = vld [vmem:[%s2] sm:$0xff]
        %v1083 = vld [vmem:[%s2 + $0x8] sm:$0xff]
        %v1084 = vld [vmem:[%s2 + $0x10] sm:$0xff]
        %v1085 = vld [vmem:[%s2 + $0x18] sm:$0xff]
        %v1087 = vsel %vm1053, %v1081, 0
        %1089 = vmatprep.subr.mxu0 0.0
        %1090 = vmatpush1.msra.mxu0 %v1082
        %1091 = vmatprep.subr.mxu0 0.0
        %1092 = vmatpush1.msra.mxu0 %v1083
        %1093 = vmatprep.subr.mxu0 0.0
        %1094 = vmatpush1.msra.mxu0 %v1084
        %1095 = vmatprep.subr.mxu0 0.0
        %1096 = vmatpush1.msra.mxu0 %v1085
        %1097 = vmatprep.subr.mxu0 0.0
        %1098 = vmatpush1.msra.mxu0 0.0
        %1099 = vmatprep.subr.mxu0 0.0
        %1100 = vmatpush1.msra.mxu0 0.0
        %1101 = vmatprep.subr.mxu0 0.0
        %1102 = vmatpush1.msra.mxu0 0.0
        %1103 = vmatprep.subr.mxu0 0.0
        %1104 = vmatpush1.msra.mxu0 0.0
        %1105 = vmatprep.subr.mxu0 0.0
        %1106 = vmatpush1.msra.mxu0 0.0
        %1107 = vmatprep.subr.mxu0 0.0
        %1108 = vmatpush1.msra.mxu0 0.0
        %1109 = vmatprep.subr.mxu0 0.0
        %1110 = vmatpush1.msra.mxu0 0.0
        %1111 = vmatprep.subr.mxu0 0.0
        %1112 = vmatpush1.msra.mxu0 0.0
        %1113 = vmatprep.subr.mxu0 0.0
        %1114 = vmatpush1.msra.mxu0 0.0
        %1115 = vmatprep.subr.mxu0 0.0
        %1116 = vmatpush1.msra.mxu0 0.0
        %1117 = vmatprep.subr.mxu0 0.0
        %1118 = vmatpush1.msra.mxu0 0.0
        %1119 = vmatprep.subr.mxu0 0.0
        %1120 = vmatpush1.msra.mxu0 0.0
        %1121 = vmatprep.subr.mxu0 0.0
        %1122 = vmatpush1.msra.mxu0 0.0
        %1123 = vmatprep.subr.mxu0 0.0
        %1124 = vmatpush1.msra.mxu0 0.0
        %1125 = vmatprep.subr.mxu0 0.0
        %1126 = vmatpush1.msra.mxu0 0.0
        %1127 = vmatprep.subr.mxu0 0.0
        %1128 = vmatpush1.msra.mxu0 0.0
        %1129 = vmatprep.subr.mxu0 0.0
        %1130 = vmatpush1.msra.mxu0 0.0
        %1131 = vmatprep.subr.mxu0 0.0
        %1132 = vmatpush1.msra.mxu0 0.0
        %1133 = vmatprep.subr.mxu0 0.0
        %1134 = vmatpush1.msra.mxu0 0.0
        %1135 = vmatprep.subr.mxu0 0.0
        %1136 = vmatpush1.msra.mxu0 0.0
        %1137 = vmatprep.subr.mxu0 0.0
        %1138 = vmatpush1.msra.mxu0 0.0
        %1139 = vmatprep.subr.mxu0 0.0
        %1140 = vmatpush1.msra.mxu0 0.0
        %1141 = vmatprep.subr.mxu0 0.0
        %1142 = vmatpush1.msra.mxu0 0.0
        %1143 = vmatprep.subr.mxu0 0.0
        %1144 = vmatpush1.msra.mxu0 0.0
        %1145 = vmatprep.subr.mxu0 0.0
        %1146 = vmatpush1.msra.mxu0 0.0
        %1147 = vmatprep.subr.mxu0 0.0
        %1148 = vmatpush1.msra.mxu0 0.0
        %1149 = vmatprep.subr.mxu0 0.0
        %1150 = vmatpush1.msra.mxu0 0.0
        %1151 = vmatprep.subr.mxu0 0.0
        %1152 = vmatpush1.msra.mxu0 0.0
        %1153 = vmatprep.mubr.f32.mxu0 0.0
        %1154 = vmatmul.mubr.f32.gmra.mrb[0].mxu0 %v1087
        %v1155 = vpop.f32.mrb[0].mxu0
        %v1156 = vadd.f32 0.0, %v1155
        %v1157 = vpop.f32.mrb[0].mxu0
        %1158 = vdwg.mxu0
        %1160 = vrot.lane.b32.xlu0 %v1156, 120
        %v1161 = vpop.permute.xlu0 %1160
        %1163 = vrot.lane.b32.xlu0 %v1156, 112
        %v1164 = vpop.permute.xlu0 %1163
        %1166 = vrot.lane.b32.xlu0 %v1156, 104
        %v1167 = vpop.permute.xlu0 %1166
        %v1169 = vcombine.low %v1156, %v1164
        %v1170 = vcombine.high %v1156, %v1164
        %v1172 = vunpack.c.l.s4 1983009808
        %v1173 = vunpack.c.0.s8 %v1172
        %v1174 = vlaneseq
        %v1175 = vshrl.u32 %v1174, 7
        %v1176 = vsub.s32 %v1173, %v1175
        %v1177 = vrot.slane %v1169, %v1176
        %v1179 = vunpack.c.l.s4 1983009808
        %v1180 = vunpack.c.0.s8 %v1179
        %v1181 = vlaneseq
        %v1182 = vshrl.u32 %v1181, 7
        %v1183 = vsub.s32 %v1180, %v1182
        %v1184 = vrot.slane %v1170, %v1183
        %v1185 = vcombine.low %v1161, %v1167
        %v1186 = vcombine.high %v1161, %v1167
        %v1188 = vunpack.c.l.s4 1983009808
        %v1189 = vunpack.c.0.s8 %v1188
        %v1190 = vlaneseq
        %v1191 = vshrl.u32 %v1190, 7
        %v1192 = vsub.s32 %v1189, %v1191
        %v1193 = vrot.slane %v1185, %v1192
        %v1195 = vunpack.c.l.s4 1983009808
        %v1196 = vunpack.c.0.s8 %v1195
        %v1197 = vlaneseq
        %v1198 = vshrl.u32 %v1197, 7
        %v1199 = vsub.s32 %v1196, %v1198
        %v1200 = vrot.slane %v1186, %v1199
        %v1201 = vcombine.low %v1177, %v1193
        %v1202 = vcombine.high %v1177, %v1193
        %v1204 = vunpack.c.l.s4 1934713408
        %v1205 = vunpack.c.0.s8 %v1204
        %v1206 = vlaneseq
        %v1207 = vshrl.u32 %v1206, 7
        %v1208 = vsub.s32 %v1205, %v1207
        %v1209 = vrot.slane %v1201, %v1208
        %v1211 = vunpack.c.l.s4 1934713408
        %v1212 = vunpack.c.0.s8 %v1211
        %v1213 = vlaneseq
        %v1214 = vshrl.u32 %v1213, 7
        %v1215 = vsub.s32 %v1212, %v1214
        %v1216 = vrot.slane %v1202, %v1215
        %v1217 = vcombine.low %v1184, %v1200
        %v1218 = vcombine.high %v1184, %v1200
        %v1220 = vunpack.c.l.s4 1934713408
        %v1221 = vunpack.c.0.s8 %v1220
        %v1222 = vlaneseq
        %v1223 = vshrl.u32 %v1222, 7
        %v1224 = vsub.s32 %v1221, %v1223
        %v1225 = vrot.slane %v1217, %v1224
        %v1227 = vunpack.c.l.s4 1934713408
        %v1228 = vunpack.c.0.s8 %v1227
        %v1229 = vlaneseq
        %v1230 = vshrl.u32 %v1229, 7
        %v1231 = vsub.s32 %v1228, %v1230
        %v1232 = vrot.slane %v1218, %v1231
        %v1233 = vcombine.high %v1209, 0.0
        %v1234 = vcombine.high %v1216, 0.0
        %v1235 = vcombine.high %v1225, 0.0
        %v1236 = vcombine.high %v1232, 0.0
        %v1237 = vcombine.low %v1209, %v1216
        %v1239 = vunpack.c.l.s4 1983009808
        %v1240 = vunpack.c.0.s8 %v1239
        %v1241 = vlaneseq
        %v1242 = vshrl.u32 %v1241, 7
        %v1243 = vsub.s32 %v1240, %v1242
        %v1244 = vrot.slane %v1237, %v1243
        %v1245 = vcombine.low %v1233, %v1234
        %v1247 = vunpack.c.l.s4 1983009808
        %v1248 = vunpack.c.0.s8 %v1247
        %v1249 = vlaneseq
        %v1250 = vshrl.u32 %v1249, 7
        %v1251 = vsub.s32 %v1248, %v1250
        %v1252 = vrot.slane %v1245, %v1251
        %v1253 = vcombine.low %v1225, %v1232
        %v1255 = vunpack.c.l.s4 1983009808
        %v1256 = vunpack.c.0.s8 %v1255
        %v1257 = vlaneseq
        %v1258 = vshrl.u32 %v1257, 7
        %v1259 = vsub.s32 %v1256, %v1258
        %v1260 = vrot.slane %v1253, %v1259
        %v1261 = vcombine.low %v1235, %v1236
        %v1263 = vunpack.c.l.s4 1983009808
        %v1264 = vunpack.c.0.s8 %v1263
        %v1265 = vlaneseq
        %v1266 = vshrl.u32 %v1265, 7
        %v1267 = vsub.s32 %v1264, %v1266
        %v1268 = vrot.slane %v1261, %v1267
        %v1269 = vcombine.low %v1244, %v1252
        %v1270 = vcombine.high %v1244, %v1252
        %v1272 = vunpack.c.l.s4 1934713408
        %v1273 = vunpack.c.0.s8 %v1272
        %v1274 = vlaneseq
        %v1275 = vshrl.u32 %v1274, 7
        %v1276 = vsub.s32 %v1273, %v1275
        %v1277 = vrot.slane %v1269, %v1276
        %v1279 = vunpack.c.l.s4 1934713408
        %v1280 = vunpack.c.0.s8 %v1279
        %v1281 = vlaneseq
        %v1282 = vshrl.u32 %v1281, 7
        %v1283 = vsub.s32 %v1280, %v1282
        %v1284 = vrot.slane %v1270, %v1283
        %v1285 = vcombine.low %v1260, %v1268
        %v1286 = vcombine.high %v1260, %v1268
        %v1288 = vunpack.c.l.s4 1934713408
        %v1289 = vunpack.c.0.s8 %v1288
        %v1290 = vlaneseq
        %v1291 = vshrl.u32 %v1290, 7
        %v1292 = vsub.s32 %v1289, %v1291
        %v1293 = vrot.slane %v1285, %v1292
        %v1295 = vunpack.c.l.s4 1934713408
        %v1296 = vunpack.c.0.s8 %v1295
        %v1297 = vlaneseq
        %v1298 = vshrl.u32 %v1297, 7
        %v1299 = vsub.s32 %v1296, %v1298
        %v1300 = vrot.slane %v1286, %v1299
        %v1301 = vcombine.low %v1277, %v1293
        %v1302 = vcombine.high %v1277, %v1293
        %v1303 = vcombine.low %v1284, %v1300
        %v1304 = vcombine.high %v1284, %v1300
        %v1305 = vld [vmem:[#allocation2] sm:$0xff]
        %v1306 = vld [vmem:[#allocation2 + $0x8] sm:$0xff]
        %v1307 = vld [vmem:[#allocation2 + $0x10] sm:$0xff]
        %v1308 = vld [vmem:[#allocation2 + $0x18] sm:$0xff]
        %v1309 = vld [vmem:[#allocation3] sm:$0xff]
        %v1310 = vld [vmem:[#allocation3 + $0x8] sm:$0xff]
        %v1311 = vld [vmem:[#allocation3 + $0x10] sm:$0xff]
        %v1312 = vld [vmem:[#allocation3 + $0x18] sm:$0xff]
        %vm1313 = vcmask 64512
        %v1315 = vsel %vm1313, %v1301, 0
        %v1318 = vsel %vm1313, %v1305, 0
        %1320 = vmatprep.subr.mxu0 0.0
        %1321 = vmatpush1.xpose.msra.mxu0 %v1318
        %1322 = vmatprep.subr.mxu0 0.0
        %1323 = vmatpush1.xpose.msra.mxu0 0.0
        %1324 = vmatprep.subr.mxu0 0.0
        %1325 = vmatpush1.xpose.msra.mxu0 0.0
        %1326 = vmatprep.subr.mxu0 0.0
        %1327 = vmatpush1.xpose.msra.mxu0 0.0
        %1328 = vmatprep.subr.mxu0 0.0
        %1329 = vmatpush1.xpose.msra.mxu0 0.0
        %1330 = vmatprep.subr.mxu0 0.0
        %1331 = vmatpush1.xpose.msra.mxu0 0.0
        %1332 = vmatprep.subr.mxu0 0.0
        %1333 = vmatpush1.xpose.msra.mxu0 0.0
        %1334 = vmatprep.subr.mxu0 0.0
        %1335 = vmatpush1.xpose.msra.mxu0 0.0
        %1336 = vmatprep.subr.mxu0 0.0
        %1337 = vmatpush1.xpose.msra.mxu0 0.0
        %1338 = vmatprep.subr.mxu0 0.0
        %1339 = vmatpush1.xpose.msra.mxu0 0.0
        %1340 = vmatprep.subr.mxu0 0.0
        %1341 = vmatpush1.xpose.msra.mxu0 0.0
        %1342 = vmatprep.subr.mxu0 0.0
        %1343 = vmatpush1.xpose.msra.mxu0 0.0
        %1344 = vmatprep.subr.mxu0 0.0
        %1345 = vmatpush1.xpose.msra.mxu0 0.0
        %1346 = vmatprep.subr.mxu0 0.0
        %1347 = vmatpush1.xpose.msra.mxu0 0.0
        %1348 = vmatprep.subr.mxu0 0.0
        %1349 = vmatpush1.xpose.msra.mxu0 0.0
        %1350 = vmatprep.subr.mxu0 0.0
        %1351 = vmatpush1.xpose.msra.mxu0 0.0
        %1352 = vmatprep.subr.mxu0 0.0
        %1353 = vmatpush1.xpose.msra.mxu0 0.0
        %1354 = vmatprep.subr.mxu0 0.0
        %1355 = vmatpush1.xpose.msra.mxu0 0.0
        %1356 = vmatprep.subr.mxu0 0.0
        %1357 = vmatpush1.xpose.msra.mxu0 0.0
        %1358 = vmatprep.subr.mxu0 0.0
        %1359 = vmatpush1.xpose.msra.mxu0 0.0
        %1360 = vmatprep.subr.mxu0 0.0
        %1361 = vmatpush1.xpose.msra.mxu0 0.0
        %1362 = vmatprep.subr.mxu0 0.0
        %1363 = vmatpush1.xpose.msra.mxu0 0.0
        %1364 = vmatprep.subr.mxu0 0.0
        %1365 = vmatpush1.xpose.msra.mxu0 0.0
        %1366 = vmatprep.subr.mxu0 0.0
        %1367 = vmatpush1.xpose.msra.mxu0 0.0
        %1368 = vmatprep.subr.mxu0 0.0
        %1369 = vmatpush1.xpose.msra.mxu0 0.0
        %1370 = vmatprep.subr.mxu0 0.0
        %1371 = vmatpush1.xpose.msra.mxu0 0.0
        %1372 = vmatprep.subr.mxu0 0.0
        %1373 = vmatpush1.xpose.msra.mxu0 0.0
        %1374 = vmatprep.subr.mxu0 0.0
        %1375 = vmatpush1.xpose.msra.mxu0 0.0
        %1376 = vmatprep.subr.mxu0 0.0
        %1377 = vmatpush1.xpose.msra.mxu0 0.0
        %1378 = vmatprep.subr.mxu0 0.0
        %1379 = vmatpush1.xpose.msra.mxu0 0.0
        %1380 = vmatprep.subr.mxu0 0.0
        %1381 = vmatpush1.xpose.msra.mxu0 0.0
        %1382 = vmatprep.subr.mxu0 0.0
        %1383 = vmatpush1.xpose.msra.mxu0 0.0
        %1384 = vmatprep.mubr.f32.mxu0 0.0
        %1385 = vmatmul.mubr.f32.gmra.mrb[0].mxu0 %v1315
        %v1386 = vpop.f32.mrb[0].mxu0
        %v1387 = vadd.f32 0.0, %v1386
        %v1388 = vpop.f32.mrb[0].mxu0
        %1389 = vdwg.mxu0
        %v1391 = vsel %vm1313, %v1302, 0
        %v1394 = vsel %vm1313, %v1306, 0
        %1396 = vmatprep.subr.mxu0 0.0
        %1397 = vmatpush1.xpose.msra.mxu0 %v1394
        %1398 = vmatprep.subr.mxu0 0.0
        %1399 = vmatpush1.xpose.msra.mxu0 0.0
        %1400 = vmatprep.subr.mxu0 0.0
        %1401 = vmatpush1.xpose.msra.mxu0 0.0
        %1402 = vmatprep.subr.mxu0 0.0
        %1403 = vmatpush1.xpose.msra.mxu0 0.0
        %1404 = vmatprep.subr.mxu0 0.0
        %1405 = vmatpush1.xpose.msra.mxu0 0.0
        %1406 = vmatprep.subr.mxu0 0.0
        %1407 = vmatpush1.xpose.msra.mxu0 0.0
        %1408 = vmatprep.subr.mxu0 0.0
        %1409 = vmatpush1.xpose.msra.mxu0 0.0
        %1410 = vmatprep.subr.mxu0 0.0
        %1411 = vmatpush1.xpose.msra.mxu0 0.0
        %1412 = vmatprep.subr.mxu0 0.0
        %1413 = vmatpush1.xpose.msra.mxu0 0.0
        %1414 = vmatprep.subr.mxu0 0.0
        %1415 = vmatpush1.xpose.msra.mxu0 0.0
        %1416 = vmatprep.subr.mxu0 0.0
        %1417 = vmatpush1.xpose.msra.mxu0 0.0
        %1418 = vmatprep.subr.mxu0 0.0
        %1419 = vmatpush1.xpose.msra.mxu0 0.0
        %1420 = vmatprep.subr.mxu0 0.0
        %1421 = vmatpush1.xpose.msra.mxu0 0.0
        %1422 = vmatprep.subr.mxu0 0.0
        %1423 = vmatpush1.xpose.msra.mxu0 0.0
        %1424 = vmatprep.subr.mxu0 0.0
        %1425 = vmatpush1.xpose.msra.mxu0 0.0
        %1426 = vmatprep.subr.mxu0 0.0
        %1427 = vmatpush1.xpose.msra.mxu0 0.0
        %1428 = vmatprep.subr.mxu0 0.0
        %1429 = vmatpush1.xpose.msra.mxu0 0.0
        %1430 = vmatprep.subr.mxu0 0.0
        %1431 = vmatpush1.xpose.msra.mxu0 0.0
        %1432 = vmatprep.subr.mxu0 0.0
        %1433 = vmatpush1.xpose.msra.mxu0 0.0
        %1434 = vmatprep.subr.mxu0 0.0
        %1435 = vmatpush1.xpose.msra.mxu0 0.0
        %1436 = vmatprep.subr.mxu0 0.0
        %1437 = vmatpush1.xpose.msra.mxu0 0.0
        %1438 = vmatprep.subr.mxu0 0.0
        %1439 = vmatpush1.xpose.msra.mxu0 0.0
        %1440 = vmatprep.subr.mxu0 0.0
        %1441 = vmatpush1.xpose.msra.mxu0 0.0
        %1442 = vmatprep.subr.mxu0 0.0
        %1443 = vmatpush1.xpose.msra.mxu0 0.0
        %1444 = vmatprep.subr.mxu0 0.0
        %1445 = vmatpush1.xpose.msra.mxu0 0.0
        %1446 = vmatprep.subr.mxu0 0.0
        %1447 = vmatpush1.xpose.msra.mxu0 0.0
        %1448 = vmatprep.subr.mxu0 0.0
        %1449 = vmatpush1.xpose.msra.mxu0 0.0
        %1450 = vmatprep.subr.mxu0 0.0
        %1451 = vmatpush1.xpose.msra.mxu0 0.0
        %1452 = vmatprep.subr.mxu0 0.0
        %1453 = vmatpush1.xpose.msra.mxu0 0.0
        %1454 = vmatprep.subr.mxu0 0.0
        %1455 = vmatpush1.xpose.msra.mxu0 0.0
        %1456 = vmatprep.subr.mxu0 0.0
        %1457 = vmatpush1.xpose.msra.mxu0 0.0
        %1458 = vmatprep.subr.mxu0 0.0
        %1459 = vmatpush1.xpose.msra.mxu0 0.0
        %1460 = vmatprep.mubr.f32.mxu0 0.0
        %1461 = vmatmul.mubr.f32.gmra.mrb[0].mxu0 %v1391
        %v1462 = vpop.f32.mrb[0].mxu0
        %v1463 = vadd.f32 0.0, %v1462
        %v1464 = vpop.f32.mrb[0].mxu0
        %1465 = vdwg.mxu0
        %v1467 = vsel %vm1313, %v1303, 0
        %v1470 = vsel %vm1313, %v1307, 0
        %1472 = vmatprep.subr.mxu0 0.0
        %1473 = vmatpush1.xpose.msra.mxu0 %v1470
        %1474 = vmatprep.subr.mxu0 0.0
        %1475 = vmatpush1.xpose.msra.mxu0 0.0
        %1476 = vmatprep.subr.mxu0 0.0
        %1477 = vmatpush1.xpose.msra.mxu0 0.0
        %1478 = vmatprep.subr.mxu0 0.0
        %1479 = vmatpush1.xpose.msra.mxu0 0.0
        %1480 = vmatprep.subr.mxu0 0.0
        %1481 = vmatpush1.xpose.msra.mxu0 0.0
        %1482 = vmatprep.subr.mxu0 0.0
        %1483 = vmatpush1.xpose.msra.mxu0 0.0
        %1484 = vmatprep.subr.mxu0 0.0
        %1485 = vmatpush1.xpose.msra.mxu0 0.0
        %1486 = vmatprep.subr.mxu0 0.0
        %1487 = vmatpush1.xpose.msra.mxu0 0.0
        %1488 = vmatprep.subr.mxu0 0.0
        %1489 = vmatpush1.xpose.msra.mxu0 0.0
        %1490 = vmatprep.subr.mxu0 0.0
        %1491 = vmatpush1.xpose.msra.mxu0 0.0
        %1492 = vmatprep.subr.mxu0 0.0
        %1493 = vmatpush1.xpose.msra.mxu0 0.0
        %1494 = vmatprep.subr.mxu0 0.0
        %1495 = vmatpush1.xpose.msra.mxu0 0.0
        %1496 = vmatprep.subr.mxu0 0.0
        %1497 = vmatpush1.xpose.msra.mxu0 0.0
        %1498 = vmatprep.subr.mxu0 0.0
        %1499 = vmatpush1.xpose.msra.mxu0 0.0
        %1500 = vmatprep.subr.mxu0 0.0
        %1501 = vmatpush1.xpose.msra.mxu0 0.0
        %1502 = vmatprep.subr.mxu0 0.0
        %1503 = vmatpush1.xpose.msra.mxu0 0.0
        %1504 = vmatprep.subr.mxu0 0.0
        %1505 = vmatpush1.xpose.msra.mxu0 0.0
        %1506 = vmatprep.subr.mxu0 0.0
        %1507 = vmatpush1.xpose.msra.mxu0 0.0
        %1508 = vmatprep.subr.mxu0 0.0
        %1509 = vmatpush1.xpose.msra.mxu0 0.0
        %1510 = vmatprep.subr.mxu0 0.0
        %1511 = vmatpush1.xpose.msra.mxu0 0.0
        %1512 = vmatprep.subr.mxu0 0.0
        %1513 = vmatpush1.xpose.msra.mxu0 0.0
        %1514 = vmatprep.subr.mxu0 0.0
        %1515 = vmatpush1.xpose.msra.mxu0 0.0
        %1516 = vmatprep.subr.mxu0 0.0
        %1517 = vmatpush1.xpose.msra.mxu0 0.0
        %1518 = vmatprep.subr.mxu0 0.0
        %1519 = vmatpush1.xpose.msra.mxu0 0.0
        %1520 = vmatprep.subr.mxu0 0.0
        %1521 = vmatpush1.xpose.msra.mxu0 0.0
        %1522 = vmatprep.subr.mxu0 0.0
        %1523 = vmatpush1.xpose.msra.mxu0 0.0
        %1524 = vmatprep.subr.mxu0 0.0
        %1525 = vmatpush1.xpose.msra.mxu0 0.0
        %1526 = vmatprep.subr.mxu0 0.0
        %1527 = vmatpush1.xpose.msra.mxu0 0.0
        %1528 = vmatprep.subr.mxu0 0.0
        %1529 = vmatpush1.xpose.msra.mxu0 0.0
        %1530 = vmatprep.subr.mxu0 0.0
        %1531 = vmatpush1.xpose.msra.mxu0 0.0
        %1532 = vmatprep.subr.mxu0 0.0
        %1533 = vmatpush1.xpose.msra.mxu0 0.0
        %1534 = vmatprep.subr.mxu0 0.0
        %1535 = vmatpush1.xpose.msra.mxu0 0.0
        %1536 = vmatprep.mubr.f32.mxu0 0.0
        %1537 = vmatmul.mubr.f32.gmra.mrb[0].mxu0 %v1467
        %v1538 = vpop.f32.mrb[0].mxu0
        %v1539 = vadd.f32 0.0, %v1538
        %v1540 = vpop.f32.mrb[0].mxu0
        %1541 = vdwg.mxu0
        %v1543 = vsel %vm1313, %v1304, 0
        %v1546 = vsel %vm1313, %v1308, 0
        %1548 = vmatprep.subr.mxu0 0.0
        %1549 = vmatpush1.xpose.msra.mxu0 %v1546
        %1550 = vmatprep.subr.mxu0 0.0
        %1551 = vmatpush1.xpose.msra.mxu0 0.0
        %1552 = vmatprep.subr.mxu0 0.0
        %1553 = vmatpush1.xpose.msra.mxu0 0.0
        %1554 = vmatprep.subr.mxu0 0.0
        %1555 = vmatpush1.xpose.msra.mxu0 0.0
        %1556 = vmatprep.subr.mxu0 0.0
        %1557 = vmatpush1.xpose.msra.mxu0 0.0
        %1558 = vmatprep.subr.mxu0 0.0
        %1559 = vmatpush1.xpose.msra.mxu0 0.0
        %1560 = vmatprep.subr.mxu0 0.0
        %1561 = vmatpush1.xpose.msra.mxu0 0.0
        %1562 = vmatprep.subr.mxu0 0.0
        %1563 = vmatpush1.xpose.msra.mxu0 0.0
        %1564 = vmatprep.subr.mxu0 0.0
        %1565 = vmatpush1.xpose.msra.mxu0 0.0
        %1566 = vmatprep.subr.mxu0 0.0
        %1567 = vmatpush1.xpose.msra.mxu0 0.0
        %1568 = vmatprep.subr.mxu0 0.0
        %1569 = vmatpush1.xpose.msra.mxu0 0.0
        %1570 = vmatprep.subr.mxu0 0.0
        %1571 = vmatpush1.xpose.msra.mxu0 0.0
        %1572 = vmatprep.subr.mxu0 0.0
        %1573 = vmatpush1.xpose.msra.mxu0 0.0
        %1574 = vmatprep.subr.mxu0 0.0
        %1575 = vmatpush1.xpose.msra.mxu0 0.0
        %1576 = vmatprep.subr.mxu0 0.0
        %1577 = vmatpush1.xpose.msra.mxu0 0.0
        %1578 = vmatprep.subr.mxu0 0.0
        %1579 = vmatpush1.xpose.msra.mxu0 0.0
        %1580 = vmatprep.subr.mxu0 0.0
        %1581 = vmatpush1.xpose.msra.mxu0 0.0
        %1582 = vmatprep.subr.mxu0 0.0
        %1583 = vmatpush1.xpose.msra.mxu0 0.0
        %1584 = vmatprep.subr.mxu0 0.0
        %1585 = vmatpush1.xpose.msra.mxu0 0.0
        %1586 = vmatprep.subr.mxu0 0.0
        %1587 = vmatpush1.xpose.msra.mxu0 0.0
        %1588 = vmatprep.subr.mxu0 0.0
        %1589 = vmatpush1.xpose.msra.mxu0 0.0
        %1590 = vmatprep.subr.mxu0 0.0
        %1591 = vmatpush1.xpose.msra.mxu0 0.0
        %1592 = vmatprep.subr.mxu0 0.0
        %1593 = vmatpush1.xpose.msra.mxu0 0.0
        %1594 = vmatprep.subr.mxu0 0.0
        %1595 = vmatpush1.xpose.msra.mxu0 0.0
        %1596 = vmatprep.subr.mxu0 0.0
        %1597 = vmatpush1.xpose.msra.mxu0 0.0
        %1598 = vmatprep.subr.mxu0 0.0
        %1599 = vmatpush1.xpose.msra.mxu0 0.0
        %1600 = vmatprep.subr.mxu0 0.0
        %1601 = vmatpush1.xpose.msra.mxu0 0.0
        %1602 = vmatprep.subr.mxu0 0.0
        %1603 = vmatpush1.xpose.msra.mxu0 0.0
        %1604 = vmatprep.subr.mxu0 0.0
        %1605 = vmatpush1.xpose.msra.mxu0 0.0
        %1606 = vmatprep.subr.mxu0 0.0
        %1607 = vmatpush1.xpose.msra.mxu0 0.0
        %1608 = vmatprep.subr.mxu0 0.0
        %1609 = vmatpush1.xpose.msra.mxu0 0.0
        %1610 = vmatprep.subr.mxu0 0.0
        %1611 = vmatpush1.xpose.msra.mxu0 0.0
        %1612 = vmatprep.mubr.f32.mxu0 0.0
        %1613 = vmatmul.mubr.f32.gmra.mrb[0].mxu0 %v1543
        %v1614 = vpop.f32.mrb[0].mxu0
        %v1615 = vadd.f32 0.0, %v1614
        %v1616 = vpop.f32.mrb[0].mxu0
        %1617 = vdwg.mxu0
        %v1618 = vmul.f32 %v1387, 0.35355338
        %v1619 = vmul.f32 %v1463, 0.35355338
        %v1620 = vmul.f32 %v1539, 0.35355338
        %v1621 = vmul.f32 %v1615, 0.35355338
        %v1622 = vsel %vm1313, %v1618, -inf
        %1623 = vmax.xlane.f32.xlu0 %v1622
        %v1624 = vpop.xlane.xlu0 %1623
        %v1625 = vsel %vm1313, %v1619, -inf
        %1626 = vmax.xlane.f32.xlu0 %v1625
        %v1627 = vpop.xlane.xlu0 %1626
        %v1628 = vsel %vm1313, %v1620, -inf
        %1629 = vmax.xlane.f32.xlu0 %v1628
        %v1630 = vpop.xlane.xlu0 %1629
        %v1631 = vsel %vm1313, %v1621, -inf
        %1632 = vmax.xlane.f32.xlu0 %v1631
        %v1633 = vpop.xlane.xlu0 %1632
        %v1634 = vsub.f32 -inf, %v1624
        %v1635 = vsub.f32 -inf, %v1627
        %v1636 = vsub.f32 -inf, %v1630
        %v1637 = vsub.f32 -inf, %v1633
        %v1638 = vmul.f32 %v1634, 1.442695
        %v1639 = vpow.pop %v1638
        %v1640 = vmul.f32 %v1635, 1.442695
        %v1641 = vpow.pop %v1640
        %v1642 = vmul.f32 %v1636, 1.442695
        %v1643 = vpow.pop %v1642
        %v1644 = vmul.f32 %v1637, 1.442695
        %v1645 = vpow.pop %v1644
        %v1646 = vsub.f32 %v1618, %v1624
        %v1647 = vsub.f32 %v1619, %v1627
        %v1648 = vsub.f32 %v1620, %v1630
        %v1649 = vsub.f32 %v1621, %v1633
        %v1650 = vmul.f32 %v1646, 1.442695
        %v1651 = vpow.pop %v1650
        %v1652 = vmul.f32 %v1647, 1.442695
        %v1653 = vpow.pop %v1652
        %v1654 = vmul.f32 %v1648, 1.442695
        %v1655 = vpow.pop %v1654
        %v1656 = vmul.f32 %v1649, 1.442695
        %v1657 = vpow.pop %v1656
        %v1658 = vmul.f32 %v1639, 0.0
        %v1659 = vmul.f32 %v1641, 0.0
        %v1660 = vmul.f32 %v1643, 0.0
        %v1661 = vmul.f32 %v1645, 0.0
        %v1662 = vsel %vm1313, %v1651, 0.0
        %1663 = vadd.xlane.f32.xlu0 %v1662
        %v1664 = vpop.xlane.xlu0 %1663
        %v1665 = vsel %vm1313, %v1653, 0.0
        %1666 = vadd.xlane.f32.xlu0 %v1665
        %v1667 = vpop.xlane.xlu0 %1666
        %v1668 = vsel %vm1313, %v1655, 0.0
        %1669 = vadd.xlane.f32.xlu0 %v1668
        %v1670 = vpop.xlane.xlu0 %1669
        %v1671 = vsel %vm1313, %v1657, 0.0
        %1672 = vadd.xlane.f32.xlu0 %v1671
        %v1673 = vpop.xlane.xlu0 %1672
        %v1674 = vadd.f32 %v1658, %v1664
        %v1675 = vadd.f32 %v1659, %v1667
        %v1676 = vadd.f32 %v1660, %v1670
        %v1677 = vadd.f32 %v1661, %v1673
        %v1679 = vsel %vm1313, %v1651, 0
        %1681 = vmatprep.subr.mxu0 0.0
        %1682 = vmatpush1.msra.mxu0 %v1309
        %1683 = vmatprep.subr.mxu0 0.0
        %1684 = vmatpush1.msra.mxu0 0.0
        %1685 = vmatprep.subr.mxu0 0.0
        %1686 = vmatpush1.msra.mxu0 0.0
        %1687 = vmatprep.subr.mxu0 0.0
        %1688 = vmatpush1.msra.mxu0 0.0
        %1689 = vmatprep.subr.mxu0 0.0
        %1690 = vmatpush1.msra.mxu0 0.0
        %1691 = vmatprep.subr.mxu0 0.0
        %1692 = vmatpush1.msra.mxu0 0.0
        %1693 = vmatprep.subr.mxu0 0.0
        %1694 = vmatpush1.msra.mxu0 0.0
        %1695 = vmatprep.subr.mxu0 0.0
        %1696 = vmatpush1.msra.mxu0 0.0
        %1697 = vmatprep.subr.mxu0 0.0
        %1698 = vmatpush1.msra.mxu0 0.0
        %1699 = vmatprep.subr.mxu0 0.0
        %1700 = vmatpush1.msra.mxu0 0.0
        %1701 = vmatprep.subr.mxu0 0.0
        %1702 = vmatpush1.msra.mxu0 0.0
        %1703 = vmatprep.subr.mxu0 0.0
        %1704 = vmatpush1.msra.mxu0 0.0
        %1705 = vmatprep.subr.mxu0 0.0
        %1706 = vmatpush1.msra.mxu0 0.0
        %1707 = vmatprep.subr.mxu0 0.0
        %1708 = vmatpush1.msra.mxu0 0.0
        %1709 = vmatprep.subr.mxu0 0.0
        %1710 = vmatpush1.msra.mxu0 0.0
        %1711 = vmatprep.subr.mxu0 0.0
        %1712 = vmatpush1.msra.mxu0 0.0
        %1713 = vmatprep.subr.mxu0 0.0
        %1714 = vmatpush1.msra.mxu0 0.0
        %1715 = vmatprep.subr.mxu0 0.0
        %1716 = vmatpush1.msra.mxu0 0.0
        %1717 = vmatprep.subr.mxu0 0.0
        %1718 = vmatpush1.msra.mxu0 0.0
        %1719 = vmatprep.subr.mxu0 0.0
        %1720 = vmatpush1.msra.mxu0 0.0
        %1721 = vmatprep.subr.mxu0 0.0
        %1722 = vmatpush1.msra.mxu0 0.0
        %1723 = vmatprep.subr.mxu0 0.0
        %1724 = vmatpush1.msra.mxu0 0.0
        %1725 = vmatprep.subr.mxu0 0.0
        %1726 = vmatpush1.msra.mxu0 0.0
        %1727 = vmatprep.subr.mxu0 0.0
        %1728 = vmatpush1.msra.mxu0 0.0
        %1729 = vmatprep.subr.mxu0 0.0
        %1730 = vmatpush1.msra.mxu0 0.0
        %1731 = vmatprep.subr.mxu0 0.0
        %1732 = vmatpush1.msra.mxu0 0.0
        %1733 = vmatprep.subr.mxu0 0.0
        %1734 = vmatpush1.msra.mxu0 0.0
        %1735 = vmatprep.subr.mxu0 0.0
        %1736 = vmatpush1.msra.mxu0 0.0
        %1737 = vmatprep.subr.mxu0 0.0
        %1738 = vmatpush1.msra.mxu0 0.0
        %1739 = vmatprep.subr.mxu0 0.0
        %1740 = vmatpush1.msra.mxu0 0.0
        %1741 = vmatprep.subr.mxu0 0.0
        %1742 = vmatpush1.msra.mxu0 0.0
        %1743 = vmatprep.subr.mxu0 0.0
        %1744 = vmatpush1.msra.mxu0 0.0
        %1745 = vmatprep.mubr.f32.mxu0 0.0
        %1746 = vmatmul.mubr.f32.gmra.mrb[0].mxu0 %v1679
        %v1747 = vpop.f32.mrb[0].mxu0
        %v1748 = vadd.f32 0.0, %v1747
        %v1749 = vpop.f32.mrb[0].mxu0
        %1750 = vdwg.mxu0
        %v1752 = vsel %vm1313, %v1653, 0
        %1754 = vmatprep.subr.mxu0 0.0
        %1755 = vmatpush1.msra.mxu0 %v1310
        %1756 = vmatprep.subr.mxu0 0.0
        %1757 = vmatpush1.msra.mxu0 0.0
        %1758 = vmatprep.subr.mxu0 0.0
        %1759 = vmatpush1.msra.mxu0 0.0
        %1760 = vmatprep.subr.mxu0 0.0
        %1761 = vmatpush1.msra.mxu0 0.0
        %1762 = vmatprep.subr.mxu0 0.0
        %1763 = vmatpush1.msra.mxu0 0.0
        %1764 = vmatprep.subr.mxu0 0.0
        %1765 = vmatpush1.msra.mxu0 0.0
        %1766 = vmatprep.subr.mxu0 0.0
        %1767 = vmatpush1.msra.mxu0 0.0
        %1768 = vmatprep.subr.mxu0 0.0
        %1769 = vmatpush1.msra.mxu0 0.0
        %1770 = vmatprep.subr.mxu0 0.0
        %1771 = vmatpush1.msra.mxu0 0.0
        %1772 = vmatprep.subr.mxu0 0.0
        %1773 = vmatpush1.msra.mxu0 0.0
        %1774 = vmatprep.subr.mxu0 0.0
        %1775 = vmatpush1.msra.mxu0 0.0
        %1776 = vmatprep.subr.mxu0 0.0
        %1777 = vmatpush1.msra.mxu0 0.0
        %1778 = vmatprep.subr.mxu0 0.0
        %1779 = vmatpush1.msra.mxu0 0.0
        %1780 = vmatprep.subr.mxu0 0.0
        %1781 = vmatpush1.msra.mxu0 0.0
        %1782 = vmatprep.subr.mxu0 0.0
        %1783 = vmatpush1.msra.mxu0 0.0
        %1784 = vmatprep.subr.mxu0 0.0
        %1785 = vmatpush1.msra.mxu0 0.0
        %1786 = vmatprep.subr.mxu0 0.0
        %1787 = vmatpush1.msra.mxu0 0.0
        %1788 = vmatprep.subr.mxu0 0.0
        %1789 = vmatpush1.msra.mxu0 0.0
        %1790 = vmatprep.subr.mxu0 0.0
        %1791 = vmatpush1.msra.mxu0 0.0
        %1792 = vmatprep.subr.mxu0 0.0
        %1793 = vmatpush1.msra.mxu0 0.0
        %1794 = vmatprep.subr.mxu0 0.0
        %1795 = vmatpush1.msra.mxu0 0.0
        %1796 = vmatprep.subr.mxu0 0.0
        %1797 = vmatpush1.msra.mxu0 0.0
        %1798 = vmatprep.subr.mxu0 0.0
        %1799 = vmatpush1.msra.mxu0 0.0
        %1800 = vmatprep.subr.mxu0 0.0
        %1801 = vmatpush1.msra.mxu0 0.0
        %1802 = vmatprep.subr.mxu0 0.0
        %1803 = vmatpush1.msra.mxu0 0.0
        %1804 = vmatprep.subr.mxu0 0.0
        %1805 = vmatpush1.msra.mxu0 0.0
        %1806 = vmatprep.subr.mxu0 0.0
        %1807 = vmatpush1.msra.mxu0 0.0
        %1808 = vmatprep.subr.mxu0 0.0
        %1809 = vmatpush1.msra.mxu0 0.0
        %1810 = vmatprep.subr.mxu0 0.0
        %1811 = vmatpush1.msra.mxu0 0.0
        %1812 = vmatprep.subr.mxu0 0.0
        %1813 = vmatpush1.msra.mxu0 0.0
        %1814 = vmatprep.subr.mxu0 0.0
        %1815 = vmatpush1.msra.mxu0 0.0
        %1816 = vmatprep.subr.mxu0 0.0
        %1817 = vmatpush1.msra.mxu0 0.0
        %1818 = vmatprep.mubr.f32.mxu0 0.0
        %1819 = vmatmul.mubr.f32.gmra.mrb[0].mxu0 %v1752
        %v1820 = vpop.f32.mrb[0].mxu0
        %v1821 = vadd.f32 0.0, %v1820
        %v1822 = vpop.f32.mrb[0].mxu0
        %1823 = vdwg.mxu0
        %v1825 = vsel %vm1313, %v1655, 0
        %1827 = vmatprep.subr.mxu0 0.0
        %1828 = vmatpush1.msra.mxu0 %v1311
        %1829 = vmatprep.subr.mxu0 0.0
        %1830 = vmatpush1.msra.mxu0 0.0
        %1831 = vmatprep.subr.mxu0 0.0
        %1832 = vmatpush1.msra.mxu0 0.0
        %1833 = vmatprep.subr.mxu0 0.0
        %1834 = vmatpush1.msra.mxu0 0.0
        %1835 = vmatprep.subr.mxu0 0.0
        %1836 = vmatpush1.msra.mxu0 0.0
        %1837 = vmatprep.subr.mxu0 0.0
        %1838 = vmatpush1.msra.mxu0 0.0
        %1839 = vmatprep.subr.mxu0 0.0
        %1840 = vmatpush1.msra.mxu0 0.0
        %1841 = vmatprep.subr.mxu0 0.0
        %1842 = vmatpush1.msra.mxu0 0.0
        %1843 = vmatprep.subr.mxu0 0.0
        %1844 = vmatpush1.msra.mxu0 0.0
        %1845 = vmatprep.subr.mxu0 0.0
        %1846 = vmatpush1.msra.mxu0 0.0
        %1847 = vmatprep.subr.mxu0 0.0
        %1848 = vmatpush1.msra.mxu0 0.0
        %1849 = vmatprep.subr.mxu0 0.0
        %1850 = vmatpush1.msra.mxu0 0.0
        %1851 = vmatprep.subr.mxu0 0.0
        %1852 = vmatpush1.msra.mxu0 0.0
        %1853 = vmatprep.subr.mxu0 0.0
        %1854 = vmatpush1.msra.mxu0 0.0
        %1855 = vmatprep.subr.mxu0 0.0
        %1856 = vmatpush1.msra.mxu0 0.0
        %1857 = vmatprep.subr.mxu0 0.0
        %1858 = vmatpush1.msra.mxu0 0.0
        %1859 = vmatprep.subr.mxu0 0.0
        %1860 = vmatpush1.msra.mxu0 0.0
        %1861 = vmatprep.subr.mxu0 0.0
        %1862 = vmatpush1.msra.mxu0 0.0
        %1863 = vmatprep.subr.mxu0 0.0
        %1864 = vmatpush1.msra.mxu0 0.0
        %1865 = vmatprep.subr.mxu0 0.0
        %1866 = vmatpush1.msra.mxu0 0.0
        %1867 = vmatprep.subr.mxu0 0.0
        %1868 = vmatpush1.msra.mxu0 0.0
        %1869 = vmatprep.subr.mxu0 0.0
        %1870 = vmatpush1.msra.mxu0 0.0
        %1871 = vmatprep.subr.mxu0 0.0
        %1872 = vmatpush1.msra.mxu0 0.0
        %1873 = vmatprep.subr.mxu0 0.0
        %1874 = vmatpush1.msra.mxu0 0.0
        %1875 = vmatprep.subr.mxu0 0.0
        %1876 = vmatpush1.msra.mxu0 0.0
        %1877 = vmatprep.subr.mxu0 0.0
        %1878 = vmatpush1.msra.mxu0 0.0
        %1879 = vmatprep.subr.mxu0 0.0
        %1880 = vmatpush1.msra.mxu0 0.0
        %1881 = vmatprep.subr.mxu0 0.0
        %1882 = vmatpush1.msra.mxu0 0.0
        %1883 = vmatprep.subr.mxu0 0.0
        %1884 = vmatpush1.msra.mxu0 0.0
        %1885 = vmatprep.subr.mxu0 0.0
        %1886 = vmatpush1.msra.mxu0 0.0
        %1887 = vmatprep.subr.mxu0 0.0
        %1888 = vmatpush1.msra.mxu0 0.0
        %1889 = vmatprep.subr.mxu0 0.0
        %1890 = vmatpush1.msra.mxu0 0.0
        %1891 = vmatprep.mubr.f32.mxu0 0.0
        %1892 = vmatmul.mubr.f32.gmra.mrb[0].mxu0 %v1825
        %v1893 = vpop.f32.mrb[0].mxu0
        %v1894 = vadd.f32 0.0, %v1893
        %v1895 = vpop.f32.mrb[0].mxu0
        %1896 = vdwg.mxu0
        %v1898 = vsel %vm1313, %v1657, 0
        %1900 = vmatprep.subr.mxu0 0.0
        %1901 = vmatpush1.msra.mxu0 %v1312
        %1902 = vmatprep.subr.mxu0 0.0
        %1903 = vmatpush1.msra.mxu0 0.0
        %1904 = vmatprep.subr.mxu0 0.0
        %1905 = vmatpush1.msra.mxu0 0.0
        %1906 = vmatprep.subr.mxu0 0.0
        %1907 = vmatpush1.msra.mxu0 0.0
        %1908 = vmatprep.subr.mxu0 0.0
        %1909 = vmatpush1.msra.mxu0 0.0
        %1910 = vmatprep.subr.mxu0 0.0
        %1911 = vmatpush1.msra.mxu0 0.0
        %1912 = vmatprep.subr.mxu0 0.0
        %1913 = vmatpush1.msra.mxu0 0.0
        %1914 = vmatprep.subr.mxu0 0.0
        %1915 = vmatpush1.msra.mxu0 0.0
        %1916 = vmatprep.subr.mxu0 0.0
        %1917 = vmatpush1.msra.mxu0 0.0
        %1918 = vmatprep.subr.mxu0 0.0
        %1919 = vmatpush1.msra.mxu0 0.0
        %1920 = vmatprep.subr.mxu0 0.0
        %1921 = vmatpush1.msra.mxu0 0.0
        %1922 = vmatprep.subr.mxu0 0.0
        %1923 = vmatpush1.msra.mxu0 0.0
        %1924 = vmatprep.subr.mxu0 0.0
        %1925 = vmatpush1.msra.mxu0 0.0
        %1926 = vmatprep.subr.mxu0 0.0
        %1927 = vmatpush1.msra.mxu0 0.0
        %1928 = vmatprep.subr.mxu0 0.0
        %1929 = vmatpush1.msra.mxu0 0.0
        %1930 = vmatprep.subr.mxu0 0.0
        %1931 = vmatpush1.msra.mxu0 0.0
        %1932 = vmatprep.subr.mxu0 0.0
        %1933 = vmatpush1.msra.mxu0 0.0
        %1934 = vmatprep.subr.mxu0 0.0
        %1935 = vmatpush1.msra.mxu0 0.0
        %1936 = vmatprep.subr.mxu0 0.0
        %1937 = vmatpush1.msra.mxu0 0.0
        %1938 = vmatprep.subr.mxu0 0.0
        %1939 = vmatpush1.msra.mxu0 0.0
        %1940 = vmatprep.subr.mxu0 0.0
        %1941 = vmatpush1.msra.mxu0 0.0
        %1942 = vmatprep.subr.mxu0 0.0
        %1943 = vmatpush1.msra.mxu0 0.0
        %1944 = vmatprep.subr.mxu0 0.0
        %1945 = vmatpush1.msra.mxu0 0.0
        %1946 = vmatprep.subr.mxu0 0.0
        %1947 = vmatpush1.msra.mxu0 0.0
        %1948 = vmatprep.subr.mxu0 0.0
        %1949 = vmatpush1.msra.mxu0 0.0
        %1950 = vmatprep.subr.mxu0 0.0
        %1951 = vmatpush1.msra.mxu0 0.0
        %1952 = vmatprep.subr.mxu0 0.0
        %1953 = vmatpush1.msra.mxu0 0.0
        %1954 = vmatprep.subr.mxu0 0.0
        %1955 = vmatpush1.msra.mxu0 0.0
        %1956 = vmatprep.subr.mxu0 0.0
        %1957 = vmatpush1.msra.mxu0 0.0
        %1958 = vmatprep.subr.mxu0 0.0
        %1959 = vmatpush1.msra.mxu0 0.0
        %1960 = vmatprep.subr.mxu0 0.0
        %1961 = vmatpush1.msra.mxu0 0.0
        %1962 = vmatprep.subr.mxu0 0.0
        %1963 = vmatpush1.msra.mxu0 0.0
        %1964 = vmatprep.mubr.f32.mxu0 0.0
        %1965 = vmatmul.mubr.f32.gmra.mrb[0].mxu0 %v1898
        %v1966 = vpop.f32.mrb[0].mxu0
        %v1967 = vadd.f32 0.0, %v1966
        %v1968 = vpop.f32.mrb[0].mxu0
        %1969 = vdwg.mxu0
        %v1970 = vadd.f32 %v1658, %v1748
        %v1971 = vadd.f32 %v1659, %v1821
        %v1972 = vadd.f32 %v1660, %v1894
        %v1973 = vadd.f32 %v1661, %v1967
        %v1974 = vrcp.pop %v1674
        %v1975 = vrcp.pop %v1675
        %v1976 = vrcp.pop %v1676
        %v1977 = vrcp.pop %v1677
        %v1978 = vmul.f32 %v1970, %v1974
        %v1979 = vmul.f32 %v1971, %v1975
        %v1980 = vmul.f32 %v1972, %v1976
        %v1981 = vmul.f32 %v1973, %v1977
        %v1982 = vcombine.low %v1978, %v1980
        %v1983 = vcombine.high %v1978, %v1980
        %v1985 = vunpack.c.l.s4 1983009808
        %v1986 = vunpack.c.0.s8 %v1985
        %v1987 = vlaneseq
        %v1988 = vshrl.u32 %v1987, 7
        %v1989 = vsub.s32 %v1986, %v1988
        %v1990 = vrot.slane %v1982, %v1989
        %v1992 = vunpack.c.l.s4 1983009808
        %v1993 = vunpack.c.0.s8 %v1992
        %v1994 = vlaneseq
        %v1995 = vshrl.u32 %v1994, 7
        %v1996 = vsub.s32 %v1993, %v1995
        %v1997 = vrot.slane %v1983, %v1996
        %v1998 = vcombine.low %v1979, %v1981
        %v1999 = vcombine.high %v1979, %v1981
        %v2001 = vunpack.c.l.s4 1983009808
        %v2002 = vunpack.c.0.s8 %v2001
        %v2003 = vlaneseq
        %v2004 = vshrl.u32 %v2003, 7
        %v2005 = vsub.s32 %v2002, %v2004
        %v2006 = vrot.slane %v1998, %v2005
        %v2008 = vunpack.c.l.s4 1983009808
        %v2009 = vunpack.c.0.s8 %v2008
        %v2010 = vlaneseq
        %v2011 = vshrl.u32 %v2010, 7
        %v2012 = vsub.s32 %v2009, %v2011
        %v2013 = vrot.slane %v1999, %v2012
        %v2014 = vcombine.low %v1990, %v2006
        %v2015 = vcombine.high %v1990, %v2006
        %v2017 = vunpack.c.l.s4 1934713408
        %v2018 = vunpack.c.0.s8 %v2017
        %v2019 = vlaneseq
        %v2020 = vshrl.u32 %v2019, 7
        %v2021 = vsub.s32 %v2018, %v2020
        %v2022 = vrot.slane %v2014, %v2021
        %v2024 = vunpack.c.l.s4 1934713408
        %v2025 = vunpack.c.0.s8 %v2024
        %v2026 = vlaneseq
        %v2027 = vshrl.u32 %v2026, 7
        %v2028 = vsub.s32 %v2025, %v2027
        %v2029 = vrot.slane %v2015, %v2028
        %v2030 = vcombine.low %v1997, %v2013
        %v2031 = vcombine.high %v1997, %v2013
        %v2033 = vunpack.c.l.s4 1934713408
        %v2034 = vunpack.c.0.s8 %v2033
        %v2035 = vlaneseq
        %v2036 = vshrl.u32 %v2035, 7
        %v2037 = vsub.s32 %v2034, %v2036
        %v2038 = vrot.slane %v2030, %v2037
        %v2040 = vunpack.c.l.s4 1934713408
        %v2041 = vunpack.c.0.s8 %v2040
        %v2042 = vlaneseq
        %v2043 = vshrl.u32 %v2042, 7
        %v2044 = vsub.s32 %v2041, %v2043
        %v2045 = vrot.slane %v2031, %v2044
        %v2046 = vcombine.high %v2022, 0.0
        %v2047 = vcombine.high %v2029, 0.0
        %v2048 = vcombine.high %v2038, 0.0
        %v2049 = vcombine.high %v2045, 0.0
        %v2050 = vcombine.low %v2022, %v2029
        %v2052 = vunpack.c.l.s4 1983009808
        %v2053 = vunpack.c.0.s8 %v2052
        %v2054 = vlaneseq
        %v2055 = vshrl.u32 %v2054, 7
        %v2056 = vsub.s32 %v2053, %v2055
        %v2057 = vrot.slane %v2050, %v2056
        %v2058 = vcombine.low %v2046, %v2047
        %v2060 = vunpack.c.l.s4 1983009808
        %v2061 = vunpack.c.0.s8 %v2060
        %v2062 = vlaneseq
        %v2063 = vshrl.u32 %v2062, 7
        %v2064 = vsub.s32 %v2061, %v2063
        %v2065 = vrot.slane %v2058, %v2064
        %v2066 = vcombine.low %v2038, %v2045
        %v2068 = vunpack.c.l.s4 1983009808
        %v2069 = vunpack.c.0.s8 %v2068
        %v2070 = vlaneseq
        %v2071 = vshrl.u32 %v2070, 7
        %v2072 = vsub.s32 %v2069, %v2071
        %v2073 = vrot.slane %v2066, %v2072
        %v2074 = vcombine.low %v2048, %v2049
        %v2076 = vunpack.c.l.s4 1983009808
        %v2077 = vunpack.c.0.s8 %v2076
        %v2078 = vlaneseq
        %v2079 = vshrl.u32 %v2078, 7
        %v2080 = vsub.s32 %v2077, %v2079
        %v2081 = vrot.slane %v2074, %v2080
        %v2082 = vcombine.low %v2057, %v2065
        %v2083 = vcombine.high %v2057, %v2065
        %v2085 = vunpack.c.l.s4 1934713408
        %v2086 = vunpack.c.0.s8 %v2085
        %v2087 = vlaneseq
        %v2088 = vshrl.u32 %v2087, 7
        %v2089 = vsub.s32 %v2086, %v2088
        %v2090 = vrot.slane %v2082, %v2089
        %v2092 = vunpack.c.l.s4 1934713408
        %v2093 = vunpack.c.0.s8 %v2092
        %v2094 = vlaneseq
        %v2095 = vshrl.u32 %v2094, 7
        %v2096 = vsub.s32 %v2093, %v2095
        %v2097 = vrot.slane %v2083, %v2096
        %v2098 = vcombine.low %v2073, %v2081
        %v2099 = vcombine.high %v2073, %v2081
        %v2101 = vunpack.c.l.s4 1934713408
        %v2102 = vunpack.c.0.s8 %v2101
        %v2103 = vlaneseq
        %v2104 = vshrl.u32 %v2103, 7
        %v2105 = vsub.s32 %v2102, %v2104
        %v2106 = vrot.slane %v2098, %v2105
        %v2108 = vunpack.c.l.s4 1934713408
        %v2109 = vunpack.c.0.s8 %v2108
        %v2110 = vlaneseq
        %v2111 = vshrl.u32 %v2110, 7
        %v2112 = vsub.s32 %v2109, %v2111
        %v2113 = vrot.slane %v2099, %v2112
        %v2114 = vcombine.low %v2090, %v2106
        %v2115 = vcombine.high %v2090, %v2106
        %v2116 = vcombine.low %v2097, %v2113
        %v2117 = vcombine.high %v2097, %v2113
        %2119 = vrot.lane.b32.xlu0 %v2115, 8
        %v2120 = vpop.permute.xlu0 %2119
        %2123 = vrot.lane.b32.xlu0 %v2116, 16
        %v2124 = vpop.permute.xlu0 %2123
        %2127 = vrot.lane.b32.xlu0 %v2117, 24
        %v2128 = vpop.permute.xlu0 %2127
        %v2130 = vsel %vm1313, %v2114, %v2120
        %vm2131 = vcmask 130048
        %v2132 = vsel %vm2131, %v2130, %v2124
        %vm2133 = vcmask 195584
        %v2134 = vsel %vm2133, %v2132, %v2128
        %v2135 = vld [vmem:[%s5] sm:$0xff]
        %v2136 = vld [vmem:[%s5 + $0x8] sm:$0xff]
        %v2137 = vld [vmem:[%s5 + $0x10] sm:$0xff]
        %v2138 = vld [vmem:[%s5 + $0x18] sm:$0xff]
        %v2139 = vld [vmem:[%s6] sm:$0x1]
        %v2141 = vlaneseq
        %v2142 = vshrl.u32 %v2141, 7
        %v2143 = vsub.s32 0, %v2142
        %v2144 = vrot.slane %v2139, %v2143
        %v2147 = vsel %vm1053, %v2134, 0
        %2149 = vmatprep.subr.mxu0 0.0
        %2150 = vmatpush1.msra.mxu0 %v2135
        %2151 = vmatprep.subr.mxu0 0.0
        %2152 = vmatpush1.msra.mxu0 %v2136
        %2153 = vmatprep.subr.mxu0 0.0
        %2154 = vmatpush1.msra.mxu0 %v2137
        %2155 = vmatprep.subr.mxu0 0.0
        %2156 = vmatpush1.msra.mxu0 %v2138
        %2157 = vmatprep.subr.mxu0 0.0
        %2158 = vmatpush1.msra.mxu0 0.0
        %2159 = vmatprep.subr.mxu0 0.0
        %2160 = vmatpush1.msra.mxu0 0.0
        %2161 = vmatprep.subr.mxu0 0.0
        %2162 = vmatpush1.msra.mxu0 0.0
        %2163 = vmatprep.subr.mxu0 0.0
        %2164 = vmatpush1.msra.mxu0 0.0
        %2165 = vmatprep.subr.mxu0 0.0
        %2166 = vmatpush1.msra.mxu0 0.0
        %2167 = vmatprep.subr.mxu0 0.0
        %2168 = vmatpush1.msra.mxu0 0.0
        %2169 = vmatprep.subr.mxu0 0.0
        %2170 = vmatpush1.msra.mxu0 0.0
        %2171 = vmatprep.subr.mxu0 0.0
        %2172 = vmatpush1.msra.mxu0 0.0
        %2173 = vmatprep.subr.mxu0 0.0
        %2174 = vmatpush1.msra.mxu0 0.0
        %2175 = vmatprep.subr.mxu0 0.0
        %2176 = vmatpush1.msra.mxu0 0.0
        %2177 = vmatprep.subr.mxu0 0.0
        %2178 = vmatpush1.msra.mxu0 0.0
        %2179 = vmatprep.subr.mxu0 0.0
        %2180 = vmatpush1.msra.mxu0 0.0
        %2181 = vmatprep.subr.mxu0 0.0
        %2182 = vmatpush1.msra.mxu0 0.0
        %2183 = vmatprep.subr.mxu0 0.0
        %2184 = vmatpush1.msra.mxu0 0.0
        %2185 = vmatprep.subr.mxu0 0.0
        %2186 = vmatpush1.msra.mxu0 0.0
        %2187 = vmatprep.subr.mxu0 0.0
        %2188 = vmatpush1.msra.mxu0 0.0
        %2189 = vmatprep.subr.mxu0 0.0
        %2190 = vmatpush1.msra.mxu0 0.0
        %2191 = vmatprep.subr.mxu0 0.0
        %2192 = vmatpush1.msra.mxu0 0.0
        %2193 = vmatprep.subr.mxu0 0.0
        %2194 = vmatpush1.msra.mxu0 0.0
        %2195 = vmatprep.subr.mxu0 0.0
        %2196 = vmatpush1.msra.mxu0 0.0
        %2197 = vmatprep.subr.mxu0 0.0
        %2198 = vmatpush1.msra.mxu0 0.0
        %2199 = vmatprep.subr.mxu0 0.0
        %2200 = vmatpush1.msra.mxu0 0.0
        %2201 = vmatprep.subr.mxu0 0.0
        %2202 = vmatpush1.msra.mxu0 0.0
        %2203 = vmatprep.subr.mxu0 0.0
        %2204 = vmatpush1.msra.mxu0 0.0
        %2205 = vmatprep.subr.mxu0 0.0
        %2206 = vmatpush1.msra.mxu0 0.0
        %2207 = vmatprep.subr.mxu0 0.0
        %2208 = vmatpush1.msra.mxu0 0.0
        %2209 = vmatprep.subr.mxu0 0.0
        %2210 = vmatpush1.msra.mxu0 0.0
        %2211 = vmatprep.subr.mxu0 0.0
        %2212 = vmatpush1.msra.mxu0 0.0
        %2213 = vmatprep.mubr.f32.mxu0 0.0
        %2214 = vmatmul.mubr.f32.gmra.mrb[0].mxu0 %v2147
        %v2215 = vpop.f32.mrb[0].mxu0
        %v2216 = vadd.f32 %v2144, %v2215
        %v2217 = vpop.f32.mrb[0].mxu0
        %2218 = vdwg.mxu0
        %v2219 = vadd.f32 %v1052, %v2216
        %v2220 = vld [vmem:[%s9] sm:$0x1]
        %v2221 = vld [vmem:[%s10] sm:$0x1]
        %v2222 = vsel %vm1053, %v2219, 0.0
        %2223 = vadd.xlane.f32.xlu0 %v2222
        %v2224 = vpop.xlane.xlu0 %2223
        %v2225 = vmul.f32 %v2224, %v1057
        %v2226 = vsub.f32 %v2219, %v2225
        %v2227 = vmul.f32 %v2226, %v2226
        %v2228 = vsel %vm1053, %v2227, 0.0
        %2229 = vadd.xlane.f32.xlu0 %v2228
        %v2230 = vpop.xlane.xlu0 %2229
        %v2231 = vmul.f32 %v2230, %v1057
        %v2232 = vadd.f32 %v2231, 1e-05
        %v2233 = vrsqrt.pop %v2232
        %v2234 = vmul.f32 %v2226, %v2233
        %v2236 = vlaneseq
        %v2237 = vshrl.u32 %v2236, 7
        %v2238 = vsub.s32 0, %v2237
        %v2239 = vrot.slane %v2220, %v2238
        %v2241 = vmul.f32 %v2234, %v2239
        %v2243 = vlaneseq
        %v2244 = vshrl.u32 %v2243, 7
        %v2245 = vsub.s32 0, %v2244
        %v2246 = vrot.slane %v2221, %v2245
        %v2248 = vadd.f32 %v2241, %v2246
        %v2249 = vld [vmem:[%s11] sm:$0xff]
        %v2250 = vld [vmem:[%s11 + $0x8] sm:$0xff]
        %v2251 = vld [vmem:[%s11 + $0x10] sm:$0xff]
        %v2252 = vld [vmem:[%s11 + $0x18] sm:$0xff]
        %v2253 = vld [vmem:[%s12] sm:$0x1]
        %v2255 = vlaneseq
        %v2256 = vshrl.u32 %v2255, 7
        %v2257 = vsub.s32 0, %v2256
        %v2258 = vrot.slane %v2253, %v2257
        %v2261 = vsel %vm1053, %v2248, 0
        %2263 = vmatprep.subr.mxu0 0.0
        %2264 = vmatpush1.msra.mxu0 %v2249
        %2265 = vmatprep.subr.mxu0 0.0
        %2266 = vmatpush1.msra.mxu0 %v2250
        %2267 = vmatprep.subr.mxu0 0.0
        %2268 = vmatpush1.msra.mxu0 %v2251
        %2269 = vmatprep.subr.mxu0 0.0
        %2270 = vmatpush1.msra.mxu0 %v2252
        %2271 = vmatprep.subr.mxu0 0.0
        %2272 = vmatpush1.msra.mxu0 0.0
        %2273 = vmatprep.subr.mxu0 0.0
        %2274 = vmatpush1.msra.mxu0 0.0
        %2275 = vmatprep.subr.mxu0 0.0
        %2276 = vmatpush1.msra.mxu0 0.0
        %2277 = vmatprep.subr.mxu0 0.0
        %2278 = vmatpush1.msra.mxu0 0.0
        %2279 = vmatprep.subr.mxu0 0.0
        %2280 = vmatpush1.msra.mxu0 0.0
        %2281 = vmatprep.subr.mxu0 0.0
        %2282 = vmatpush1.msra.mxu0 0.0
        %2283 = vmatprep.subr.mxu0 0.0
        %2284 = vmatpush1.msra.mxu0 0.0
        %2285 = vmatprep.subr.mxu0 0.0
        %2286 = vmatpush1.msra.mxu0 0.0
        %2287 = vmatprep.subr.mxu0 0.0
        %2288 = vmatpush1.msra.mxu0 0.0
        %2289 = vmatprep.subr.mxu0 0.0
        %2290 = vmatpush1.msra.mxu0 0.0
        %2291 = vmatprep.subr.mxu0 0.0
        %2292 = vmatpush1.msra.mxu0 0.0
        %2293 = vmatprep.subr.mxu0 0.0
        %2294 = vmatpush1.msra.mxu0 0.0
        %2295 = vmatprep.subr.mxu0 0.0
        %2296 = vmatpush1.msra.mxu0 0.0
        %2297 = vmatprep.subr.mxu0 0.0
        %2298 = vmatpush1.msra.mxu0 0.0
        %2299 = vmatprep.subr.mxu0 0.0
        %2300 = vmatpush1.msra.mxu0 0.0
        %2301 = vmatprep.subr.mxu0 0.0
        %2302 = vmatpush1.msra.mxu0 0.0
        %2303 = vmatprep.subr.mxu0 0.0
        %2304 = vmatpush1.msra.mxu0 0.0
        %2305 = vmatprep.subr.mxu0 0.0
        %2306 = vmatpush1.msra.mxu0 0.0
        %2307 = vmatprep.subr.mxu0 0.0
        %2308 = vmatpush1.msra.mxu0 0.0
        %2309 = vmatprep.subr.mxu0 0.0
        %2310 = vmatpush1.msra.mxu0 0.0
        %2311 = vmatprep.subr.mxu0 0.0
        %2312 = vmatpush1.msra.mxu0 0.0
        %2313 = vmatprep.subr.mxu0 0.0
        %2314 = vmatpush1.msra.mxu0 0.0
        %2315 = vmatprep.subr.mxu0 0.0
        %2316 = vmatpush1.msra.mxu0 0.0
        %2317 = vmatprep.subr.mxu0 0.0
        %2318 = vmatpush1.msra.mxu0 0.0
        %2319 = vmatprep.subr.mxu0 0.0
        %2320 = vmatpush1.msra.mxu0 0.0
        %2321 = vmatprep.subr.mxu0 0.0
        %2322 = vmatpush1.msra.mxu0 0.0
        %2323 = vmatprep.subr.mxu0 0.0
        %2324 = vmatpush1.msra.mxu0 0.0
        %2325 = vmatprep.subr.mxu0 0.0
        %2326 = vmatpush1.msra.mxu0 0.0
        %2327 = vmatprep.mubr.f32.mxu0 0.0
        %2328 = vmatmul.mubr.f32.gmra.mrb[0].mxu0 %v2261
        %v2329 = vpop.f32.mrb[0].mxu0
        %v2330 = vadd.f32 %v2258, %v2329
        %v2331 = vpop.f32.mrb[0].mxu0
        %2332 = vdwg.mxu0
        %v2333 = vmul.f32 %v2330, 0.5
        %v2334 = vmul.f32 %v2330, 0.70710677
        %v2335 = verf.f32.pop %v2334
        %v2336 = vadd.f32 %v2335, 1.0
        %v2337 = vmul.f32 %v2333, %v2336
        %v2338 = vld [vmem:[%s13] sm:$0xff]
        %v2339 = vld [vmem:[%s13 + $0x8] sm:$0xff]
        %v2340 = vld [vmem:[%s13 + $0x10] sm:$0xff]
        %v2341 = vld [vmem:[%s13 + $0x18] sm:$0xff]
        %v2342 = vld [vmem:[%s13 + $0x20] sm:$0xff]
        %v2343 = vld [vmem:[%s13 + $0x28] sm:$0xff]
        %v2344 = vld [vmem:[%s13 + $0x30] sm:$0xff]
        %v2345 = vld [vmem:[%s13 + $0x38] sm:$0xff]
        %v2346 = vld [vmem:[%s13 + $0x40] sm:$0xff]
        %v2347 = vld [vmem:[%s13 + $0x48] sm:$0xff]
        %v2348 = vld [vmem:[%s13 + $0x50] sm:$0xff]
        %v2349 = vld [vmem:[%s13 + $0x58] sm:$0xff]
        %v2350 = vld [vmem:[%s13 + $0x60] sm:$0xff]
        %v2351 = vld [vmem:[%s13 + $0x68] sm:$0xff]
        %v2352 = vld [vmem:[%s13 + $0x70] sm:$0xff]
        %v2353 = vld [vmem:[%s13 + $0x78] sm:$0xff]
        %v2354 = vld [vmem:[%s14] sm:$0x1]
        %v2356 = vlaneseq
        %v2357 = vshrl.u32 %v2356, 7
        %v2358 = vsub.s32 0, %v2357
        %v2359 = vrot.slane %v2354, %v2358
        %2361 = vmatprep.subr.mxu0 0.0
        %2362 = vmatpush1.msra.mxu0 %v2338
        %2363 = vmatprep.subr.mxu0 0.0
        %2364 = vmatpush1.msra.mxu0 %v2339
        %2365 = vmatprep.subr.mxu0 0.0
        %2366 = vmatpush1.msra.mxu0 %v2340
        %2367 = vmatprep.subr.mxu0 0.0
        %2368 = vmatpush1.msra.mxu0 %v2341
        %2369 = vmatprep.subr.mxu0 0.0
        %2370 = vmatpush1.msra.mxu0 %v2342
        %2371 = vmatprep.subr.mxu0 0.0
        %2372 = vmatpush1.msra.mxu0 %v2343
        %2373 = vmatprep.subr.mxu0 0.0
        %2374 = vmatpush1.msra.mxu0 %v2344
        %2375 = vmatprep.subr.mxu0 0.0
        %2376 = vmatpush1.msra.mxu0 %v2345
        %2377 = vmatprep.subr.mxu0 0.0
        %2378 = vmatpush1.msra.mxu0 %v2346
        %2379 = vmatprep.subr.mxu0 0.0
        %2380 = vmatpush1.msra.mxu0 %v2347
        %2381 = vmatprep.subr.mxu0 0.0
        %2382 = vmatpush1.msra.mxu0 %v2348
        %2383 = vmatprep.subr.mxu0 0.0
        %2384 = vmatpush1.msra.mxu0 %v2349
        %2385 = vmatprep.subr.mxu0 0.0
        %2386 = vmatpush1.msra.mxu0 %v2350
        %2387 = vmatprep.subr.mxu0 0.0
        %2388 = vmatpush1.msra.mxu0 %v2351
        %2389 = vmatprep.subr.mxu0 0.0
        %2390 = vmatpush1.msra.mxu0 %v2352
        %2391 = vmatprep.subr.mxu0 0.0
        %2392 = vmatpush1.msra.mxu0 %v2353
        %2393 = vmatprep.subr.mxu0 0.0
        %2394 = vmatpush1.msra.mxu0 0.0
        %2395 = vmatprep.subr.mxu0 0.0
        %2396 = vmatpush1.msra.mxu0 0.0
        %2397 = vmatprep.subr.mxu0 0.0
        %2398 = vmatpush1.msra.mxu0 0.0
        %2399 = vmatprep.subr.mxu0 0.0
        %2400 = vmatpush1.msra.mxu0 0.0
        %2401 = vmatprep.subr.mxu0 0.0
        %2402 = vmatpush1.msra.mxu0 0.0
        %2403 = vmatprep.subr.mxu0 0.0
        %2404 = vmatpush1.msra.mxu0 0.0
        %2405 = vmatprep.subr.mxu0 0.0
        %2406 = vmatpush1.msra.mxu0 0.0
        %2407 = vmatprep.subr.mxu0 0.0
        %2408 = vmatpush1.msra.mxu0 0.0
        %2409 = vmatprep.subr.mxu0 0.0
        %2410 = vmatpush1.msra.mxu0 0.0
        %2411 = vmatprep.subr.mxu0 0.0
        %2412 = vmatpush1.msra.mxu0 0.0
        %2413 = vmatprep.subr.mxu0 0.0
        %2414 = vmatpush1.msra.mxu0 0.0
        %2415 = vmatprep.subr.mxu0 0.0
        %2416 = vmatpush1.msra.mxu0 0.0
        %2417 = vmatprep.subr.mxu0 0.0
        %2418 = vmatpush1.msra.mxu0 0.0
        %2419 = vmatprep.subr.mxu0 0.0
        %2420 = vmatpush1.msra.mxu0 0.0
        %2421 = vmatprep.subr.mxu0 0.0
        %2422 = vmatpush1.msra.mxu0 0.0
        %2423 = vmatprep.subr.mxu0 0.0
        %2424 = vmatpush1.msra.mxu0 0.0
        %2425 = vmatprep.mubr.f32.mxu0 0.0
        %2426 = vmatmul.mubr.f32.gmra.mrb[0].mxu0 %v2337
        %v2427 = vpop.f32.mrb[0].mxu0
        %v2428 = vadd.f32 %v2359, %v2427
        %v2429 = vpop.f32.mrb[0].mxu0
        %2430 = vdwg.mxu0
        %v2431 = vadd.f32 %v2219, %v2428
        %2432 = vst.msk [vmem:[%s563] sm:$0xff] %vm1053, %v2431
        %s2433 = sand.u32 %s384, 1
        %s2434 = scalar_lea.sflag [#allocation6], %s2433
        %s2435 = sand.u32 %s384, 1
        %s2436 = smul.addr %s2435, 8
        %s2437 = scalar_lea.vmem [#allocation9], %s2436
        // Predicated region
        $region93: #{tpu_custom_call.1} parent=79 // pred_check
          %p2438 = pneg %p394
        $region94: #{tpu_custom_call.1} parent=79 // pred_check_branch
          %2440 = sbr.rel (%p2438) target = $region96
        $region95: #{tpu_custom_call.1} parent=79 // pred_region
          %s2442 = ssub.s32 128, 128
          %2443 = vsyncadd %s2434, %s2442
          %s2444 = sadd.s32 %s40, %s39
          %s2445 = smul.addr %s2444, 128
          %s2446 = scalar_lea.hbm %s15, %s2445
          %s2448 = sshll.u32 %s2437, 4
          %s2449 = int_to_ptr.vmem [resolvable:$true] %s2448
          %2451 = dma.vmem_to_hbm [thread:$0]  %s2449, 128, %s2446, %s2434
        $region96: #{tpu_custom_call.1} parent=79 // pred_fallthru
          _
      $region80: #{tpu_custom_call.1} parent=5 // pred_fallthru
        _
      %p2452 = scmp.le.s32.totalorder 2, %s30
      // Predicated region
      $region97: #{tpu_custom_call.1} parent=5 // pred_check
        %p2453 = pneg %p2452
      $region98: #{tpu_custom_call.1} parent=5 // pred_check_branch
        %2455 = sbr.rel (%p2453) target = $region100
      $region99: #{tpu_custom_call.1} parent=5 // pred_region
        %s2456 = ssub.s32 %s30, 2
        // Predicated region
        $region101: #{tpu_custom_call.1} parent=99 // pred_check
          %p2457 = pneg %p400
        $region102: #{tpu_custom_call.1} parent=99 // pred_check_branch
          %2459 = sbr.rel (%p2457) target = $region104
        $region103: #{tpu_custom_call.1} parent=99 // pred_region
          %s2460 = sand.u32 %s385, 1
          %s2461 = scalar_lea.sflag [#allocation6], %s2460
          %s2462 = sand.u32 %s385, 1
          %s2463 = smul.addr %s2462, 8
          %s2464 = scalar_lea.vmem [#allocation9], %s2463
          %2465 = dma.done %s2461, 128
        $region104: #{tpu_custom_call.1} parent=99 // pred_fallthru
          _
      $region100: #{tpu_custom_call.1} parent=5 // pred_fallthru
        _
    $region6: #{tpu_custom_call.1} parent=1 // loop_footer
      %s34 = sadd.s32 1, %s30
    $region7: #{tpu_custom_call.1} parent=1 // loop_footer_branch
      %29 = sbr.rel target = $region3
    $region8: #{tpu_custom_call.1} parent=1 // loop_exit
      _
    %2466 = vsyncpa [#allocation5], 1
    %s2467 = scalar_lea.sflag [#allocation5], 1
    %2468 = vsyncpa %s2467, 1
    %2469 = vsyncpa [#allocation8], 1
    %s2470 = scalar_lea.sflag [#allocation8], 1
    %2471 = vsyncpa %s2470, 1
    %2472 = vsyncpa [#allocation6], 1
    %s2473 = scalar_lea.sflag [#allocation6], 1
    %2474 = vsyncpa %s2473, 1

// kernel: tpu_custom_call.1
$region0: #{tpu_custom_call.1}
  #allocation0 [shape = 'u32[]', space=smem, size = 0x4, offset = 0x4, fixed_abs, tag = 'smem constant byte address 0x4 - core index']
  #allocation1 [shape = 'u32[144,128]{1,0:T(1,128)}', space=vmem, size = 0x12000, scoped, tag = 'internal scratch']
  #allocation2 [shape = 'f32[4,8,8]{2,1,0:T(8,128)}', space=vmem, size = 0x4000, scoped, tag = 'scratch operand']
  #allocation3 [shape = 'f32[4,8,8]{2,1,0:T(8,128)}', space=vmem, size = 0x4000, scoped, tag = 'scratch operand']
  %s0 = inlined_call_operand.hbm [shape: f32[2,8,32], index: 0, kind: input, shape index: {}]
  %s1 = inlined_call_operand.hbm [shape: f32[2,8,32], index: 1, kind: input, shape index: {}]
  %s2 = inlined_call_operand.vmem [shape: f32[32,32], index: 2, kind: input, shape index: {}]
  %s3 = inlined_call_operand.vmem [shape: f32[32,32], index: 3, kind: input, shape index: {}]
  %s4 = inlined_call_operand.vmem [shape: f32[32,32], index: 4, kind: input, shape index: {}]
  %s5 = inlined_call_operand.vmem [shape: f32[32,32], index: 5, kind: input, shape index: {}]
  %s6 = inlined_call_operand.vmem [shape: f32[1,32], index: 6, kind: input, shape index: {}]
  %s7 = inlined_call_operand.vmem [shape: f32[1,32], index: 7, kind: input, shape index: {}]
  %s8 = inlined_call_operand.vmem [shape: f32[1,32], index: 8, kind: input, shape index: {}]
  %s9 = inlined_call_operand.vmem [shape: f32[1,32], index: 9, kind: input, shape index: {}]
  %s10 = inlined_call_operand.vmem [shape: f32[1,32], index: 10, kind: input, shape index: {}]
  %s11 = inlined_call_operand.vmem [shape: f32[32,128], index: 11, kind: input, shape index: {}]
  %s12 = inlined_call_operand.vmem [shape: f32[1,128], index: 12, kind: input, shape index: {}]
  %s13 = inlined_call_operand.vmem [shape: f32[128,32], index: 13, kind: input, shape index: {}]
  %s14 = inlined_call_operand.vmem [shape: f32[1,32], index: 14, kind: input, shape index: {}]
  %s15 = inlined_call_operand.hbm [shape: f32[2,8,32], index: 15, kind: output, shape index: {}]
  %s16 = sld [smem:[#allocation0]]
  $region105: #{tpu_custom_call.1} parent=0
    _
  %s18 = ssub.s32 1, %s16
  %s19 = scalar_select 0, %s18, %s16
  $region1: #{tpu_custom_call.1} parent=0
    #allocation4 [shape = 'u8[8192]{0}', space=vmem, size = 0x2000, scoped, tag = 'input window, operand 0']
    #allocation5 [shape = 's32[2]{0}', space=sflag, size = 0x8, scoped, tag = 'scoped memory for tpu_custom_call.1']
    #allocation6 [shape = 's32[2]{0}', space=sflag, size = 0x8, scoped, tag = 'scoped memory for tpu_custom_call.1']
    #allocation7 [shape = 'u8[8192]{0}', space=vmem, size = 0x2000, scoped, tag = 'input window, operand 1']
    #allocation8 [shape = 's32[2]{0}', space=sflag, size = 0x8, scoped, tag = 'scoped memory for tpu_custom_call.1']
    #allocation9 [shape = 'u8[8192]{0}', space=vmem, size = 0x2000, scoped, tag = 'output window, operand 0']
    %20 = vsyncpa [#allocation5], 0
    %s21 = scalar_lea.sflag [#allocation5], 1
    %22 = vsyncpa %s21, 0
    %23 = vsyncpa [#allocation8], 0
    %s24 = scalar_lea.sflag [#allocation8], 1
    %25 = vsyncpa %s24, 0
    %26 = vsyncpa [#allocation6], 0
    %s27 = scalar_lea.sflag [#allocation6], 1
    %28 = vsyncpa %s27, 0
    loop: start=0, step=1, limit=4
    $region2: #{tpu_custom_call.1} parent=1 // loop_pre_header
      _
    $region3: #{tpu_custom_call.1} parent=1 // loop_header
      %s30 = sphi 0, %s34
      %p31 = scmp.ge.s32.totalorder %s30, 4
      %s37 = sphi 0, %s49
      %s38 = sphi 0, %s45
      %s39 = sphi 0, %s37
      %s40 = sphi 0, %s38
      %s41 = sphi 0, %s39
      %s42 = sphi 0, %s40
      %s52 = sphi 0, %s54
      %s55 = sphi 0, %s52
      %s56 = sphi 0, %s55
      %s72 = sphi 0, %s56
      %s80 = sphi 0, %s82
      %s83 = sphi 0, %s80
      %s84 = sphi 0, %s83
      %s100 = sphi 0, %s84
      %s104 = sphi 0, %s104
      %s106 = sphi 0, %s104
      %s107 = sphi 0, %s106
      %s121 = sphi 0, %s107
      %s125 = sphi 0, %s125
      %s127 = sphi 0, %s125
      %s128 = sphi 0, %s127
      %s142 = sphi 0, %s128
      %s146 = sphi 0, %s146
      %s148 = sphi 0, %s146
      %s149 = sphi 0, %s148
      %s163 = sphi 0, %s149
      %s167 = sphi 0, %s167
      %s169 = sphi 0, %s167
      %s170 = sphi 0, %s169
      %s184 = sphi 0, %s170
      %s188 = sphi 0, %s188
      %s190 = sphi 0, %s188
      %s191 = sphi 0, %s190
      %s205 = sphi 0, %s191
      %s209 = sphi 0, %s209
      %s211 = sphi 0, %s209
      %s212 = sphi 0, %s211
      %s226 = sphi 0, %s212
      %s230 = sphi 0, %s230
      %s232 = sphi 0, %s230
      %s233 = sphi 0, %s232
      %s247 = sphi 0, %s233
      %s251 = sphi 0, %s251
      %s253 = sphi 0, %s251
      %s254 = sphi 0, %s253
      %s268 = sphi 0, %s254
      %s272 = sphi 0, %s272
      %s274 = sphi 0, %s272
      %s275 = sphi 0, %s274
      %s289 = sphi 0, %s275
      %s293 = sphi 0, %s293
      %s295 = sphi 0, %s293
      %s296 = sphi 0, %s295
      %s310 = sphi 0, %s296
      %s314 = sphi 0, %s314
      %s316 = sphi 0, %s314
      %s317 = sphi 0, %s316
      %s331 = sphi 0, %s317
      %s335 = sphi 0, %s335
      %s337 = sphi 0, %s335
      %s338 = sphi 0, %s337
      %s352 = sphi 0, %s338
      %s356 = sphi 0, %s356
      %s358 = sphi 0, %s356
      %s359 = sphi 0, %s358
      %s373 = sphi 0, %s359
      %s381 = sphi 0, %s383
      %s384 = sphi 0, %s381
      %s385 = sphi 0, %s384
      %s401 = sphi 0, %s385
    $region4: #{tpu_custom_call.1} parent=1 // loop_header_branch
      %33 = sbr.rel (%p31) target = $region8
    $region5: #{tpu_custom_call.1} parent=1 // loop_body
      %s35 = ssub.s32 %s30, 1
      %s36 = ssub.s32 %s30, 2
      %s43 = sadd.s32 1, %s38
      %p44 = scmp.ge.s32.totalorder %s43, 1
      %s45 = scalar_select %p44, 0, %s43
      %s46 = sadd.s32 1, %s37
      %s47 = scalar_select %p44, %s46, %s37
      %p48 = scmp.ge.s32.totalorder %s47, 2
      %s49 = scalar_select %p48, 0, %s47
      %s50 = ssub.s32 %s37, %s49
      %p51 = scmp.eq.s32.totalorder %s50, 0
      %s53 = sadd.s32 %s52, 1
      %s54 = scalar_select %p51, %s52, %s53
      %p57 = pneg %p51
      %p58 = scmp.eq.s32.totalorder %s30, 1
      %p59 = por %p57, %p58
      %p60 = scmp.ne.s32.totalorder %s52, %s55
      %p61 = scmp.eq.s32.totalorder %s30, 0
      %p62 = por %p60, %p61
      %p63 = scmp.ne.s32.totalorder %s52, %s55
      %p64 = scmp.eq.s32.totalorder %s35, 1
      %p65 = por %p63, %p64
      %p66 = scmp.ne.s32.totalorder %s55, %s56
      %p67 = scmp.eq.s32.totalorder %s35, 0
      %p68 = por %p66, %p67
      %p69 = scmp.ne.s32.totalorder %s55, %s56
      %p70 = scmp.eq.s32.totalorder %s36, 1
      %p71 = por %p69, %p70
      %p73 = scmp.ne.s32.totalorder %s56, %s72
      %p74 = scmp.eq.s32.totalorder %s36, 0
      %p75 = por %p73, %p74
      %s76 = ssub.s32 %s37, %s49
      %s77 = ssub.s32 %s38, %s45
      %s78 = sor.u32 %s76, %s77
      %p79 = scmp.eq.s32.totalorder %s78, 0
      %s81 = sadd.s32 %s80, 1
      %s82 = scalar_select %p79, %s80, %s81
      %p85 = pneg %p79
      %p86 = scmp.eq.s32.totalorder %s30, 1
      %p87 = por %p85, %p86
      %p88 = scmp.ne.s32.totalorder %s80, %s83
      %p89 = scmp.eq.s32.totalorder %s30, 0
      %p90 = por %p88, %p89
      %p91 = scmp.ne.s32.totalorder %s80, %s83
      %p92 = scmp.eq.s32.totalorder %s35, 1
      %p93 = por %p91, %p92
      %p94 = scmp.ne.s32.totalorder %s83, %s84
      %p95 = scmp.eq.s32.totalorder %s35, 0
      %p96 = por %p94, %p95
      %p97 = scmp.ne.s32.totalorder %s83, %s84
      %p98 = scmp.eq.s32.totalorder %s36, 1
      %p99 = por %p97, %p98
      %p101 = scmp.ne.s32.totalorder %s84, %s100
      %p102 = scmp.eq.s32.totalorder %s36, 0
      %p103 = por %p101, %p102
      %s105 = sadd.s32 %s104, 1
      %p108 = scmp.eq.s32.totalorder %s30, 1
      %p109 = scmp.ne.s32.totalorder %s104, %s106
      %p110 = scmp.eq.s32.totalorder %s30, 0
      %p111 = por %p109, %p110
      %p112 = scmp.ne.s32.totalorder %s104, %s106
      %p113 = scmp.eq.s32.totalorder %s35, 1
      %p114 = por %p112, %p113
      %p115 = scmp.ne.s32.totalorder %s106, %s107
      %p116 = scmp.eq.s32.totalorder %s35, 0
      %p117 = por %p115, %p116
      %p118 = scmp.ne.s32.totalorder %s106, %s107
      %p119 = scmp.eq.s32.totalorder %s36, 1
      %p120 = por %p118, %p119
      %p122 = scmp.ne.s32.totalorder %s107, %s121
      %p123 = scmp.eq.s32.totalorder %s36, 0
      %p124 = por %p122, %p123
      %s126 = sadd.s32 %s125, 1
      %p129 = scmp.eq.s32.totalorder %s30, 1
      %p130 = scmp.ne.s32.totalorder %s125, %s127
      %p131 = scmp.eq.s32.totalorder %s30, 0
      %p132 = por %p130, %p131
      %p133 = scmp.ne.s32.totalorder %s125, %s127
      %p134 = scmp.eq.s32.totalorder %s35, 1
      %p135 = por %p133, %p134
      %p136 = scmp.ne.s32.totalorder %s127, %s128
      %p137 = scmp.eq.s32.totalorder %s35, 0
      %p138 = por %p136, %p137
      %p139 = scmp.ne.s32.totalorder %s127, %s128
      %p140 = scmp.eq.s32.totalorder %s36, 1
      %p141 = por %p139, %p140
      %p143 = scmp.ne.s32.totalorder %s128, %s142
      %p144 = scmp.eq.s32.totalorder %s36, 0
      %p145 = por %p143, %p144
      %s147 = sadd.s32 %s146, 1
      %p150 = scmp.eq.s32.totalorder %s30, 1
      %p151 = scmp.ne.s32.totalorder %s146, %s148
      %p152 = scmp.eq.s32.totalorder %s30, 0
      %p153 = por %p151, %p152
      %p154 = scmp.ne.s32.totalorder %s146, %s148
      %p155 = scmp.eq.s32.totalorder %s35, 1
      %p156 = por %p154, %p155
      %p157 = scmp.ne.s32.totalorder %s148, %s149
      %p158 = scmp.eq.s32.totalorder %s35, 0
      %p159 = por %p157, %p158
      %p160 = scmp.ne.s32.totalorder %s148, %s149
      %p161 = scmp.eq.s32.totalorder %s36, 1
      %p162 = por %p160, %p161
      %p164 = scmp.ne.s32.totalorder %s149, %s163
      %p165 = scmp.eq.s32.totalorder %s36, 0
      %p166 = por %p164, %p165
      %s168 = sadd.s32 %s167, 1
      %p171 = scmp.eq.s32.totalorder %s30, 1
      %p172 = scmp.ne.s32.totalorder %s167, %s169
      %p173 = scmp.eq.s32.totalorder %s30, 0
      %p174 = por %p172, %p173
      %p175 = scmp.ne.s32.totalorder %s167, %s169
      %p176 = scmp.eq.s32.totalorder %s35, 1
      %p177 = por %p175, %p176
      %p178 = scmp.ne.s32.totalorder %s169, %s170
      %p179 = scmp.eq.s32.totalorder %s35, 0
      %p180 = por %p178, %p179
      %p181 = scmp.ne.s32.totalorder %s169, %s170
      %p182 = scmp.eq.s32.totalorder %s36, 1
      %p183 = por %p181, %p182
      %p185 = scmp.ne.s32.totalorder %s170, %s184
      %p186 = scmp.eq.s32.totalorder %s36, 0
      %p187 = por %p185, %p186
      %s189 = sadd.s32 %s188, 1
      %p192 = scmp.eq.s32.totalorder %s30, 1
      %p193 = scmp.ne.s32.totalorder %s188, %s190
      %p194 = scmp.eq.s32.totalorder %s30, 0
      %p195 = por %p193, %p194
      %p196 = scmp.ne.s32.totalorder %s188, %s190
      %p197 = scmp.eq.s32.totalorder %s35, 1
      %p198 = por %p196, %p197
      %p199 = scmp.ne.s32.totalorder %s190, %s191
      %p200 = scmp.eq.s32.totalorder %s35, 0
      %p201 = por %p199, %p200
      %p202 = scmp.ne.s32.totalorder %s190, %s191
      %p203 = scmp.eq.s32.totalorder %s36, 1
      %p204 = por %p202, %p203
      %p206 = scmp.ne.s32.totalorder %s191, %s205
      %p207 = scmp.eq.s32.totalorder %s36, 0
      %p208 = por %p206, %p207
      %s210 = sadd.s32 %s209, 1
      %p213 = scmp.eq.s32.totalorder %s30, 1
      %p214 = scmp.ne.s32.totalorder %s209, %s211
      %p215 = scmp.eq.s32.totalorder %s30, 0
      %p216 = por %p214, %p215
      %p217 = scmp.ne.s32.totalorder %s209, %s211
      %p218 = scmp.eq.s32.totalorder %s35, 1
      %p219 = por %p217, %p218
      %p220 = scmp.ne.s32.totalorder %s211, %s212
      %p221 = scmp.eq.s32.totalorder %s35, 0
      %p222 = por %p220, %p221
      %p223 = scmp.ne.s32.totalorder %s211, %s212
      %p224 = scmp.eq.s32.totalorder %s36, 1
      %p225 = por %p223, %p224
      %p227 = scmp.ne.s32.totalorder %s212, %s226
      %p228 = scmp.eq.s32.totalorder %s36, 0
      %p229 = por %p227, %p228
      %s231 = sadd.s32 %s230, 1
      %p234 = scmp.eq.s32.totalorder %s30, 1
      %p235 = scmp.ne.s32.totalorder %s230, %s232
      %p236 = scmp.eq.s32.totalorder %s30, 0
      %p237 = por %p235, %p236
      %p238 = scmp.ne.s32.totalorder %s230, %s232
      %p239 = scmp.eq.s32.totalorder %s35, 1
      %p240 = por %p238, %p239
      %p241 = scmp.ne.s32.totalorder %s232, %s233
      %p242 = scmp.eq.s32.totalorder %s35, 0
      %p243 = por %p241, %p242
      %p244 = scmp.ne.s32.totalorder %s232, %s233
      %p245 = scmp.eq.s32.totalorder %s36, 1
      %p246 = por %p244, %p245
      %p248 = scmp.ne.s32.totalorder %s233, %s247
      %p249 = scmp.eq.s32.totalorder %s36, 0
      %p250 = por %p248, %p249
      %s252 = sadd.s32 %s251, 1
      %p255 = scmp.eq.s32.totalorder %s30, 1
      %p256 = scmp.ne.s32.totalorder %s251, %s253
      %p257 = scmp.eq.s32.totalorder %s30, 0
      %p258 = por %p256, %p257
      %p259 = scmp.ne.s32.totalorder %s251, %s253
      %p260 = scmp.eq.s32.totalorder %s35, 1
      %p261 = por %p259, %p260
      %p262 = scmp.ne.s32.totalorder %s253, %s254
      %p263 = scmp.eq.s32.totalorder %s35, 0
      %p264 = por %p262, %p263
      %p265 = scmp.ne.s32.totalorder %s253, %s254
      %p266 = scmp.eq.s32.totalorder %s36, 1
      %p267 = por %p265, %p266
      %p269 = scmp.ne.s32.totalorder %s254, %s268
      %p270 = scmp.eq.s32.totalorder %s36, 0
      %p271 = por %p269, %p270
      %s273 = sadd.s32 %s272, 1
      %p276 = scmp.eq.s32.totalorder %s30, 1
      %p277 = scmp.ne.s32.totalorder %s272, %s274
      %p278 = scmp.eq.s32.totalorder %s30, 0
      %p279 = por %p277, %p278
      %p280 = scmp.ne.s32.totalorder %s272, %s274
      %p281 = scmp.eq.s32.totalorder %s35, 1
      %p282 = por %p280, %p281
      %p283 = scmp.ne.s32.totalorder %s274, %s275
      %p284 = scmp.eq.s32.totalorder %s35, 0
      %p285 = por %p283, %p284
      %p286 = scmp.ne.s32.totalorder %s274, %s275
      %p287 = scmp.eq.s32.totalorder %s36, 1
      %p288 = por %p286, %p287
      %p290 = scmp.ne.s32.totalorder %s275, %s289
      %p291 = scmp.eq.s32.totalorder %s36, 0
      %p292 = por %p290, %p291
      %s294 = sadd.s32 %s293, 1
      %p297 = scmp.eq.s32.totalorder %s30, 1
      %p298 = scmp.ne.s32.totalorder %s293, %s295
      %p299 = scmp.eq.s32.totalorder %s30, 0
      %p300 = por %p298, %p299
      %p301 = scmp.ne.s32.totalorder %s293, %s295
      %p302 = scmp.eq.s32.totalorder %s35, 1
      %p303 = por %p301, %p302
      %p304 = scmp.ne.s32.totalorder %s295, %s296
      %p305 = scmp.eq.s32.totalorder %s35, 0
      %p306 = por %p304, %p305
      %p307 = scmp.ne.s32.totalorder %s295, %s296
      %p308 = scmp.eq.s32.totalorder %s36, 1
      %p309 = por %p307, %p308
      %p311 = scmp.ne.s32.totalorder %s296, %s310
      %p312 = scmp.eq.s32.totalorder %s36, 0
      %p313 = por %p311, %p312
      %s315 = sadd.s32 %s314, 1
      %p318 = scmp.eq.s32.totalorder %s30, 1
      %p319 = scmp.ne.s32.totalorder %s314, %s316
      %p320 = scmp.eq.s32.totalorder %s30, 0
      %p321 = por %p319, %p320
      %p322 = scmp.ne.s32.totalorder %s314, %s316
      %p323 = scmp.eq.s32.totalorder %s35, 1
      %p324 = por %p322, %p323
      %p325 = scmp.ne.s32.totalorder %s316, %s317
      %p326 = scmp.eq.s32.totalorder %s35, 0
      %p327 = por %p325, %p326
      %p328 = scmp.ne.s32.totalorder %s316, %s317
      %p329 = scmp.eq.s32.totalorder %s36, 1
      %p330 = por %p328, %p329
      %p332 = scmp.ne.s32.totalorder %s317, %s331
      %p333 = scmp.eq.s32.totalorder %s36, 0
      %p334 = por %p332, %p333
      %s336 = sadd.s32 %s335, 1
      %p339 = scmp.eq.s32.totalorder %s30, 1
      %p340 = scmp.ne.s32.totalorder %s335, %s337
      %p341 = scmp.eq.s32.totalorder %s30, 0
      %p342 = por %p340, %p341
      %p343 = scmp.ne.s32.totalorder %s335, %s337
      %p344 = scmp.eq.s32.totalorder %s35, 1
      %p345 = por %p343, %p344
      %p346 = scmp.ne.s32.totalorder %s337, %s338
      %p347 = scmp.eq.s32.totalorder %s35, 0
      %p348 = por %p346, %p347
      %p349 = scmp.ne.s32.totalorder %s337, %s338
      %p350 = scmp.eq.s32.totalorder %s36, 1
      %p351 = por %p349, %p350
      %p353 = scmp.ne.s32.totalorder %s338, %s352
      %p354 = scmp.eq.s32.totalorder %s36, 0
      %p355 = por %p353, %p354
      %s357 = sadd.s32 %s356, 1
      %p360 = scmp.eq.s32.totalorder %s30, 1
      %p361 = scmp.ne.s32.totalorder %s356, %s358
      %p362 = scmp.eq.s32.totalorder %s30, 0
      %p363 = por %p361, %p362
      %p364 = scmp.ne.s32.totalorder %s356, %s358
      %p365 = scmp.eq.s32.totalorder %s35, 1
      %p366 = por %p364, %p365
      %p367 = scmp.ne.s32.totalorder %s358, %s359
      %p368 = scmp.eq.s32.totalorder %s35, 0
      %p369 = por %p367, %p368
      %p370 = scmp.ne.s32.totalorder %s358, %s359
      %p371 = scmp.eq.s32.totalorder %s36, 1
      %p372 = por %p370, %p371
      %p374 = scmp.ne.s32.totalorder %s359, %s373
      %p375 = scmp.eq.s32.totalorder %s36, 0
      %p376 = por %p374, %p375
      %s377 = ssub.s32 %s37, %s49
      %s378 = ssub.s32 %s38, %s45
      %s379 = sor.u32 %s377, %s378
      %p380 = scmp.eq.s32.totalorder %s379, 0
      %s382 = sadd.s32 %s381, 1
      %s383 = scalar_select %p380, %s381, %s382
      %p386 = pneg %p380
      %p387 = scmp.eq.s32.totalorder %s30, 1
      %p388 = por %p386, %p387
      %p389 = scmp.ne.s32.totalorder %s381, %s384
      %p390 = scmp.eq.s32.totalorder %s30, 0
      %p391 = por %p389, %p390
      %p392 = scmp.ne.s32.totalorder %s381, %s384
      %p393 = scmp.eq.s32.totalorder %s35, 1
      %p394 = por %p392, %p393
      %p395 = scmp.ne.s32.totalorder %s384, %s385
      %p396 = scmp.eq.s32.totalorder %s35, 0
      %p397 = por %p395, %p396
      %p398 = scmp.ne.s32.totalorder %s384, %s385
      %p399 = scmp.eq.s32.totalorder %s36, 1
      %p400 = por %p398, %p399
      %p402 = scmp.ne.s32.totalorder %s385, %s401
      %p403 = scmp.eq.s32.totalorder %s36, 0
      %p404 = por %p402, %p403
      %p405 = scmp.le.s32.totalorder 1, %s30
      %p406 = scmp.lt.s32.totalorder %s30, 3
      %p407 = pnand %p405, %p406
      %p408 = pneg %p407
      // Predicated region
      $region9: #{tpu_custom_call.1} parent=5 // pred_check
        _
      $region10: #{tpu_custom_call.1} parent=5 // pred_check_branch
        %410 = sbr.rel (%p407) target = $region12
      $region11: #{tpu_custom_call.1} parent=5 // pred_region
        %s411 = ssub.s32 %s30, 1
        // Predicated region
        $region13: #{tpu_custom_call.1} parent=11 // pred_check
          %p412 = pneg %p117
        $region14: #{tpu_custom_call.1} parent=11 // pred_check_branch
          %414 = sbr.rel (%p412) target = $region16
        $region15: #{tpu_custom_call.1} parent=11 // pred_region
          _
        $region16: #{tpu_custom_call.1} parent=11 // pred_fallthru
          _
        // Predicated region
        $region17: #{tpu_custom_call.1} parent=11 // pred_check
          %p415 = pneg %p138
        $region18: #{tpu_custom_call.1} parent=11 // pred_check_branch
          %417 = sbr.rel (%p415) target = $region20
        $region19: #{tpu_custom_call.1} parent=11 // pred_region
          _
        $region20: #{tpu_custom_call.1} parent=11 // pred_fallthru
          _
        // Predicated region
        $region21: #{tpu_custom_call.1} parent=11 // pred_check
          %p418 = pneg %p159
        $region22: #{tpu_custom_call.1} parent=11 // pred_check_branch
          %420 = sbr.rel (%p418) target = $region24
        $region23: #{tpu_custom_call.1} parent=11 // pred_region
          _
        $region24: #{tpu_custom_call.1} parent=11 // pred_fallthru
          _
        // Predicated region
        $region25: #{tpu_custom_call.1} parent=11 // pred_check
          %p421 = pneg %p180
        $region26: #{tpu_custom_call.1} parent=11 // pred_check_branch
          %423 = sbr.rel (%p421) target = $region28
        $region27: #{tpu_custom_call.1} parent=11 // pred_region
          _
        $region28: #{tpu_custom_call.1} parent=11 // pred_fallthru
          _
        // Predicated region
        $region29: #{tpu_custom_call.1} parent=11 // pred_check
          %p424 = pneg %p201
        $region30: #{tpu_custom_call.1} parent=11 // pred_check_branch
          %426 = sbr.rel (%p424) target = $region32
        $region31: #{tpu_custom_call.1} parent=11 // pred_region
          _
        $region32: #{tpu_custom_call.1} parent=11 // pred_fallthru
          _
        // Predicated region
        $region33: #{tpu_custom_call.1} parent=11 // pred_check
          %p427 = pneg %p222
        $region34: #{tpu_custom_call.1} parent=11 // pred_check_branch
          %429 = sbr.rel (%p427) target = $region36
        $region35: #{tpu_custom_call.1} parent=11 // pred_region
          _
        $region36: #{tpu_custom_call.1} parent=11 // pred_fallthru
          _
        // Predicated region
        $region37: #{tpu_custom_call.1} parent=11 // pred_check
          %p430 = pneg %p243
        $region38: #{tpu_custom_call.1} parent=11 // pred_check_branch
          %432 = sbr.rel (%p430) target = $region40
        $region39: #{tpu_custom_call.1} parent=11 // pred_region
          _
        $region40: #{tpu_custom_call.1} parent=11 // pred_fallthru
          _
        // Predicated region
        $region41: #{tpu_custom_call.1} parent=11 // pred_check
          %p433 = pneg %p264
        $region42: #{tpu_custom_call.1} parent=11 // pred_check_branch
          %435 = sbr.rel (%p433) target = $region44
        $region43: #{tpu_custom_call.1} parent=11 // pred_region
          _
        $region44: #{tpu_custom_call.1} parent=11 // pred_fallthru
          _
        // Predicated region
        $region45: #{tpu_custom_call.1} parent=11 // pred_check
          %p436 = pneg %p285
        $region46: #{tpu_custom_call.1} parent=11 // pred_check_branch
          %438 = sbr.rel (%p436) target = $region48
        $region47: #{tpu_custom_call.1} parent=11 // pred_region
          _
        $region48: #{tpu_custom_call.1} parent=11 // pred_fallthru
          _
        // Predicated region
        $region49: #{tpu_custom_call.1} parent=11 // pred_check
          %p439 = pneg %p306
        $region50: #{tpu_custom_call.1} parent=11 // pred_check_branch
          %441 = sbr.rel (%p439) target = $region52
        $region51: #{tpu_custom_call.1} parent=11 // pred_region
          _
        $region52: #{tpu_custom_call.1} parent=11 // pred_fallthru
          _
        // Predicated region
        $region53: #{tpu_custom_call.1} parent=11 // pred_check
          %p442 = pneg %p327
        $region54: #{tpu_custom_call.1} parent=11 // pred_check_branch
          %444 = sbr.rel (%p442) target = $region56
        $region55: #{tpu_custom_call.1} parent=11 // pred_region
          _
        $region56: #{tpu_custom_call.1} parent=11 // pred_fallthru
          _
        // Predicated region
        $region57: #{tpu_custom_call.1} parent=11 // pred_check
          %p445 = pneg %p348
        $region58: #{tpu_custom_call.1} parent=11 // pred_check_branch
          %447 = sbr.rel (%p445) target = $region60
        $region59: #{tpu_custom_call.1} parent=11 // pred_region
          _
        $region60: #{tpu_custom_call.1} parent=11 // pred_fallthru
          _
        // Predicated region
        $region61: #{tpu_custom_call.1} parent=11 // pred_check
          %p448 = pneg %p369
        $region62: #{tpu_custom_call.1} parent=11 // pred_check_branch
          %450 = sbr.rel (%p448) target = $region64
        $region63: #{tpu_custom_call.1} parent=11 // pred_region
          _
        $region64: #{tpu_custom_call.1} parent=11 // pred_fallthru
          _
      $region12: #{tpu_custom_call.1} parent=5 // pred_fallthru
        _
      %p451 = scmp.lt.s32.totalorder %s30, 2
      // Predicated region
      $region65: #{tpu_custom_call.1} parent=5 // pred_check
        %p452 = pneg %p451
      $region66: #{tpu_custom_call.1} parent=5 // pred_check_branch
        %454 = sbr.rel (%p452) target = $region68
      $region67: #{tpu_custom_call.1} parent=5 // pred_region
        // Predicated region
        $region69: #{tpu_custom_call.1} parent=67 // pred_check
          %p455 = pneg %p62
        $region70: #{tpu_custom_call.1} parent=67 // pred_check_branch
          %457 = sbr.rel (%p455) target = $region72
        $region71: #{tpu_custom_call.1} parent=67 // pred_region
          %s458 = sand.u32 %s52, 1
          %s459 = scalar_lea.sflag [#allocation5], %s458
          %s460 = sand.u32 %s52, 1
          %s461 = smul.addr %s460, 8
          %s462 = scalar_lea.vmem [#allocation4], %s461
          %s464 = ssub.s32 128, 128
          %465 = vsyncadd %s459, %s464
          %s466 = smul.addr %s37, 128
          %s467 = scalar_lea.hbm %s0, %s466
          %s469 = sshll.u32 %s462, 4
          %s470 = int_to_ptr.vmem [resolvable:$true] %s469
          %472 = dma.hbm_to_vmem [thread:$0]  %s467, 128, %s470, %s459
        $region72: #{tpu_custom_call.1} parent=67 // pred_fallthru
          _
        // Predicated region
        $region73: #{tpu_custom_call.1} parent=67 // pred_check
          %p473 = pneg %p90
        $region74: #{tpu_custom_call.1} parent=67 // pred_check_branch
          %475 = sbr.rel (%p473) target = $region76
        $region75: #{tpu_custom_call.1} parent=67 // pred_region
          %s476 = sand.u32 %s80, 1
          %s477 = scalar_lea.sflag [#allocation8], %s476
          %s478 = sand.u32 %s80, 1
          %s479 = smul.addr %s478, 8
          %s480 = scalar_lea.vmem [#allocation7], %s479
          %s482 = ssub.s32 128, 128
          %483 = vsyncadd %s477, %s482
          %s484 = sadd.s32 %s38, %s37
          %s485 = smul.addr %s484, 128
          %s486 = scalar_lea.hbm %s1, %s485
          %s488 = sshll.u32 %s480, 4
          %s489 = int_to_ptr.vmem [resolvable:$true] %s488
          %491 = dma.hbm_to_vmem [thread:$0]  %s486, 128, %s489, %s477
        $region76: #{tpu_custom_call.1} parent=67 // pred_fallthru
          _
      $region68: #{tpu_custom_call.1} parent=5 // pred_fallthru
        _
      %p492 = scmp.le.s32.totalorder 1, %s30
      %p493 = scmp.lt.s32.totalorder %s30, 3
      %p494 = pnand %p492, %p493
      %p495 = pneg %p494
      // Predicated region
      $region77: #{tpu_custom_call.1} parent=5 // pred_check
        _
      $region78: #{tpu_custom_call.1} parent=5 // pred_check_branch
        %497 = sbr.rel (%p494) target = $region80
      $region79: #{tpu_custom_call.1} parent=5 // pred_region
        %s498 = ssub.s32 %s30, 1
        %s499 = sand.u32 %s55, 1
        %s500 = scalar_lea.sflag [#allocation5], %s499
        %s501 = sand.u32 %s55, 1
        %s502 = smul.addr %s501, 8
        %s503 = scalar_lea.vmem [#allocation4], %s502
        // Predicated region
        $region81: #{tpu_custom_call.1} parent=79 // pred_check
          %p504 = pneg %p68
        $region82: #{tpu_custom_call.1} parent=79 // pred_check_branch
          %506 = sbr.rel (%p504) target = $region84
        $region83: #{tpu_custom_call.1} parent=79 // pred_region
          %507 = dma.done %s500, 128
        $region84: #{tpu_custom_call.1} parent=79 // pred_fallthru
          _
        %s508 = sand.u32 %s83, 1
        %s509 = scalar_lea.sflag [#allocation8], %s508
        %s510 = sand.u32 %s83, 1
        %s511 = smul.addr %s510, 8
        %s512 = scalar_lea.vmem [#allocation7], %s511
        // Predicated region
        $region85: #{tpu_custom_call.1} parent=79 // pred_check
          %p513 = pneg %p96
        $region86: #{tpu_custom_call.1} parent=79 // pred_check_branch
          %515 = sbr.rel (%p513) target = $region88
        $region87: #{tpu_custom_call.1} parent=79 // pred_region
          %516 = dma.done %s509, 128
        $region88: #{tpu_custom_call.1} parent=79 // pred_fallthru
          _
        %s517 = sand.u32 %s55, 1
        %s518 = scalar_lea.sflag [#allocation5], %s517
        %s519 = sand.u32 %s55, 1
        %s520 = smul.addr %s519, 8
        %s521 = scalar_lea.vmem [#allocation4], %s520
        %p522 = pneg %p68
        %p523 = pneg %p65
        %s524 = sand.u32 %s83, 1
        %s525 = scalar_lea.sflag [#allocation8], %s524
        %s526 = sand.u32 %s83, 1
        %s527 = smul.addr %s526, 8
        %s528 = scalar_lea.vmem [#allocation7], %s527
        %p529 = pneg %p96
        %p530 = pneg %p93
        %p531 = pneg %p117
        %p532 = pneg %p114
        %p533 = pneg %p138
        %p534 = pneg %p135
        %p535 = pneg %p159
        %p536 = pneg %p156
        %p537 = pneg %p180
        %p538 = pneg %p177
        %p539 = pneg %p201
        %p540 = pneg %p198
        %p541 = pneg %p222
        %p542 = pneg %p219
        %p543 = pneg %p243
        %p544 = pneg %p240
        %p545 = pneg %p264
        %p546 = pneg %p261
        %p547 = pneg %p285
        %p548 = pneg %p282
        %p549 = pneg %p306
        %p550 = pneg %p303
        %p551 = pneg %p327
        %p552 = pneg %p324
        %p553 = pneg %p348
        %p554 = pneg %p345
        %p555 = pneg %p369
        %p556 = pneg %p366
        %p557 = pneg %p397
        %p558 = pneg %p394
        %s559 = sand.u32 %s384, 1
        %s560 = scalar_lea.sflag [#allocation6], %s559
        %s561 = sand.u32 %s384, 1
        %s562 = smul.addr %s561, 8
        %s563 = scalar_lea.vmem [#allocation9], %s562
        %v564 = vld [vmem:[%s7] sm:$0x1]
        %v565 = vld [vmem:[%s8] sm:$0x1]
        %p566 = scmp.eq.s32.totalorder %s40, 0
        // Predicated region
        $region89: #{tpu_custom_call.1} parent=79 // pred_check
          %p567 = pneg %p566
        $region90: #{tpu_custom_call.1} parent=79 // pred_check_branch
          %569 = sbr.rel (%p567) target = $region92
        $region91: #{tpu_custom_call.1} parent=79 // pred_region
          %v570 = vld [vmem:[%s503] sm:$0xff]
          %vm571 = vcmask 261120
          %v572 = vsel %vm571, %v570, 0.0
          %573 = vadd.xlane.f32.xlu0 %v572
          %v574 = vpop.xlane.xlu0 %573
          %v575 = vrcp.pop 32.0
          %v576 = vmul.f32 %v574, %v575
          %v577 = vsub.f32 %v570, %v576
          %v578 = vmul.f32 %v577, %v577
          %v579 = vsel %vm571, %v578, 0.0
          %580 = vadd.xlane.f32.xlu0 %v579
          %v581 = vpop.xlane.xlu0 %580
          %v582 = vmul.f32 %v581, %v575
          %v583 = vadd.f32 %v582, 1e-05
          %v584 = vrsqrt.pop %v583
          %v585 = vmul.f32 %v577, %v584
          %v587 = vlaneseq
          %v588 = vshrl.u32 %v587, 7
          %v589 = vsub.s32 0, %v588
          %v590 = vrot.slane %v564, %v589
          %v592 = vmul.f32 %v585, %v590
          %v594 = vlaneseq
          %v595 = vshrl.u32 %v594, 7
          %v596 = vsub.s32 0, %v595
          %v597 = vrot.slane %v565, %v596
          %v599 = vadd.f32 %v592, %v597
          %v600 = vld [vmem:[%s3] sm:$0xff]
          %v601 = vld [vmem:[%s3 + $0x8] sm:$0xff]
          %v602 = vld [vmem:[%s3 + $0x10] sm:$0xff]
          %v603 = vld [vmem:[%s3 + $0x18] sm:$0xff]
          %v605 = vsel %vm571, %v599, 0
          %607 = vmatprep.subr.mxu0 0.0
          %608 = vmatpush1.msra.mxu0 %v600
          %609 = vmatprep.subr.mxu0 0.0
          %610 = vmatpush1.msra.mxu0 %v601
          %611 = vmatprep.subr.mxu0 0.0
          %612 = vmatpush1.msra.mxu0 %v602
          %613 = vmatprep.subr.mxu0 0.0
          %614 = vmatpush1.msra.mxu0 %v603
          %615 = vmatprep.subr.mxu0 0.0
          %616 = vmatpush1.msra.mxu0 0.0
          %617 = vmatprep.subr.mxu0 0.0
          %618 = vmatpush1.msra.mxu0 0.0
          %619 = vmatprep.subr.mxu0 0.0
          %620 = vmatpush1.msra.mxu0 0.0
          %621 = vmatprep.subr.mxu0 0.0
          %622 = vmatpush1.msra.mxu0 0.0
          %623 = vmatprep.subr.mxu0 0.0
          %624 = vmatpush1.msra.mxu0 0.0
          %625 = vmatprep.subr.mxu0 0.0
          %626 = vmatpush1.msra.mxu0 0.0
          %627 = vmatprep.subr.mxu0 0.0
          %628 = vmatpush1.msra.mxu0 0.0
          %629 = vmatprep.subr.mxu0 0.0
          %630 = vmatpush1.msra.mxu0 0.0
          %631 = vmatprep.subr.mxu0 0.0
          %632 = vmatpush1.msra.mxu0 0.0
          %633 = vmatprep.subr.mxu0 0.0
          %634 = vmatpush1.msra.mxu0 0.0
          %635 = vmatprep.subr.mxu0 0.0
          %636 = vmatpush1.msra.mxu0 0.0
          %637 = vmatprep.subr.mxu0 0.0
          %638 = vmatpush1.msra.mxu0 0.0
          %639 = vmatprep.subr.mxu0 0.0
          %640 = vmatpush1.msra.mxu0 0.0
          %641 = vmatprep.subr.mxu0 0.0
          %642 = vmatpush1.msra.mxu0 0.0
          %643 = vmatprep.subr.mxu0 0.0
          %644 = vmatpush1.msra.mxu0 0.0
          %645 = vmatprep.subr.mxu0 0.0
          %646 = vmatpush1.msra.mxu0 0.0
          %647 = vmatprep.subr.mxu0 0.0
          %648 = vmatpush1.msra.mxu0 0.0
          %649 = vmatprep.subr.mxu0 0.0
          %650 = vmatpush1.msra.mxu0 0.0
          %651 = vmatprep.subr.mxu0 0.0
          %652 = vmatpush1.msra.mxu0 0.0
          %653 = vmatprep.subr.mxu0 0.0
          %654 = vmatpush1.msra.mxu0 0.0
          %655 = vmatprep.subr.mxu0 0.0
          %656 = vmatpush1.msra.mxu0 0.0
          %657 = vmatprep.subr.mxu0 0.0
          %658 = vmatpush1.msra.mxu0 0.0
          %659 = vmatprep.subr.mxu0 0.0
          %660 = vmatpush1.msra.mxu0 0.0
          %661 = vmatprep.subr.mxu0 0.0
          %662 = vmatpush1.msra.mxu0 0.0
          %663 = vmatprep.subr.mxu0 0.0
          %664 = vmatpush1.msra.mxu0 0.0
          %665 = vmatprep.subr.mxu0 0.0
          %666 = vmatpush1.msra.mxu0 0.0
          %667 = vmatprep.subr.mxu0 0.0
          %668 = vmatpush1.msra.mxu0 0.0
          %669 = vmatprep.subr.mxu0 0.0
          %670 = vmatpush1.msra.mxu0 0.0
          %671 = vmatprep.mubr.f32.mxu0 0.0
          %672 = vmatmul.mubr.f32.gmra.mrb[0].mxu0 %v605
          %v673 = vpop.f32.mrb[0].mxu0
          %v674 = vadd.f32 0.0, %v673
          %v675 = vpop.f32.mrb[0].mxu0
          %676 = vdwg.mxu0
          %v677 = vld [vmem:[%s4] sm:$0xff]
          %v678 = vld [vmem:[%s4 + $0x8] sm:$0xff]
          %v679 = vld [vmem:[%s4 + $0x10] sm:$0xff]
          %v680 = vld [vmem:[%s4 + $0x18] sm:$0xff]
          %681 = vmatprep.subr.mxu0 0.0
          %682 = vmatpush1.msra.mxu0 %v677
          %683 = vmatprep.subr.mxu0 0.0
          %684 = vmatpush1.msra.mxu0 %v678
          %685 = vmatprep.subr.mxu0 0.0
          %686 = vmatpush1.msra.mxu0 %v679
          %687 = vmatprep.subr.mxu0 0.0
          %688 = vmatpush1.msra.mxu0 %v680
          %689 = vmatprep.subr.mxu0 0.0
          %690 = vmatpush1.msra.mxu0 0.0
          %691 = vmatprep.subr.mxu0 0.0
          %692 = vmatpush1.msra.mxu0 0.0
          %693 = vmatprep.subr.mxu0 0.0
          %694 = vmatpush1.msra.mxu0 0.0
          %695 = vmatprep.subr.mxu0 0.0
          %696 = vmatpush1.msra.mxu0 0.0
          %697 = vmatprep.subr.mxu0 0.0
          %698 = vmatpush1.msra.mxu0 0.0
          %699 = vmatprep.subr.mxu0 0.0
          %700 = vmatpush1.msra.mxu0 0.0
          %701 = vmatprep.subr.mxu0 0.0
          %702 = vmatpush1.msra.mxu0 0.0
          %703 = vmatprep.subr.mxu0 0.0
          %704 = vmatpush1.msra.mxu0 0.0
          %705 = vmatprep.subr.mxu0 0.0
          %706 = vmatpush1.msra.mxu0 0.0
          %707 = vmatprep.subr.mxu0 0.0
          %708 = vmatpush1.msra.mxu0 0.0
          %709 = vmatprep.subr.mxu0 0.0
          %710 = vmatpush1.msra.mxu0 0.0
          %711 = vmatprep.subr.mxu0 0.0
          %712 = vmatpush1.msra.mxu0 0.0
          %713 = vmatprep.subr.mxu0 0.0
          %714 = vmatpush1.msra.mxu0 0.0
          %715 = vmatprep.subr.mxu0 0.0
          %716 = vmatpush1.msra.mxu0 0.0
          %717 = vmatprep.subr.mxu0 0.0
          %718 = vmatpush1.msra.mxu0 0.0
          %719 = vmatprep.subr.mxu0 0.0
          %720 = vmatpush1.msra.mxu0 0.0
          %721 = vmatprep.subr.mxu0 0.0
          %722 = vmatpush1.msra.mxu0 0.0
          %723 = vmatprep.subr.mxu0 0.0
          %724 = vmatpush1.msra.mxu0 0.0
          %725 = vmatprep.subr.mxu0 0.0
          %726 = vmatpush1.msra.mxu0 0.0
          %727 = vmatprep.subr.mxu0 0.0
          %728 = vmatpush1.msra.mxu0 0.0
          %729 = vmatprep.subr.mxu0 0.0
          %730 = vmatpush1.msra.mxu0 0.0
          %731 = vmatprep.subr.mxu0 0.0
          %732 = vmatpush1.msra.mxu0 0.0
          %733 = vmatprep.subr.mxu0 0.0
          %734 = vmatpush1.msra.mxu0 0.0
          %735 = vmatprep.subr.mxu0 0.0
          %736 = vmatpush1.msra.mxu0 0.0
          %737 = vmatprep.subr.mxu0 0.0
          %738 = vmatpush1.msra.mxu0 0.0
          %739 = vmatprep.subr.mxu0 0.0
          %740 = vmatpush1.msra.mxu0 0.0
          %741 = vmatprep.subr.mxu0 0.0
          %742 = vmatpush1.msra.mxu0 0.0
          %743 = vmatprep.subr.mxu0 0.0
          %744 = vmatpush1.msra.mxu0 0.0
          %745 = vmatprep.mubr.f32.mxu0 0.0
          %746 = vmatmul.mubr.f32.gmra.mrb[0].mxu0 %v605
          %v747 = vpop.f32.mrb[0].mxu0
          %v748 = vadd.f32 0.0, %v747
          %v749 = vpop.f32.mrb[0].mxu0
          %750 = vdwg.mxu0
          %752 = vrot.lane.b32.xlu0 %v674, 120
          %v753 = vpop.permute.xlu0 %752
          %755 = vrot.lane.b32.xlu0 %v674, 112
          %v756 = vpop.permute.xlu0 %755
          %758 = vrot.lane.b32.xlu0 %v674, 104
          %v759 = vpop.permute.xlu0 %758
          %v761 = vcombine.low %v674, %v756
          %v762 = vcombine.high %v674, %v756
          %v764 = vunpack.c.l.s4 1983009808
          %v765 = vunpack.c.0.s8 %v764
          %v766 = vlaneseq
          %v767 = vshrl.u32 %v766, 7
          %v768 = vsub.s32 %v765, %v767
          %v769 = vrot.slane %v761, %v768
          %v771 = vunpack.c.l.s4 1983009808
          %v772 = vunpack.c.0.s8 %v771
          %v773 = vlaneseq
          %v774 = vshrl.u32 %v773, 7
          %v775 = vsub.s32 %v772, %v774
          %v776 = vrot.slane %v762, %v775
          %v777 = vcombine.low %v753, %v759
          %v778 = vcombine.high %v753, %v759
          %v780 = vunpack.c.l.s4 1983009808
          %v781 = vunpack.c.0.s8 %v780
          %v782 = vlaneseq
          %v783 = vshrl.u32 %v782, 7
          %v784 = vsub.s32 %v781, %v783
          %v785 = vrot.slane %v777, %v784
          %v787 = vunpack.c.l.s4 1983009808
          %v788 = vunpack.c.0.s8 %v787
          %v789 = vlaneseq
          %v790 = vshrl.u32 %v789, 7
          %v791 = vsub.s32 %v788, %v790
          %v792 = vrot.slane %v778, %v791
          %v793 = vcombine.low %v769, %v785
          %v794 = vcombine.high %v769, %v785
          %v796 = vunpack.c.l.s4 1934713408
          %v797 = vunpack.c.0.s8 %v796
          %v798 = vlaneseq
          %v799 = vshrl.u32 %v798, 7
          %v800 = vsub.s32 %v797, %v799
          %v801 = vrot.slane %v793, %v800
          %v803 = vunpack.c.l.s4 1934713408
          %v804 = vunpack.c.0.s8 %v803
          %v805 = vlaneseq
          %v806 = vshrl.u32 %v805, 7
          %v807 = vsub.s32 %v804, %v806
          %v808 = vrot.slane %v794, %v807
          %v809 = vcombine.low %v776, %v792
          %v810 = vcombine.high %v776, %v792
          %v812 = vunpack.c.l.s4 1934713408
          %v813 = vunpack.c.0.s8 %v812
          %v814 = vlaneseq
          %v815 = vshrl.u32 %v814, 7
          %v816 = vsub.s32 %v813, %v815
          %v817 = vrot.slane %v809, %v816
          %v819 = vunpack.c.l.s4 1934713408
          %v820 = vunpack.c.0.s8 %v819
          %v821 = vlaneseq
          %v822 = vshrl.u32 %v821, 7
          %v823 = vsub.s32 %v820, %v822
          %v824 = vrot.slane %v810, %v823
          %v825 = vcombine.high %v801, 0.0
          %v826 = vcombine.high %v808, 0.0
          %v827 = vcombine.high %v817, 0.0
          %v828 = vcombine.high %v824, 0.0
          %v829 = vcombine.low %v801, %v808
          %v831 = vunpack.c.l.s4 1983009808
          %v832 = vunpack.c.0.s8 %v831
          %v833 = vlaneseq
          %v834 = vshrl.u32 %v833, 7
          %v835 = vsub.s32 %v832, %v834
          %v836 = vrot.slane %v829, %v835
          %v837 = vcombine.low %v825, %v826
          %v839 = vunpack.c.l.s4 1983009808
          %v840 = vunpack.c.0.s8 %v839
          %v841 = vlaneseq
          %v842 = vshrl.u32 %v841, 7
          %v843 = vsub.s32 %v840, %v842
          %v844 = vrot.slane %v837, %v843
          %v845 = vcombine.low %v817, %v824
          %v847 = vunpack.c.l.s4 1983009808
          %v848 = vunpack.c.0.s8 %v847
          %v849 = vlaneseq
          %v850 = vshrl.u32 %v849, 7
          %v851 = vsub.s32 %v848, %v850
          %v852 = vrot.slane %v845, %v851
          %v853 = vcombine.low %v827, %v828
          %v855 = vunpack.c.l.s4 1983009808
          %v856 = vunpack.c.0.s8 %v855
          %v857 = vlaneseq
          %v858 = vshrl.u32 %v857, 7
          %v859 = vsub.s32 %v856, %v858
          %v860 = vrot.slane %v853, %v859
          %v861 = vcombine.low %v836, %v844
          %v862 = vcombine.high %v836, %v844
          %v864 = vunpack.c.l.s4 1934713408
          %v865 = vunpack.c.0.s8 %v864
          %v866 = vlaneseq
          %v867 = vshrl.u32 %v866, 7
          %v868 = vsub.s32 %v865, %v867
          %v869 = vrot.slane %v861, %v868
          %v871 = vunpack.c.l.s4 1934713408
          %v872 = vunpack.c.0.s8 %v871
          %v873 = vlaneseq
          %v874 = vshrl.u32 %v873, 7
          %v875 = vsub.s32 %v872, %v874
          %v876 = vrot.slane %v862, %v875
          %v877 = vcombine.low %v852, %v860
          %v878 = vcombine.high %v852, %v860
          %v880 = vunpack.c.l.s4 1934713408
          %v881 = vunpack.c.0.s8 %v880
          %v882 = vlaneseq
          %v883 = vshrl.u32 %v882, 7
          %v884 = vsub.s32 %v881, %v883
          %v885 = vrot.slane %v877, %v884
          %v887 = vunpack.c.l.s4 1934713408
          %v888 = vunpack.c.0.s8 %v887
          %v889 = vlaneseq
          %v890 = vshrl.u32 %v889, 7
          %v891 = vsub.s32 %v888, %v890
          %v892 = vrot.slane %v878, %v891
          %v893 = vcombine.low %v869, %v885
          %v894 = vcombine.high %v869, %v885
          %v895 = vcombine.low %v876, %v892
          %v896 = vcombine.high %v876, %v892
          %vm897 = vcmask 64512
          %898 = vst.msk [vmem:[#allocation2] sm:$0xff] %vm897, %v893
          %899 = vst.msk [vmem:[#allocation2 + $0x8] sm:$0xff] %vm897, %v894
          %900 = vst.msk [vmem:[#allocation2 + $0x10] sm:$0xff] %vm897, %v895
          %901 = vst.msk [vmem:[#allocation2 + $0x18] sm:$0xff] %vm897, %v896
          %903 = vrot.lane.b32.xlu0 %v748, 120
          %v904 = vpop.permute.xlu0 %903
          %906 = vrot.lane.b32.xlu0 %v748, 112
          %v907 = vpop.permute.xlu0 %906
          %909 = vrot.lane.b32.xlu0 %v748, 104
          %v910 = vpop.permute.xlu0 %909
          %v912 = vcombine.low %v748, %v907
          %v913 = vcombine.high %v748, %v907
          %v915 = vunpack.c.l.s4 1983009808
          %v916 = vunpack.c.0.s8 %v915
          %v917 = vlaneseq
          %v918 = vshrl.u32 %v917, 7
          %v919 = vsub.s32 %v916, %v918
          %v920 = vrot.slane %v912, %v919
          %v922 = vunpack.c.l.s4 1983009808
          %v923 = vunpack.c.0.s8 %v922
          %v924 = vlaneseq
          %v925 = vshrl.u32 %v924, 7
          %v926 = vsub.s32 %v923, %v925
          %v927 = vrot.slane %v913, %v926
          %v928 = vcombine.low %v904, %v910
          %v929 = vcombine.high %v904, %v910
          %v931 = vunpack.c.l.s4 1983009808
          %v932 = vunpack.c.0.s8 %v931
          %v933 = vlaneseq
          %v934 = vshrl.u32 %v933, 7
          %v935 = vsub.s32 %v932, %v934
          %v936 = vrot.slane %v928, %v935
          %v938 = vunpack.c.l.s4 1983009808
          %v939 = vunpack.c.0.s8 %v938
          %v940 = vlaneseq
          %v941 = vshrl.u32 %v940, 7
          %v942 = vsub.s32 %v939, %v941
          %v943 = vrot.slane %v929, %v942
          %v944 = vcombine.low %v920, %v936
          %v945 = vcombine.high %v920, %v936
          %v947 = vunpack.c.l.s4 1934713408
          %v948 = vunpack.c.0.s8 %v947
          %v949 = vlaneseq
          %v950 = vshrl.u32 %v949, 7
          %v951 = vsub.s32 %v948, %v950
          %v952 = vrot.slane %v944, %v951
          %v954 = vunpack.c.l.s4 1934713408
          %v955 = vunpack.c.0.s8 %v954
          %v956 = vlaneseq
          %v957 = vshrl.u32 %v956, 7
          %v958 = vsub.s32 %v955, %v957
          %v959 = vrot.slane %v945, %v958
          %v960 = vcombine.low %v927, %v943
          %v961 = vcombine.high %v927, %v943
          %v963 = vunpack.c.l.s4 1934713408
          %v964 = vunpack.c.0.s8 %v963
          %v965 = vlaneseq
          %v966 = vshrl.u32 %v965, 7
          %v967 = vsub.s32 %v964, %v966
          %v968 = vrot.slane %v960, %v967
          %v970 = vunpack.c.l.s4 1934713408
          %v971 = vunpack.c.0.s8 %v970
          %v972 = vlaneseq
          %v973 = vshrl.u32 %v972, 7
          %v974 = vsub.s32 %v971, %v973
          %v975 = vrot.slane %v961, %v974
          %v976 = vcombine.high %v952, 0.0
          %v977 = vcombine.high %v959, 0.0
          %v978 = vcombine.high %v968, 0.0
          %v979 = vcombine.high %v975, 0.0
          %v980 = vcombine.low %v952, %v959
          %v982 = vunpack.c.l.s4 1983009808
          %v983 = vunpack.c.0.s8 %v982
          %v984 = vlaneseq
          %v985 = vshrl.u32 %v984, 7
          %v986 = vsub.s32 %v983, %v985
          %v987 = vrot.slane %v980, %v986
          %v988 = vcombine.low %v976, %v977
          %v990 = vunpack.c.l.s4 1983009808
          %v991 = vunpack.c.0.s8 %v990
          %v992 = vlaneseq
          %v993 = vshrl.u32 %v992, 7
          %v994 = vsub.s32 %v991, %v993
          %v995 = vrot.slane %v988, %v994
          %v996 = vcombine.low %v968, %v975
          %v998 = vunpack.c.l.s4 1983009808
          %v999 = vunpack.c.0.s8 %v998
          %v1000 = vlaneseq
          %v1001 = vshrl.u32 %v1000, 7
          %v1002 = vsub.s32 %v999, %v1001
          %v1003 = vrot.slane %v996, %v1002
          %v1004 = vcombine.low %v978, %v979
          %v1006 = vunpack.c.l.s4 1983009808
          %v1007 = vunpack.c.0.s8 %v1006
          %v1008 = vlaneseq
          %v1009 = vshrl.u32 %v1008, 7
          %v1010 = vsub.s32 %v1007, %v1009
          %v1011 = vrot.slane %v1004, %v1010
          %v1012 = vcombine.low %v987, %v995
          %v1013 = vcombine.high %v987, %v995
          %v1015 = vunpack.c.l.s4 1934713408
          %v1016 = vunpack.c.0.s8 %v1015
          %v1017 = vlaneseq
          %v1018 = vshrl.u32 %v1017, 7
          %v1019 = vsub.s32 %v1016, %v1018
          %v1020 = vrot.slane %v1012, %v1019
          %v1022 = vunpack.c.l.s4 1934713408
          %v1023 = vunpack.c.0.s8 %v1022
          %v1024 = vlaneseq
          %v1025 = vshrl.u32 %v1024, 7
          %v1026 = vsub.s32 %v1023, %v1025
          %v1027 = vrot.slane %v1013, %v1026
          %v1028 = vcombine.low %v1003, %v1011
          %v1029 = vcombine.high %v1003, %v1011
          %v1031 = vunpack.c.l.s4 1934713408
          %v1032 = vunpack.c.0.s8 %v1031
          %v1033 = vlaneseq
          %v1034 = vshrl.u32 %v1033, 7
          %v1035 = vsub.s32 %v1032, %v1034
          %v1036 = vrot.slane %v1028, %v1035
          %v1038 = vunpack.c.l.s4 1934713408
          %v1039 = vunpack.c.0.s8 %v1038
          %v1040 = vlaneseq
          %v1041 = vshrl.u32 %v1040, 7
          %v1042 = vsub.s32 %v1039, %v1041
          %v1043 = vrot.slane %v1029, %v1042
          %v1044 = vcombine.low %v1020, %v1036
          %v1045 = vcombine.high %v1020, %v1036
          %v1046 = vcombine.low %v1027, %v1043
          %v1047 = vcombine.high %v1027, %v1043
          %1048 = vst.msk [vmem:[#allocation3] sm:$0xff] %vm897, %v1044
          %1049 = vst.msk [vmem:[#allocation3 + $0x8] sm:$0xff] %vm897, %v1045
          %1050 = vst.msk [vmem:[#allocation3 + $0x10] sm:$0xff] %vm897, %v1046
          %1051 = vst.msk [vmem:[#allocation3 + $0x18] sm:$0xff] %vm897, %v1047
        $region92: #{tpu_custom_call.1} parent=79 // pred_fallthru
          _
        %v1052 = vld [vmem:[%s512] sm:$0xff]
        %vm1053 = vcmask 261120
        %v1054 = vsel %vm1053, %v1052, 0.0
        %1055 = vadd.xlane.f32.xlu0 %v1054
        %v1056 = vpop.xlane.xlu0 %1055
        %v1057 = vrcp.pop 32.0
        %v1058 = vmul.f32 %v1056, %v1057
        %v1059 = vsub.f32 %v1052, %v1058
        %v1060 = vmul.f32 %v1059, %v1059
        %v1061 = vsel %vm1053, %v1060, 0.0
        %1062 = vadd.xlane.f32.xlu0 %v1061
        %v1063 = vpop.xlane.xlu0 %1062
        %v1064 = vmul.f32 %v1063, %v1057
        %v1065 = vadd.f32 %v1064, 1e-05
        %v1066 = vrsqrt.pop %v1065
        %v1067 = vmul.f32 %v1059, %v1066
        %v1069 = vlaneseq
        %v1070 = vshrl.u32 %v1069, 7
        %v1071 = vsub.s32 0, %v1070
        %v1072 = vrot.slane %v564, %v1071
        %v1074 = vmul.f32 %v1067, %v1072
        %v1076 = vlaneseq
        %v1077 = vshrl.u32 %v1076, 7
        %v1078 = vsub.s32 0, %v1077
        %v1079 = vrot.slane %v565, %v1078
        %v1081 = vadd.f32 %v1074, %v1079
        %v1082 = vld [vmem:[%s2] sm:$0xff]
        %v1083 = vld [vmem:[%s2 + $0x8] sm:$0xff]
        %v1084 = vld [vmem:[%s2 + $0x10] sm:$0xff]
        %v1085 = vld [vmem:[%s2 + $0x18] sm:$0xff]
        %v1087 = vsel %vm1053, %v1081, 0
        %1089 = vmatprep.subr.mxu0 0.0
        %1090 = vmatpush1.msra.mxu0 %v1082
        %1091 = vmatprep.subr.mxu0 0.0
        %1092 = vmatpush1.msra.mxu0 %v1083
        %1093 = vmatprep.subr.mxu0 0.0
        %1094 = vmatpush1.msra.mxu0 %v1084
        %1095 = vmatprep.subr.mxu0 0.0
        %1096 = vmatpush1.msra.mxu0 %v1085
        %1097 = vmatprep.subr.mxu0 0.0
        %1098 = vmatpush1.msra.mxu0 0.0
        %1099 = vmatprep.subr.mxu0 0.0
        %1100 = vmatpush1.msra.mxu0 0.0
        %1101 = vmatprep.subr.mxu0 0.0
        %1102 = vmatpush1.msra.mxu0 0.0
        %1103 = vmatprep.subr.mxu0 0.0
        %1104 = vmatpush1.msra.mxu0 0.0
        %1105 = vmatprep.subr.mxu0 0.0
        %1106 = vmatpush1.msra.mxu0 0.0
        %1107 = vmatprep.subr.mxu0 0.0
        %1108 = vmatpush1.msra.mxu0 0.0
        %1109 = vmatprep.subr.mxu0 0.0
        %1110 = vmatpush1.msra.mxu0 0.0
        %1111 = vmatprep.subr.mxu0 0.0
        %1112 = vmatpush1.msra.mxu0 0.0
        %1113 = vmatprep.subr.mxu0 0.0
        %1114 = vmatpush1.msra.mxu0 0.0
        %1115 = vmatprep.subr.mxu0 0.0
        %1116 = vmatpush1.msra.mxu0 0.0
        %1117 = vmatprep.subr.mxu0 0.0
        %1118 = vmatpush1.msra.mxu0 0.0
        %1119 = vmatprep.subr.mxu0 0.0
        %1120 = vmatpush1.msra.mxu0 0.0
        %1121 = vmatprep.subr.mxu0 0.0
        %1122 = vmatpush1.msra.mxu0 0.0
        %1123 = vmatprep.subr.mxu0 0.0
        %1124 = vmatpush1.msra.mxu0 0.0
        %1125 = vmatprep.subr.mxu0 0.0
        %1126 = vmatpush1.msra.mxu0 0.0
        %1127 = vmatprep.subr.mxu0 0.0
        %1128 = vmatpush1.msra.mxu0 0.0
        %1129 = vmatprep.subr.mxu0 0.0
        %1130 = vmatpush1.msra.mxu0 0.0
        %1131 = vmatprep.subr.mxu0 0.0
        %1132 = vmatpush1.msra.mxu0 0.0
        %1133 = vmatprep.subr.mxu0 0.0
        %1134 = vmatpush1.msra.mxu0 0.0
        %1135 = vmatprep.subr.mxu0 0.0
        %1136 = vmatpush1.msra.mxu0 0.0
        %1137 = vmatprep.subr.mxu0 0.0
        %1138 = vmatpush1.msra.mxu0 0.0
        %1139 = vmatprep.subr.mxu0 0.0
        %1140 = vmatpush1.msra.mxu0 0.0
        %1141 = vmatprep.subr.mxu0 0.0
        %1142 = vmatpush1.msra.mxu0 0.0
        %1143 = vmatprep.subr.mxu0 0.0
        %1144 = vmatpush1.msra.mxu0 0.0
        %1145 = vmatprep.subr.mxu0 0.0
        %1146 = vmatpush1.msra.mxu0 0.0
        %1147 = vmatprep.subr.mxu0 0.0
        %1148 = vmatpush1.msra.mxu0 0.0
        %1149 = vmatprep.subr.mxu0 0.0
        %1150 = vmatpush1.msra.mxu0 0.0
        %1151 = vmatprep.subr.mxu0 0.0
        %1152 = vmatpush1.msra.mxu0 0.0
        %1153 = vmatprep.mubr.f32.mxu0 0.0
        %1154 = vmatmul.mubr.f32.gmra.mrb[0].mxu0 %v1087
        %v1155 = vpop.f32.mrb[0].mxu0
        %v1156 = vadd.f32 0.0, %v1155
        %v1157 = vpop.f32.mrb[0].mxu0
        %1158 = vdwg.mxu0
        %1160 = vrot.lane.b32.xlu0 %v1156, 120
        %v1161 = vpop.permute.xlu0 %1160
        %1163 = vrot.lane.b32.xlu0 %v1156, 112
        %v1164 = vpop.permute.xlu0 %1163
        %1166 = vrot.lane.b32.xlu0 %v1156, 104
        %v1167 = vpop.permute.xlu0 %1166
        %v1169 = vcombine.low %v1156, %v1164
        %v1170 = vcombine.high %v1156, %v1164
        %v1172 = vunpack.c.l.s4 1983009808
        %v1173 = vunpack.c.0.s8 %v1172
        %v1174 = vlaneseq
        %v1175 = vshrl.u32 %v1174, 7
        %v1176 = vsub.s32 %v1173, %v1175
        %v1177 = vrot.slane %v1169, %v1176
        %v1179 = vunpack.c.l.s4 1983009808
        %v1180 = vunpack.c.0.s8 %v1179
        %v1181 = vlaneseq
        %v1182 = vshrl.u32 %v1181, 7
        %v1183 = vsub.s32 %v1180, %v1182
        %v1184 = vrot.slane %v1170, %v1183
        %v1185 = vcombine.low %v1161, %v1167
        %v1186 = vcombine.high %v1161, %v1167
        %v1188 = vunpack.c.l.s4 1983009808
        %v1189 = vunpack.c.0.s8 %v1188
        %v1190 = vlaneseq
        %v1191 = vshrl.u32 %v1190, 7
        %v1192 = vsub.s32 %v1189, %v1191
        %v1193 = vrot.slane %v1185, %v1192
        %v1195 = vunpack.c.l.s4 1983009808
        %v1196 = vunpack.c.0.s8 %v1195
        %v1197 = vlaneseq
        %v1198 = vshrl.u32 %v1197, 7
        %v1199 = vsub.s32 %v1196, %v1198
        %v1200 = vrot.slane %v1186, %v1199
        %v1201 = vcombine.low %v1177, %v1193
        %v1202 = vcombine.high %v1177, %v1193
        %v1204 = vunpack.c.l.s4 1934713408
        %v1205 = vunpack.c.0.s8 %v1204
        %v1206 = vlaneseq
        %v1207 = vshrl.u32 %v1206, 7
        %v1208 = vsub.s32 %v1205, %v1207
        %v1209 = vrot.slane %v1201, %v1208
        %v1211 = vunpack.c.l.s4 1934713408
        %v1212 = vunpack.c.0.s8 %v1211
        %v1213 = vlaneseq
        %v1214 = vshrl.u32 %v1213, 7
        %v1215 = vsub.s32 %v1212, %v1214
        %v1216 = vrot.slane %v1202, %v1215
        %v1217 = vcombine.low %v1184, %v1200
        %v1218 = vcombine.high %v1184, %v1200
        %v1220 = vunpack.c.l.s4 1934713408
        %v1221 = vunpack.c.0.s8 %v1220
        %v1222 = vlaneseq
        %v1223 = vshrl.u32 %v1222, 7
        %v1224 = vsub.s32 %v1221, %v1223
        %v1225 = vrot.slane %v1217, %v1224
        %v1227 = vunpack.c.l.s4 1934713408
        %v1228 = vunpack.c.0.s8 %v1227
        %v1229 = vlaneseq
        %v1230 = vshrl.u32 %v1229, 7
        %v1231 = vsub.s32 %v1228, %v1230
        %v1232 = vrot.slane %v1218, %v1231
        %v1233 = vcombine.high %v1209, 0.0
        %v1234 = vcombine.high %v1216, 0.0
        %v1235 = vcombine.high %v1225, 0.0
        %v1236 = vcombine.high %v1232, 0.0
        %v1237 = vcombine.low %v1209, %v1216
        %v1239 = vunpack.c.l.s4 1983009808
        %v1240 = vunpack.c.0.s8 %v1239
        %v1241 = vlaneseq
        %v1242 = vshrl.u32 %v1241, 7
        %v1243 = vsub.s32 %v1240, %v1242
        %v1244 = vrot.slane %v1237, %v1243
        %v1245 = vcombine.low %v1233, %v1234
        %v1247 = vunpack.c.l.s4 1983009808
        %v1248 = vunpack.c.0.s8 %v1247
        %v1249 = vlaneseq
        %v1250 = vshrl.u32 %v1249, 7
        %v1251 = vsub.s32 %v1248, %v1250
        %v1252 = vrot.slane %v1245, %v1251
        %v1253 = vcombine.low %v1225, %v1232
        %v1255 = vunpack.c.l.s4 1983009808
        %v1256 = vunpack.c.0.s8 %v1255
        %v1257 = vlaneseq
        %v1258 = vshrl.u32 %v1257, 7
        %v1259 = vsub.s32 %v1256, %v1258
        %v1260 = vrot.slane %v1253, %v1259
        %v1261 = vcombine.low %v1235, %v1236
        %v1263 = vunpack.c.l.s4 1983009808
        %v1264 = vunpack.c.0.s8 %v1263
        %v1265 = vlaneseq
        %v1266 = vshrl.u32 %v1265, 7
        %v1267 = vsub.s32 %v1264, %v1266
        %v1268 = vrot.slane %v1261, %v1267
        %v1269 = vcombine.low %v1244, %v1252
        %v1270 = vcombine.high %v1244, %v1252
        %v1272 = vunpack.c.l.s4 1934713408
        %v1273 = vunpack.c.0.s8 %v1272
        %v1274 = vlaneseq
        %v1275 = vshrl.u32 %v1274, 7
        %v1276 = vsub.s32 %v1273, %v1275
        %v1277 = vrot.slane %v1269, %v1276
        %v1279 = vunpack.c.l.s4 1934713408
        %v1280 = vunpack.c.0.s8 %v1279
        %v1281 = vlaneseq
        %v1282 = vshrl.u32 %v1281, 7
        %v1283 = vsub.s32 %v1280, %v1282
        %v1284 = vrot.slane %v1270, %v1283
        %v1285 = vcombine.low %v1260, %v1268
        %v1286 = vcombine.high %v1260, %v1268
        %v1288 = vunpack.c.l.s4 1934713408
        %v1289 = vunpack.c.0.s8 %v1288
        %v1290 = vlaneseq
        %v1291 = vshrl.u32 %v1290, 7
        %v1292 = vsub.s32 %v1289, %v1291
        %v1293 = vrot.slane %v1285, %v1292
        %v1295 = vunpack.c.l.s4 1934713408
        %v1296 = vunpack.c.0.s8 %v1295
        %v1297 = vlaneseq
        %v1298 = vshrl.u32 %v1297, 7
        %v1299 = vsub.s32 %v1296, %v1298
        %v1300 = vrot.slane %v1286, %v1299
        %v1301 = vcombine.low %v1277, %v1293
        %v1302 = vcombine.high %v1277, %v1293
        %v1303 = vcombine.low %v1284, %v1300
        %v1304 = vcombine.high %v1284, %v1300
        %v1305 = vld [vmem:[#allocation2] sm:$0xff]
        %v1306 = vld [vmem:[#allocation2 + $0x8] sm:$0xff]
        %v1307 = vld [vmem:[#allocation2 + $0x10] sm:$0xff]
        %v1308 = vld [vmem:[#allocation2 + $0x18] sm:$0xff]
        %v1309 = vld [vmem:[#allocation3] sm:$0xff]
        %v1310 = vld [vmem:[#allocation3 + $0x8] sm:$0xff]
        %v1311 = vld [vmem:[#allocation3 + $0x10] sm:$0xff]
        %v1312 = vld [vmem:[#allocation3 + $0x18] sm:$0xff]
        %vm1313 = vcmask 64512
        %v1315 = vsel %vm1313, %v1301, 0
        %v1318 = vsel %vm1313, %v1305, 0
        %1320 = vmatprep.subr.mxu0 0.0
        %1321 = vmatpush1.xpose.msra.mxu0 %v1318
        %1322 = vmatprep.subr.mxu0 0.0
        %1323 = vmatpush1.xpose.msra.mxu0 0.0
        %1324 = vmatprep.subr.mxu0 0.0
        %1325 = vmatpush1.xpose.msra.mxu0 0.0
        %1326 = vmatprep.subr.mxu0 0.0
        %1327 = vmatpush1.xpose.msra.mxu0 0.0
        %1328 = vmatprep.subr.mxu0 0.0
        %1329 = vmatpush1.xpose.msra.mxu0 0.0
        %1330 = vmatprep.subr.mxu0 0.0
        %1331 = vmatpush1.xpose.msra.mxu0 0.0
        %1332 = vmatprep.subr.mxu0 0.0
        %1333 = vmatpush1.xpose.msra.mxu0 0.0
        %1334 = vmatprep.subr.mxu0 0.0
        %1335 = vmatpush1.xpose.msra.mxu0 0.0
        %1336 = vmatprep.subr.mxu0 0.0
        %1337 = vmatpush1.xpose.msra.mxu0 0.0
        %1338 = vmatprep.subr.mxu0 0.0
        %1339 = vmatpush1.xpose.msra.mxu0 0.0
        %1340 = vmatprep.subr.mxu0 0.0
        %1341 = vmatpush1.xpose.msra.mxu0 0.0
        %1342 = vmatprep.subr.mxu0 0.0
        %1343 = vmatpush1.xpose.msra.mxu0 0.0
        %1344 = vmatprep.subr.mxu0 0.0
        %1345 = vmatpush1.xpose.msra.mxu0 0.0
        %1346 = vmatprep.subr.mxu0 0.0
        %1347 = vmatpush1.xpose.msra.mxu0 0.0
        %1348 = vmatprep.subr.mxu0 0.0
        %1349 = vmatpush1.xpose.msra.mxu0 0.0
        %1350 = vmatprep.subr.mxu0 0.0
        %1351 = vmatpush1.xpose.msra.mxu0 0.0
        %1352 = vmatprep.subr.mxu0 0.0
        %1353 = vmatpush1.xpose.msra.mxu0 0.0
        %1354 = vmatprep.subr.mxu0 0.0
        %1355 = vmatpush1.xpose.msra.mxu0 0.0
        %1356 = vmatprep.subr.mxu0 0.0
        %1357 = vmatpush1.xpose.msra.mxu0 0.0
        %1358 = vmatprep.subr.mxu0 0.0
        %1359 = vmatpush1.xpose.msra.mxu0 0.0
        %1360 = vmatprep.subr.mxu0 0.0
        %1361 = vmatpush1.xpose.msra.mxu0 0.0
        %1362 = vmatprep.subr.mxu0 0.0
        %1363 = vmatpush1.xpose.msra.mxu0 0.0
        %1364 = vmatprep.subr.mxu0 0.0
        %1365 = vmatpush1.xpose.msra.mxu0 0.0
        %1366 = vmatprep.subr.mxu0 0.0
        %1367 = vmatpush1.xpose.msra.mxu0 0.0
        %1368 = vmatprep.subr.mxu0 0.0
        %1369 = vmatpush1.xpose.msra.mxu0 0.0
        %1370 = vmatprep.subr.mxu0 0.0
        %1371 = vmatpush1.xpose.msra.mxu0 0.0
        %1372 = vmatprep.subr.mxu0 0.0
        %1373 = vmatpush1.xpose.msra.mxu0 0.0
        %1374 = vmatprep.subr.mxu0 0.0
        %1375 = vmatpush1.xpose.msra.mxu0 0.0
        %1376 = vmatprep.subr.mxu0 0.0
        %1377 = vmatpush1.xpose.msra.mxu0 0.0
        %1378 = vmatprep.subr.mxu0 0.0
        %1379 = vmatpush1.xpose.msra.mxu0 0.0
        %1380 = vmatprep.subr.mxu0 0.0
        %1381 = vmatpush1.xpose.msra.mxu0 0.0
        %1382 = vmatprep.subr.mxu0 0.0
        %1383 = vmatpush1.xpose.msra.mxu0 0.0
        %1384 = vmatprep.mubr.f32.mxu0 0.0
        %1385 = vmatmul.mubr.f32.gmra.mrb[0].mxu0 %v1315
        %v1386 = vpop.f32.mrb[0].mxu0
        %v1387 = vadd.f32 0.0, %v1386
        %v1388 = vpop.f32.mrb[0].mxu0
        %1389 = vdwg.mxu0
        %v1391 = vsel %vm1313, %v1302, 0
        %v1394 = vsel %vm1313, %v1306, 0
        %1396 = vmatprep.subr.mxu0 0.0
        %1397 = vmatpush1.xpose.msra.mxu0 %v1394
        %1398 = vmatprep.subr.mxu0 0.0
        %1399 = vmatpush1.xpose.msra.mxu0 0.0
        %1400 = vmatprep.subr.mxu0 0.0
        %1401 = vmatpush1.xpose.msra.mxu0 0.0
        %1402 = vmatprep.subr.mxu0 0.0
        %1403 = vmatpush1.xpose.msra.mxu0 0.0
        %1404 = vmatprep.subr.mxu0 0.0
        %1405 = vmatpush1.xpose.msra.mxu0 0.0
        %1406 = vmatprep.subr.mxu0 0.0
        %1407 = vmatpush1.xpose.msra.mxu0 0.0
        %1408 = vmatprep.subr.mxu0 0.0
        %1409 = vmatpush1.xpose.msra.mxu0 0.0
        %1410 = vmatprep.subr.mxu0 0.0
        %1411 = vmatpush1.xpose.msra.mxu0 0.0
        %1412 = vmatprep.subr.mxu0 0.0
        %1413 = vmatpush1.xpose.msra.mxu0 0.0
        %1414 = vmatprep.subr.mxu0 0.0
        %1415 = vmatpush1.xpose.msra.mxu0 0.0
        %1416 = vmatprep.subr.mxu0 0.0
        %1417 = vmatpush1.xpose.msra.mxu0 0.0
        %1418 = vmatprep.subr.mxu0 0.0
        %1419 = vmatpush1.xpose.msra.mxu0 0.0
        %1420 = vmatprep.subr.mxu0 0.0
        %1421 = vmatpush1.xpose.msra.mxu0 0.0
        %1422 = vmatprep.subr.mxu0 0.0
        %1423 = vmatpush1.xpose.msra.mxu0 0.0
        %1424 = vmatprep.subr.mxu0 0.0
        %1425 = vmatpush1.xpose.msra.mxu0 0.0
        %1426 = vmatprep.subr.mxu0 0.0
        %1427 = vmatpush1.xpose.msra.mxu0 0.0
        %1428 = vmatprep.subr.mxu0 0.0
        %1429 = vmatpush1.xpose.msra.mxu0 0.0
        %1430 = vmatprep.subr.mxu0 0.0
        %1431 = vmatpush1.xpose.msra.mxu0 0.0
        %1432 = vmatprep.subr.mxu0 0.0
        %1433 = vmatpush1.xpose.msra.mxu0 0.0
        %1434 = vmatprep.subr.mxu0 0.0
        %1435 = vmatpush1.xpose.msra.mxu0 0.0
        %1436 = vmatprep.subr.mxu0 0.0
        %1437 = vmatpush1.xpose.msra.mxu0 0.0
        %1438 = vmatprep.subr.mxu0 0.0
        %1439 = vmatpush1.xpose.msra.mxu0 0.0
        %1440 = vmatprep.subr.mxu0 0.0
        %1441 = vmatpush1.xpose.msra.mxu0 0.0
        %1442 = vmatprep.subr.mxu0 0.0
        %1443 = vmatpush1.xpose.msra.mxu0 0.0
        %1444 = vmatprep.subr.mxu0 0.0
        %1445 = vmatpush1.xpose.msra.mxu0 0.0
        %1446 = vmatprep.subr.mxu0 0.0
        %1447 = vmatpush1.xpose.msra.mxu0 0.0
        %1448 = vmatprep.subr.mxu0 0.0
        %1449 = vmatpush1.xpose.msra.mxu0 0.0
        %1450 = vmatprep.subr.mxu0 0.0
        %1451 = vmatpush1.xpose.msra.mxu0 0.0
        %1452 = vmatprep.subr.mxu0 0.0
        %1453 = vmatpush1.xpose.msra.mxu0 0.0
        %1454 = vmatprep.subr.mxu0 0.0
        %1455 = vmatpush1.xpose.msra.mxu0 0.0
        %1456 = vmatprep.subr.mxu0 0.0
        %1457 = vmatpush1.xpose.msra.mxu0 0.0
        %1458 = vmatprep.subr.mxu0 0.0
        %1459 = vmatpush1.xpose.msra.mxu0 0.0
        %1460 = vmatprep.mubr.f32.mxu0 0.0
        %1461 = vmatmul.mubr.f32.gmra.mrb[0].mxu0 %v1391
        %v1462 = vpop.f32.mrb[0].mxu0
        %v1463 = vadd.f32 0.0, %v1462
        %v1464 = vpop.f32.mrb[0].mxu0
        %1465 = vdwg.mxu0
        %v1467 = vsel %vm1313, %v1303, 0
        %v1470 = vsel %vm1313, %v1307, 0
        %1472 = vmatprep.subr.mxu0 0.0
        %1473 = vmatpush1.xpose.msra.mxu0 %v1470
        %1474 = vmatprep.subr.mxu0 0.0
        %1475 = vmatpush1.xpose.msra.mxu0 0.0
        %1476 = vmatprep.subr.mxu0 0.0
        %1477 = vmatpush1.xpose.msra.mxu0 0.0
        %1478 = vmatprep.subr.mxu0 0.0
        %1479 = vmatpush1.xpose.msra.mxu0 0.0
        %1480 = vmatprep.subr.mxu0 0.0
        %1481 = vmatpush1.xpose.msra.mxu0 0.0
        %1482 = vmatprep.subr.mxu0 0.0
        %1483 = vmatpush1.xpose.msra.mxu0 0.0
        %1484 = vmatprep.subr.mxu0 0.0
        %1485 = vmatpush1.xpose.msra.mxu0 0.0
        %1486 = vmatprep.subr.mxu0 0.0
        %1487 = vmatpush1.xpose.msra.mxu0 0.0
        %1488 = vmatprep.subr.mxu0 0.0
        %1489 = vmatpush1.xpose.msra.mxu0 0.0
        %1490 = vmatprep.subr.mxu0 0.0
        %1491 = vmatpush1.xpose.msra.mxu0 0.0
        %1492 = vmatprep.subr.mxu0 0.0
        %1493 = vmatpush1.xpose.msra.mxu0 0.0
        %1494 = vmatprep.subr.mxu0 0.0
        %1495 = vmatpush1.xpose.msra.mxu0 0.0
        %1496 = vmatprep.subr.mxu0 0.0
        %1497 = vmatpush1.xpose.msra.mxu0 0.0
        %1498 = vmatprep.subr.mxu0 0.0
        %1499 = vmatpush1.xpose.msra.mxu0 0.0
        %1500 = vmatprep.subr.mxu0 0.0
        %1501 = vmatpush1.xpose.msra.mxu0 0.0
        %1502 = vmatprep.subr.mxu0 0.0
        %1503 = vmatpush1.xpose.msra.mxu0 0.0
        %1504 = vmatprep.subr.mxu0 0.0
        %1505 = vmatpush1.xpose.msra.mxu0 0.0
        %1506 = vmatprep.subr.mxu0 0.0
        %1507 = vmatpush1.xpose.msra.mxu0 0.0
        %1508 = vmatprep.subr.mxu0 0.0
        %1509 = vmatpush1.xpose.msra.mxu0 0.0
        %1510 = vmatprep.subr.mxu0 0.0
        %1511 = vmatpush1.xpose.msra.mxu0 0.0
        %1512 = vmatprep.subr.mxu0 0.0
        %1513 = vmatpush1.xpose.msra.mxu0 0.0
        %1514 = vmatprep.subr.mxu0 0.0
        %1515 = vmatpush1.xpose.msra.mxu0 0.0
        %1516 = vmatprep.subr.mxu0 0.0
        %1517 = vmatpush1.xpose.msra.mxu0 0.0
        %1518 = vmatprep.subr.mxu0 0.0
        %1519 = vmatpush1.xpose.msra.mxu0 0.0
        %1520 = vmatprep.subr.mxu0 0.0
        %1521 = vmatpush1.xpose.msra.mxu0 0.0
        %1522 = vmatprep.subr.mxu0 0.0
        %1523 = vmatpush1.xpose.msra.mxu0 0.0
        %1524 = vmatprep.subr.mxu0 0.0
        %1525 = vmatpush1.xpose.msra.mxu0 0.0
        %1526 = vmatprep.subr.mxu0 0.0
        %1527 = vmatpush1.xpose.msra.mxu0 0.0
        %1528 = vmatprep.subr.mxu0 0.0
        %1529 = vmatpush1.xpose.msra.mxu0 0.0
        %1530 = vmatprep.subr.mxu0 0.0
        %1531 = vmatpush1.xpose.msra.mxu0 0.0
        %1532 = vmatprep.subr.mxu0 0.0
        %1533 = vmatpush1.xpose.msra.mxu0 0.0
        %1534 = vmatprep.subr.mxu0 0.0
        %1535 = vmatpush1.xpose.msra.mxu0 0.0
        %1536 = vmatprep.mubr.f32.mxu0 0.0
        %1537 = vmatmul.mubr.f32.gmra.mrb[0].mxu0 %v1467
        %v1538 = vpop.f32.mrb[0].mxu0
        %v1539 = vadd.f32 0.0, %v1538
        %v1540 = vpop.f32.mrb[0].mxu0
        %1541 = vdwg.mxu0
        %v1543 = vsel %vm1313, %v1304, 0
        %v1546 = vsel %vm1313, %v1308, 0
        %1548 = vmatprep.subr.mxu0 0.0
        %1549 = vmatpush1.xpose.msra.mxu0 %v1546
        %1550 = vmatprep.subr.mxu0 0.0
        %1551 = vmatpush1.xpose.msra.mxu0 0.0
        %1552 = vmatprep.subr.mxu0 0.0
        %1553 = vmatpush1.xpose.msra.mxu0 0.0
        %1554 = vmatprep.subr.mxu0 0.0
        %1555 = vmatpush1.xpose.msra.mxu0 0.0
        %1556 = vmatprep.subr.mxu0 0.0
        %1557 = vmatpush1.xpose.msra.mxu0 0.0
        %1558 = vmatprep.subr.mxu0 0.0
        %1559 = vmatpush1.xpose.msra.mxu0 0.0
        %1560 = vmatprep.subr.mxu0 0.0
        %1561 = vmatpush1.xpose.msra.mxu0 0.0
        %1562 = vmatprep.subr.mxu0 0.0
        %1563 = vmatpush1.xpose.msra.mxu0 0.0
        %1564 = vmatprep.subr.mxu0 0.0
        %1565 = vmatpush1.xpose.msra.mxu0 0.0
        %1566 = vmatprep.subr.mxu0 0.0
        %1567 = vmatpush1.xpose.msra.mxu0 0.0
        %1568 = vmatprep.subr.mxu0 0.0
        %1569 = vmatpush1.xpose.msra.mxu0 0.0
        %1570 = vmatprep.subr.mxu0 0.0
        %1571 = vmatpush1.xpose.msra.mxu0 0.0
        %1572 = vmatprep.subr.mxu0 0.0
        %1573 = vmatpush1.xpose.msra.mxu0 0.0
        %1574 = vmatprep.subr.mxu0 0.0
        %1575 = vmatpush1.xpose.msra.mxu0 0.0
        %1576 = vmatprep.subr.mxu0 0.0
        %1577 = vmatpush1.xpose.msra.mxu0 0.0
        %1578 = vmatprep.subr.mxu0 0.0
        %1579 = vmatpush1.xpose.msra.mxu0 0.0
        %1580 = vmatprep.subr.mxu0 0.0
        %1581 = vmatpush1.xpose.msra.mxu0 0.0
        %1582 = vmatprep.subr.mxu0 0.0
        %1583 = vmatpush1.xpose.msra.mxu0 0.0
        %1584 = vmatprep.subr.mxu0 0.0
        %1585 = vmatpush1.xpose.msra.mxu0 0.0
        %1586 = vmatprep.subr.mxu0 0.0
        %1587 = vmatpush1.xpose.msra.mxu0 0.0
        %1588 = vmatprep.subr.mxu0 0.0
        %1589 = vmatpush1.xpose.msra.mxu0 0.0
        %1590 = vmatprep.subr.mxu0 0.0
        %1591 = vmatpush1.xpose.msra.mxu0 0.0
        %1592 = vmatprep.subr.mxu0 0.0
        %1593 = vmatpush1.xpose.msra.mxu0 0.0
        %1594 = vmatprep.subr.mxu0 0.0
        %1595 = vmatpush1.xpose.msra.mxu0 0.0
        %1596 = vmatprep.subr.mxu0 0.0
        %1597 = vmatpush1.xpose.msra.mxu0 0.0
        %1598 = vmatprep.subr.mxu0 0.0
        %1599 = vmatpush1.xpose.msra.mxu0 0.0
        %1600 = vmatprep.subr.mxu0 0.0
        %1601 = vmatpush1.xpose.msra.mxu0 0.0
        %1602 = vmatprep.subr.mxu0 0.0
        %1603 = vmatpush1.xpose.msra.mxu0 0.0
        %1604 = vmatprep.subr.mxu0 0.0
        %1605 = vmatpush1.xpose.msra.mxu0 0.0
        %1606 = vmatprep.subr.mxu0 0.0
        %1607 = vmatpush1.xpose.msra.mxu0 0.0
        %1608 = vmatprep.subr.mxu0 0.0
        %1609 = vmatpush1.xpose.msra.mxu0 0.0
        %1610 = vmatprep.subr.mxu0 0.0
        %1611 = vmatpush1.xpose.msra.mxu0 0.0
        %1612 = vmatprep.mubr.f32.mxu0 0.0
        %1613 = vmatmul.mubr.f32.gmra.mrb[0].mxu0 %v1543
        %v1614 = vpop.f32.mrb[0].mxu0
        %v1615 = vadd.f32 0.0, %v1614
        %v1616 = vpop.f32.mrb[0].mxu0
        %1617 = vdwg.mxu0
        %v1618 = vmul.f32 %v1387, 0.35355338
        %v1619 = vmul.f32 %v1463, 0.35355338
        %v1620 = vmul.f32 %v1539, 0.35355338
        %v1621 = vmul.f32 %v1615, 0.35355338
        %v1622 = vsel %vm1313, %v1618, -inf
        %1623 = vmax.xlane.f32.xlu0 %v1622
        %v1624 = vpop.xlane.xlu0 %1623
        %v1625 = vsel %vm1313, %v1619, -inf
        %1626 = vmax.xlane.f32.xlu0 %v1625
        %v1627 = vpop.xlane.xlu0 %1626
        %v1628 = vsel %vm1313, %v1620, -inf
        %1629 = vmax.xlane.f32.xlu0 %v1628
        %v1630 = vpop.xlane.xlu0 %1629
        %v1631 = vsel %vm1313, %v1621, -inf
        %1632 = vmax.xlane.f32.xlu0 %v1631
        %v1633 = vpop.xlane.xlu0 %1632
        %v1634 = vsub.f32 -inf, %v1624
        %v1635 = vsub.f32 -inf, %v1627
        %v1636 = vsub.f32 -inf, %v1630
        %v1637 = vsub.f32 -inf, %v1633
        %v1638 = vmul.f32 %v1634, 1.442695
        %v1639 = vpow.pop %v1638
        %v1640 = vmul.f32 %v1635, 1.442695
        %v1641 = vpow.pop %v1640
        %v1642 = vmul.f32 %v1636, 1.442695
        %v1643 = vpow.pop %v1642
        %v1644 = vmul.f32 %v1637, 1.442695
        %v1645 = vpow.pop %v1644
        %v1646 = vsub.f32 %v1618, %v1624
        %v1647 = vsub.f32 %v1619, %v1627
        %v1648 = vsub.f32 %v1620, %v1630
        %v1649 = vsub.f32 %v1621, %v1633
        %v1650 = vmul.f32 %v1646, 1.442695
        %v1651 = vpow.pop %v1650
        %v1652 = vmul.f32 %v1647, 1.442695
        %v1653 = vpow.pop %v1652
        %v1654 = vmul.f32 %v1648, 1.442695
        %v1655 = vpow.pop %v1654
        %v1656 = vmul.f32 %v1649, 1.442695
        %v1657 = vpow.pop %v1656
        %v1658 = vmul.f32 %v1639, 0.0
        %v1659 = vmul.f32 %v1641, 0.0
        %v1660 = vmul.f32 %v1643, 0.0
        %v1661 = vmul.f32 %v1645, 0.0
        %v1662 = vsel %vm1313, %v1651, 0.0
        %1663 = vadd.xlane.f32.xlu0 %v1662
        %v1664 = vpop.xlane.xlu0 %1663
        %v1665 = vsel %vm1313, %v1653, 0.0
        %1666 = vadd.xlane.f32.xlu0 %v1665
        %v1667 = vpop.xlane.xlu0 %1666
        %v1668 = vsel %vm1313, %v1655, 0.0
        %1669 = vadd.xlane.f32.xlu0 %v1668
        %v1670 = vpop.xlane.xlu0 %1669
        %v1671 = vsel %vm1313, %v1657, 0.0
        %1672 = vadd.xlane.f32.xlu0 %v1671
        %v1673 = vpop.xlane.xlu0 %1672
        %v1674 = vadd.f32 %v1658, %v1664
        %v1675 = vadd.f32 %v1659, %v1667
        %v1676 = vadd.f32 %v1660, %v1670
        %v1677 = vadd.f32 %v1661, %v1673
        %v1679 = vsel %vm1313, %v1651, 0
        %1681 = vmatprep.subr.mxu0 0.0
        %1682 = vmatpush1.msra.mxu0 %v1309
        %1683 = vmatprep.subr.mxu0 0.0
        %1684 = vmatpush1.msra.mxu0 0.0
        %1685 = vmatprep.subr.mxu0 0.0
        %1686 = vmatpush1.msra.mxu0 0.0
        %1687 = vmatprep.subr.mxu0 0.0
        %1688 = vmatpush1.msra.mxu0 0.0
        %1689 = vmatprep.subr.mxu0 0.0
        %1690 = vmatpush1.msra.mxu0 0.0
        %1691 = vmatprep.subr.mxu0 0.0
        %1692 = vmatpush1.msra.mxu0 0.0
        %1693 = vmatprep.subr.mxu0 0.0
        %1694 = vmatpush1.msra.mxu0 0.0
        %1695 = vmatprep.subr.mxu0 0.0
        %1696 = vmatpush1.msra.mxu0 0.0
        %1697 = vmatprep.subr.mxu0 0.0
        %1698 = vmatpush1.msra.mxu0 0.0
        %1699 = vmatprep.subr.mxu0 0.0
        %1700 = vmatpush1.msra.mxu0 0.0
        %1701 = vmatprep.subr.mxu0 0.0
        %1702 = vmatpush1.msra.mxu0 0.0
        %1703 = vmatprep.subr.mxu0 0.0
        %1704 = vmatpush1.msra.mxu0 0.0
        %1705 = vmatprep.subr.mxu0 0.0
        %1706 = vmatpush1.msra.mxu0 0.0
        %1707 = vmatprep.subr.mxu0 0.0
        %1708 = vmatpush1.msra.mxu0 0.0
        %1709 = vmatprep.subr.mxu0 0.0
        %1710 = vmatpush1.msra.mxu0 0.0
        %1711 = vmatprep.subr.mxu0 0.0
        %1712 = vmatpush1.msra.mxu0 0.0
        %1713 = vmatprep.subr.mxu0 0.0
        %1714 = vmatpush1.msra.mxu0 0.0
        %1715 = vmatprep.subr.mxu0 0.0
        %1716 = vmatpush1.msra.mxu0 0.0
        %1717 = vmatprep.subr.mxu0 0.0
        %1718 = vmatpush1.msra.mxu0 0.0
        %1719 = vmatprep.subr.mxu0 0.0
        %1720 = vmatpush1.msra.mxu0 0.0
        %1721 = vmatprep.subr.mxu0 0.0
        %1722 = vmatpush1.msra.mxu0 0.0
        %1723 = vmatprep.subr.mxu0 0.0
        %1724 = vmatpush1.msra.mxu0 0.0
        %1725 = vmatprep.subr.mxu0 0.0
        %1726 = vmatpush1.msra.mxu0 0.0
        %1727 = vmatprep.subr.mxu0 0.0
        %1728 = vmatpush1.msra.mxu0 0.0
        %1729 = vmatprep.subr.mxu0 0.0
        %1730 = vmatpush1.msra.mxu0 0.0
        %1731 = vmatprep.subr.mxu0 0.0
        %1732 = vmatpush1.msra.mxu0 0.0
        %1733 = vmatprep.subr.mxu0 0.0
        %1734 = vmatpush1.msra.mxu0 0.0
        %1735 = vmatprep.subr.mxu0 0.0
        %1736 = vmatpush1.msra.mxu0 0.0
        %1737 = vmatprep.subr.mxu0 0.0
        %1738 = vmatpush1.msra.mxu0 0.0
        %1739 = vmatprep.subr.mxu0 0.0
        %1740 = vmatpush1.msra.mxu0 0.0
        %1741 = vmatprep.subr.mxu0 0.0
        %1742 = vmatpush1.msra.mxu0 0.0
        %1743 = vmatprep.subr.mxu0 0.0
        %1744 = vmatpush1.msra.mxu0 0.0
        %1745 = vmatprep.mubr.f32.mxu0 0.0
        %1746 = vmatmul.mubr.f32.gmra.mrb[0].mxu0 %v1679
        %v1747 = vpop.f32.mrb[0].mxu0
        %v1748 = vadd.f32 0.0, %v1747
        %v1749 = vpop.f32.mrb[0].mxu0
        %1750 = vdwg.mxu0
        %v1752 = vsel %vm1313, %v1653, 0
        %1754 = vmatprep.subr.mxu0 0.0
        %1755 = vmatpush1.msra.mxu0 %v1310
        %1756 = vmatprep.subr.mxu0 0.0
        %1757 = vmatpush1.msra.mxu0 0.0
        %1758 = vmatprep.subr.mxu0 0.0
        %1759 = vmatpush1.msra.mxu0 0.0
        %1760 = vmatprep.subr.mxu0 0.0
        %1761 = vmatpush1.msra.mxu0 0.0
        %1762 = vmatprep.subr.mxu0 0.0
        %1763 = vmatpush1.msra.mxu0 0.0
        %1764 = vmatprep.subr.mxu0 0.0
        %1765 = vmatpush1.msra.mxu0 0.0
        %1766 = vmatprep.subr.mxu0 0.0
        %1767 = vmatpush1.msra.mxu0 0.0
        %1768 = vmatprep.subr.mxu0 0.0
        %1769 = vmatpush1.msra.mxu0 0.0
        %1770 = vmatprep.subr.mxu0 0.0
        %1771 = vmatpush1.msra.mxu0 0.0
        %1772 = vmatprep.subr.mxu0 0.0
        %1773 = vmatpush1.msra.mxu0 0.0
        %1774 = vmatprep.subr.mxu0 0.0
        %1775 = vmatpush1.msra.mxu0 0.0
        %1776 = vmatprep.subr.mxu0 0.0
        %1777 = vmatpush1.msra.mxu0 0.0
        %1778 = vmatprep.subr.mxu0 0.0
        %1779 = vmatpush1.msra.mxu0 0.0
        %1780 = vmatprep.subr.mxu0 0.0
        %1781 = vmatpush1.msra.mxu0 0.0
        %1782 = vmatprep.subr.mxu0 0.0
        %1783 = vmatpush1.msra.mxu0 0.0
        %1784 = vmatprep.subr.mxu0 0.0
        %1785 = vmatpush1.msra.mxu0 0.0
        %1786 = vmatprep.subr.mxu0 0.0
        %1787 = vmatpush1.msra.mxu0 0.0
        %1788 = vmatprep.subr.mxu0 0.0
        %1789 = vmatpush1.msra.mxu0 0.0
        %1790 = vmatprep.subr.mxu0 0.0
        %1791 = vmatpush1.msra.mxu0 0.0
        %1792 = vmatprep.subr.mxu0 0.0
        %1793 = vmatpush1.msra.mxu0 0.0
        %1794 = vmatprep.subr.mxu0 0.0
        %1795 = vmatpush1.msra.mxu0 0.0
        %1796 = vmatprep.subr.mxu0 0.0
        %1797 = vmatpush1.msra.mxu0 0.0
        %1798 = vmatprep.subr.mxu0 0.0
        %1799 = vmatpush1.msra.mxu0 0.0
        %1800 = vmatprep.subr.mxu0 0.0
        %1801 = vmatpush1.msra.mxu0 0.0
        %1802 = vmatprep.subr.mxu0 0.0
        %1803 = vmatpush1.msra.mxu0 0.0
        %1804 = vmatprep.subr.mxu0 0.0
        %1805 = vmatpush1.msra.mxu0 0.0
        %1806 = vmatprep.subr.mxu0 0.0
        %1807 = vmatpush1.msra.mxu0 0.0
        %1808 = vmatprep.subr.mxu0 0.0
        %1809 = vmatpush1.msra.mxu0 0.0
        %1810 = vmatprep.subr.mxu0 0.0
        %1811 = vmatpush1.msra.mxu0 0.0
        %1812 = vmatprep.subr.mxu0 0.0
        %1813 = vmatpush1.msra.mxu0 0.0
        %1814 = vmatprep.subr.mxu0 0.0
        %1815 = vmatpush1.msra.mxu0 0.0
        %1816 = vmatprep.subr.mxu0 0.0
        %1817 = vmatpush1.msra.mxu0 0.0
        %1818 = vmatprep.mubr.f32.mxu0 0.0
        %1819 = vmatmul.mubr.f32.gmra.mrb[0].mxu0 %v1752
        %v1820 = vpop.f32.mrb[0].mxu0
        %v1821 = vadd.f32 0.0, %v1820
        %v1822 = vpop.f32.mrb[0].mxu0
        %1823 = vdwg.mxu0
        %v1825 = vsel %vm1313, %v1655, 0
        %1827 = vmatprep.subr.mxu0 0.0
        %1828 = vmatpush1.msra.mxu0 %v1311
        %1829 = vmatprep.subr.mxu0 0.0
        %1830 = vmatpush1.msra.mxu0 0.0
        %1831 = vmatprep.subr.mxu0 0.0
        %1832 = vmatpush1.msra.mxu0 0.0
        %1833 = vmatprep.subr.mxu0 0.0
        %1834 = vmatpush1.msra.mxu0 0.0
        %1835 = vmatprep.subr.mxu0 0.0
        %1836 = vmatpush1.msra.mxu0 0.0
        %1837 = vmatprep.subr.mxu0 0.0
        %1838 = vmatpush1.msra.mxu0 0.0
        %1839 = vmatprep.subr.mxu0 0.0
        %1840 = vmatpush1.msra.mxu0 0.0
        %1841 = vmatprep.subr.mxu0 0.0
        %1842 = vmatpush1.msra.mxu0 0.0
        %1843 = vmatprep.subr.mxu0 0.0
        %1844 = vmatpush1.msra.mxu0 0.0
        %1845 = vmatprep.subr.mxu0 0.0
        %1846 = vmatpush1.msra.mxu0 0.0
        %1847 = vmatprep.subr.mxu0 0.0
        %1848 = vmatpush1.msra.mxu0 0.0
        %1849 = vmatprep.subr.mxu0 0.0
        %1850 = vmatpush1.msra.mxu0 0.0
        %1851 = vmatprep.subr.mxu0 0.0
        %1852 = vmatpush1.msra.mxu0 0.0
        %1853 = vmatprep.subr.mxu0 0.0
        %1854 = vmatpush1.msra.mxu0 0.0
        %1855 = vmatprep.subr.mxu0 0.0
        %1856 = vmatpush1.msra.mxu0 0.0
        %1857 = vmatprep.subr.mxu0 0.0
        %1858 = vmatpush1.msra.mxu0 0.0
        %1859 = vmatprep.subr.mxu0 0.0
        %1860 = vmatpush1.msra.mxu0 0.0
        %1861 = vmatprep.subr.mxu0 0.0
        %1862 = vmatpush1.msra.mxu0 0.0
        %1863 = vmatprep.subr.mxu0 0.0
        %1864 = vmatpush1.msra.mxu0 0.0
        %1865 = vmatprep.subr.mxu0 0.0
        %1866 = vmatpush1.msra.mxu0 0.0
        %1867 = vmatprep.subr.mxu0 0.0
        %1868 = vmatpush1.msra.mxu0 0.0
        %1869 = vmatprep.subr.mxu0 0.0
        %1870 = vmatpush1.msra.mxu0 0.0
        %1871 = vmatprep.subr.mxu0 0.0
        %1872 = vmatpush1.msra.mxu0 0.0
        %1873 = vmatprep.subr.mxu0 0.0
        %1874 = vmatpush1.msra.mxu0 0.0
        %1875 = vmatprep.subr.mxu0 0.0
        %1876 = vmatpush1.msra.mxu0 0.0
        %1877 = vmatprep.subr.mxu0 0.0
        %1878 = vmatpush1.msra.mxu0 0.0
        %1879 = vmatprep.subr.mxu0 0.0
        %1880 = vmatpush1.msra.mxu0 0.0
        %1881 = vmatprep.subr.mxu0 0.0
        %1882 = vmatpush1.msra.mxu0 0.0
        %1883 = vmatprep.subr.mxu0 0.0
        %1884 = vmatpush1.msra.mxu0 0.0
        %1885 = vmatprep.subr.mxu0 0.0
        %1886 = vmatpush1.msra.mxu0 0.0
        %1887 = vmatprep.subr.mxu0 0.0
        %1888 = vmatpush1.msra.mxu0 0.0
        %1889 = vmatprep.subr.mxu0 0.0
        %1890 = vmatpush1.msra.mxu0 0.0
        %1891 = vmatprep.mubr.f32.mxu0 0.0
        %1892 = vmatmul.mubr.f32.gmra.mrb[0].mxu0 %v1825
        %v1893 = vpop.f32.mrb[0].mxu0
        %v1894 = vadd.f32 0.0, %v1893
        %v1895 = vpop.f32.mrb[0].mxu0
        %1896 = vdwg.mxu0
        %v1898 = vsel %vm1313, %v1657, 0
        %1900 = vmatprep.subr.mxu0 0.0
        %1901 = vmatpush1.msra.mxu0 %v1312
        %1902 = vmatprep.subr.mxu0 0.0
        %1903 = vmatpush1.msra.mxu0 0.0
        %1904 = vmatprep.subr.mxu0 0.0
        %1905 = vmatpush1.msra.mxu0 0.0
        %1906 = vmatprep.subr.mxu0 0.0
        %1907 = vmatpush1.msra.mxu0 0.0
        %1908 = vmatprep.subr.mxu0 0.0
        %1909 = vmatpush1.msra.mxu0 0.0
        %1910 = vmatprep.subr.mxu0 0.0
        %1911 = vmatpush1.msra.mxu0 0.0
        %1912 = vmatprep.subr.mxu0 0.0
        %1913 = vmatpush1.msra.mxu0 0.0
        %1914 = vmatprep.subr.mxu0 0.0
        %1915 = vmatpush1.msra.mxu0 0.0
        %1916 = vmatprep.subr.mxu0 0.0
        %1917 = vmatpush1.msra.mxu0 0.0
        %1918 = vmatprep.subr.mxu0 0.0
        %1919 = vmatpush1.msra.mxu0 0.0
        %1920 = vmatprep.subr.mxu0 0.0
        %1921 = vmatpush1.msra.mxu0 0.0
        %1922 = vmatprep.subr.mxu0 0.0
        %1923 = vmatpush1.msra.mxu0 0.0
        %1924 = vmatprep.subr.mxu0 0.0
        %1925 = vmatpush1.msra.mxu0 0.0
        %1926 = vmatprep.subr.mxu0 0.0
        %1927 = vmatpush1.msra.mxu0 0.0
        %1928 = vmatprep.subr.mxu0 0.0
        %1929 = vmatpush1.msra.mxu0 0.0
        %1930 = vmatprep.subr.mxu0 0.0
        %1931 = vmatpush1.msra.mxu0 0.0
        %1932 = vmatprep.subr.mxu0 0.0
        %1933 = vmatpush1.msra.mxu0 0.0
        %1934 = vmatprep.subr.mxu0 0.0
        %1935 = vmatpush1.msra.mxu0 0.0
        %1936 = vmatprep.subr.mxu0 0.0
        %1937 = vmatpush1.msra.mxu0 0.0
        %1938 = vmatprep.subr.mxu0 0.0
        %1939 = vmatpush1.msra.mxu0 0.0
        %1940 = vmatprep.subr.mxu0 0.0
        %1941 = vmatpush1.msra.mxu0 0.0
        %1942 = vmatprep.subr.mxu0 0.0
        %1943 = vmatpush1.msra.mxu0 0.0
        %1944 = vmatprep.subr.mxu0 0.0
        %1945 = vmatpush1.msra.mxu0 0.0
        %1946 = vmatprep.subr.mxu0 0.0
        %1947 = vmatpush1.msra.mxu0 0.0
        %1948 = vmatprep.subr.mxu0 0.0
        %1949 = vmatpush1.msra.mxu0 0.0
        %1950 = vmatprep.subr.mxu0 0.0
        %1951 = vmatpush1.msra.mxu0 0.0
        %1952 = vmatprep.subr.mxu0 0.0
        %1953 = vmatpush1.msra.mxu0 0.0
        %1954 = vmatprep.subr.mxu0 0.0
        %1955 = vmatpush1.msra.mxu0 0.0
        %1956 = vmatprep.subr.mxu0 0.0
        %1957 = vmatpush1.msra.mxu0 0.0
        %1958 = vmatprep.subr.mxu0 0.0
        %1959 = vmatpush1.msra.mxu0 0.0
        %1960 = vmatprep.subr.mxu0 0.0
        %1961 = vmatpush1.msra.mxu0 0.0
        %1962 = vmatprep.subr.mxu0 0.0
        %1963 = vmatpush1.msra.mxu0 0.0
        %1964 = vmatprep.mubr.f32.mxu0 0.0
        %1965 = vmatmul.mubr.f32.gmra.mrb[0].mxu0 %v1898
        %v1966 = vpop.f32.mrb[0].mxu0
        %v1967 = vadd.f32 0.0, %v1966
        %v1968 = vpop.f32.mrb[0].mxu0
        %1969 = vdwg.mxu0
        %v1970 = vadd.f32 %v1658, %v1748
        %v1971 = vadd.f32 %v1659, %v1821
        %v1972 = vadd.f32 %v1660, %v1894
        %v1973 = vadd.f32 %v1661, %v1967
        %v1974 = vrcp.pop %v1674
        %v1975 = vrcp.pop %v1675
        %v1976 = vrcp.pop %v1676
        %v1977 = vrcp.pop %v1677
        %v1978 = vmul.f32 %v1970, %v1974
        %v1979 = vmul.f32 %v1971, %v1975
        %v1980 = vmul.f32 %v1972, %v1976
        %v1981 = vmul.f32 %v1973, %v1977
        %v1982 = vcombine.low %v1978, %v1980
        %v1983 = vcombine.high %v1978, %v1980
        %v1985 = vunpack.c.l.s4 1983009808
        %v1986 = vunpack.c.0.s8 %v1985
        %v1987 = vlaneseq
        %v1988 = vshrl.u32 %v1987, 7
        %v1989 = vsub.s32 %v1986, %v1988
        %v1990 = vrot.slane %v1982, %v1989
        %v1992 = vunpack.c.l.s4 1983009808
        %v1993 = vunpack.c.0.s8 %v1992
        %v1994 = vlaneseq
        %v1995 = vshrl.u32 %v1994, 7
        %v1996 = vsub.s32 %v1993, %v1995
        %v1997 = vrot.slane %v1983, %v1996
        %v1998 = vcombine.low %v1979, %v1981
        %v1999 = vcombine.high %v1979, %v1981
        %v2001 = vunpack.c.l.s4 1983009808
        %v2002 = vunpack.c.0.s8 %v2001
        %v2003 = vlaneseq
        %v2004 = vshrl.u32 %v2003, 7
        %v2005 = vsub.s32 %v2002, %v2004
        %v2006 = vrot.slane %v1998, %v2005
        %v2008 = vunpack.c.l.s4 1983009808
        %v2009 = vunpack.c.0.s8 %v2008
        %v2010 = vlaneseq
        %v2011 = vshrl.u32 %v2010, 7
        %v2012 = vsub.s32 %v2009, %v2011
        %v2013 = vrot.slane %v1999, %v2012
        %v2014 = vcombine.low %v1990, %v2006
        %v2015 = vcombine.high %v1990, %v2006
        %v2017 = vunpack.c.l.s4 1934713408
        %v2018 = vunpack.c.0.s8 %v2017
        %v2019 = vlaneseq
        %v2020 = vshrl.u32 %v2019, 7
        %v2021 = vsub.s32 %v2018, %v2020
        %v2022 = vrot.slane %v2014, %v2021
        %v2024 = vunpack.c.l.s4 1934713408
        %v2025 = vunpack.c.0.s8 %v2024
        %v2026 = vlaneseq
        %v2027 = vshrl.u32 %v2026, 7
        %v2028 = vsub.s32 %v2025, %v2027
        %v2029 = vrot.slane %v2015, %v2028
        %v2030 = vcombine.low %v1997, %v2013
        %v2031 = vcombine.high %v1997, %v2013
        %v2033 = vunpack.c.l.s4 1934713408
        %v2034 = vunpack.c.0.s8 %v2033
        %v2035 = vlaneseq
        %v2036 = vshrl.u32 %v2035, 7
        %v2037 = vsub.s32 %v2034, %v2036
        %v2038 = vrot.slane %v2030, %v2037
        %v2040 = vunpack.c.l.s4 1934713408
        %v2041 = vunpack.c.0.s8 %v2040
        %v2042 = vlaneseq
        %v2043 = vshrl.u32 %v2042, 7
        %v2044 = vsub.s32 %v2041, %v2043
        %v2045 = vrot.slane %v2031, %v2044
        %v2046 = vcombine.high %v2022, 0.0
        %v2047 = vcombine.high %v2029, 0.0
        %v2048 = vcombine.high %v2038, 0.0
        %v2049 = vcombine.high %v2045, 0.0
        %v2050 = vcombine.low %v2022, %v2029
        %v2052 = vunpack.c.l.s4 1983009808
        %v2053 = vunpack.c.0.s8 %v2052
        %v2054 = vlaneseq
        %v2055 = vshrl.u32 %v2054, 7
        %v2056 = vsub.s32 %v2053, %v2055
        %v2057 = vrot.slane %v2050, %v2056
        %v2058 = vcombine.low %v2046, %v2047
        %v2060 = vunpack.c.l.s4 1983009808
        %v2061 = vunpack.c.0.s8 %v2060
        %v2062 = vlaneseq
        %v2063 = vshrl.u32 %v2062, 7
        %v2064 = vsub.s32 %v2061, %v2063
        %v2065 = vrot.slane %v2058, %v2064
        %v2066 = vcombine.low %v2038, %v2045
        %v2068 = vunpack.c.l.s4 1983009808
        %v2069 = vunpack.c.0.s8 %v2068
        %v2070 = vlaneseq
        %v2071 = vshrl.u32 %v2070, 7
        %v2072 = vsub.s32 %v2069, %v2071
        %v2073 = vrot.slane %v2066, %v2072
        %v2074 = vcombine.low %v2048, %v2049
        %v2076 = vunpack.c.l.s4 1983009808
        %v2077 = vunpack.c.0.s8 %v2076
        %v2078 = vlaneseq
        %v2079 = vshrl.u32 %v2078, 7
        %v2080 = vsub.s32 %v2077, %v2079
        %v2081 = vrot.slane %v2074, %v2080
        %v2082 = vcombine.low %v2057, %v2065
        %v2083 = vcombine.high %v2057, %v2065
        %v2085 = vunpack.c.l.s4 1934713408
        %v2086 = vunpack.c.0.s8 %v2085
        %v2087 = vlaneseq
        %v2088 = vshrl.u32 %v2087, 7
        %v2089 = vsub.s32 %v2086, %v2088
        %v2090 = vrot.slane %v2082, %v2089
        %v2092 = vunpack.c.l.s4 1934713408
        %v2093 = vunpack.c.0.s8 %v2092
        %v2094 = vlaneseq
        %v2095 = vshrl.u32 %v2094, 7
        %v2096 = vsub.s32 %v2093, %v2095
        %v2097 = vrot.slane %v2083, %v2096
        %v2098 = vcombine.low %v2073, %v2081
        %v2099 = vcombine.high %v2073, %v2081
        %v2101 = vunpack.c.l.s4 1934713408
        %v2102 = vunpack.c.0.s8 %v2101
        %v2103 = vlaneseq
        %v2104 = vshrl.u32 %v2103, 7
        %v2105 = vsub.s32 %v2102, %v2104
        %v2106 = vrot.slane %v2098, %v2105
        %v2108 = vunpack.c.l.s4 1934713408
        %v2109 = vunpack.c.0.s8 %v2108
        %v2110 = vlaneseq
        %v2111 = vshrl.u32 %v2110, 7
        %v2112 = vsub.s32 %v2109, %v2111
        %v2113 = vrot.slane %v2099, %v2112
        %v2114 = vcombine.low %v2090, %v2106
        %v2115 = vcombine.high %v2090, %v2106
        %v2116 = vcombine.low %v2097, %v2113
        %v2117 = vcombine.high %v2097, %v2113
        %2119 = vrot.lane.b32.xlu0 %v2115, 8
        %v2120 = vpop.permute.xlu0 %2119
        %2123 = vrot.lane.b32.xlu0 %v2116, 16
        %v2124 = vpop.permute.xlu0 %2123
        %2127 = vrot.lane.b32.xlu0 %v2117, 24
        %v2128 = vpop.permute.xlu0 %2127
        %v2130 = vsel %vm1313, %v2114, %v2120
        %vm2131 = vcmask 130048
        %v2132 = vsel %vm2131, %v2130, %v2124
        %vm2133 = vcmask 195584
        %v2134 = vsel %vm2133, %v2132, %v2128
        %v2135 = vld [vmem:[%s5] sm:$0xff]
        %v2136 = vld [vmem:[%s5 + $0x8] sm:$0xff]
        %v2137 = vld [vmem:[%s5 + $0x10] sm:$0xff]
        %v2138 = vld [vmem:[%s5 + $0x18] sm:$0xff]
        %v2139 = vld [vmem:[%s6] sm:$0x1]
        %v2141 = vlaneseq
        %v2142 = vshrl.u32 %v2141, 7
        %v2143 = vsub.s32 0, %v2142
        %v2144 = vrot.slane %v2139, %v2143
        %v2147 = vsel %vm1053, %v2134, 0
        %2149 = vmatprep.subr.mxu0 0.0
        %2150 = vmatpush1.msra.mxu0 %v2135
        %2151 = vmatprep.subr.mxu0 0.0
        %2152 = vmatpush1.msra.mxu0 %v2136
        %2153 = vmatprep.subr.mxu0 0.0
        %2154 = vmatpush1.msra.mxu0 %v2137
        %2155 = vmatprep.subr.mxu0 0.0
        %2156 = vmatpush1.msra.mxu0 %v2138
        %2157 = vmatprep.subr.mxu0 0.0
        %2158 = vmatpush1.msra.mxu0 0.0
        %2159 = vmatprep.subr.mxu0 0.0
        %2160 = vmatpush1.msra.mxu0 0.0
        %2161 = vmatprep.subr.mxu0 0.0
        %2162 = vmatpush1.msra.mxu0 0.0
        %2163 = vmatprep.subr.mxu0 0.0
        %2164 = vmatpush1.msra.mxu0 0.0
        %2165 = vmatprep.subr.mxu0 0.0
        %2166 = vmatpush1.msra.mxu0 0.0
        %2167 = vmatprep.subr.mxu0 0.0
        %2168 = vmatpush1.msra.mxu0 0.0
        %2169 = vmatprep.subr.mxu0 0.0
        %2170 = vmatpush1.msra.mxu0 0.0
        %2171 = vmatprep.subr.mxu0 0.0
        %2172 = vmatpush1.msra.mxu0 0.0
        %2173 = vmatprep.subr.mxu0 0.0
        %2174 = vmatpush1.msra.mxu0 0.0
        %2175 = vmatprep.subr.mxu0 0.0
        %2176 = vmatpush1.msra.mxu0 0.0
        %2177 = vmatprep.subr.mxu0 0.0
        %2178 = vmatpush1.msra.mxu0 0.0
        %2179 = vmatprep.subr.mxu0 0.0
        %2180 = vmatpush1.msra.mxu0 0.0
        %2181 = vmatprep.subr.mxu0 0.0
        %2182 = vmatpush1.msra.mxu0 0.0
        %2183 = vmatprep.subr.mxu0 0.0
        %2184 = vmatpush1.msra.mxu0 0.0
        %2185 = vmatprep.subr.mxu0 0.0
        %2186 = vmatpush1.msra.mxu0 0.0
        %2187 = vmatprep.subr.mxu0 0.0
        %2188 = vmatpush1.msra.mxu0 0.0
        %2189 = vmatprep.subr.mxu0 0.0
        %2190 = vmatpush1.msra.mxu0 0.0
        %2191 = vmatprep.subr.mxu0 0.0
        %2192 = vmatpush1.msra.mxu0 0.0
        %2193 = vmatprep.subr.mxu0 0.0
        %2194 = vmatpush1.msra.mxu0 0.0
        %2195 = vmatprep.subr.mxu0 0.0
        %2196 = vmatpush1.msra.mxu0 0.0
        %2197 = vmatprep.subr.mxu0 0.0
        %2198 = vmatpush1.msra.mxu0 0.0
        %2199 = vmatprep.subr.mxu0 0.0
        %2200 = vmatpush1.msra.mxu0 0.0
        %2201 = vmatprep.subr.mxu0 0.0
        %2202 = vmatpush1.msra.mxu0 0.0
        %2203 = vmatprep.subr.mxu0 0.0
        %2204 = vmatpush1.msra.mxu0 0.0
        %2205 = vmatprep.subr.mxu0 0.0
        %2206 = vmatpush1.msra.mxu0 0.0
        %2207 = vmatprep.subr.mxu0 0.0
        %2208 = vmatpush1.msra.mxu0 0.0
        %2209 = vmatprep.subr.mxu0 0.0
        %2210 = vmatpush1.msra.mxu0 0.0
        %2211 = vmatprep.subr.mxu0 0.0
        %2212 = vmatpush1.msra.mxu0 0.0
        %2213 = vmatprep.mubr.f32.mxu0 0.0
        %2214 = vmatmul.mubr.f32.gmra.mrb[0].mxu0 %v2147
        %v2215 = vpop.f32.mrb[0].mxu0
        %v2216 = vadd.f32 %v2144, %v2215
        %v2217 = vpop.f32.mrb[0].mxu0
        %2218 = vdwg.mxu0
        %v2219 = vadd.f32 %v1052, %v2216
        %v2220 = vld [vmem:[%s9] sm:$0x1]
        %v2221 = vld [vmem:[%s10] sm:$0x1]
        %v2222 = vsel %vm1053, %v2219, 0.0
        %2223 = vadd.xlane.f32.xlu0 %v2222
        %v2224 = vpop.xlane.xlu0 %2223
        %v2225 = vmul.f32 %v2224, %v1057
        %v2226 = vsub.f32 %v2219, %v2225
        %v2227 = vmul.f32 %v2226, %v2226
        %v2228 = vsel %vm1053, %v2227, 0.0
        %2229 = vadd.xlane.f32.xlu0 %v2228
        %v2230 = vpop.xlane.xlu0 %2229
        %v2231 = vmul.f32 %v2230, %v1057
        %v2232 = vadd.f32 %v2231, 1e-05
        %v2233 = vrsqrt.pop %v2232
        %v2234 = vmul.f32 %v2226, %v2233
        %v2236 = vlaneseq
        %v2237 = vshrl.u32 %v2236, 7
        %v2238 = vsub.s32 0, %v2237
        %v2239 = vrot.slane %v2220, %v2238
        %v2241 = vmul.f32 %v2234, %v2239
        %v2243 = vlaneseq
        %v2244 = vshrl.u32 %v2243, 7
        %v2245 = vsub.s32 0, %v2244
        %v2246 = vrot.slane %v2221, %v2245
        %v2248 = vadd.f32 %v2241, %v2246
        %v2249 = vld [vmem:[%s11] sm:$0xff]
        %v2250 = vld [vmem:[%s11 + $0x8] sm:$0xff]
        %v2251 = vld [vmem:[%s11 + $0x10] sm:$0xff]
        %v2252 = vld [vmem:[%s11 + $0x18] sm:$0xff]
        %v2253 = vld [vmem:[%s12] sm:$0x1]
        %v2255 = vlaneseq
        %v2256 = vshrl.u32 %v2255, 7
        %v2257 = vsub.s32 0, %v2256
        %v2258 = vrot.slane %v2253, %v2257
        %v2261 = vsel %vm1053, %v2248, 0
        %2263 = vmatprep.subr.mxu0 0.0
        %2264 = vmatpush1.msra.mxu0 %v2249
        %2265 = vmatprep.subr.mxu0 0.0
        %2266 = vmatpush1.msra.mxu0 %v2250
        %2267 = vmatprep.subr.mxu0 0.0
        %2268 = vmatpush1.msra.mxu0 %v2251
        %2269 = vmatprep.subr.mxu0 0.0
        %2270 = vmatpush1.msra.mxu0 %v2252
        %2271 = vmatprep.subr.mxu0 0.0
        %2272 = vmatpush1.msra.mxu0 0.0
        %2273 = vmatprep.subr.mxu0 0.0
        %2274 = vmatpush1.msra.mxu0 0.0
        %2275 = vmatprep.subr.mxu0 0.0
        %2276 = vmatpush1.msra.mxu0 0.0
        %2277 = vmatprep.subr.mxu0 0.0
        %2278 = vmatpush1.msra.mxu0 0.0
        %2279 = vmatprep.subr.mxu0 0.0
        %2280 = vmatpush1.msra.mxu0 0.0
        %2281 = vmatprep.subr.mxu0 0.0
        %2282 = vmatpush1.msra.mxu0 0.0
        %2283 = vmatprep.subr.mxu0 0.0
        %2284 = vmatpush1.msra.mxu0 0.0
        %2285 = vmatprep.subr.mxu0 0.0
        %2286 = vmatpush1.msra.mxu0 0.0
        %2287 = vmatprep.subr.mxu0 0.0
        %2288 = vmatpush1.msra.mxu0 0.0
        %2289 = vmatprep.subr.mxu0 0.0
        %2290 = vmatpush1.msra.mxu0 0.0
        %2291 = vmatprep.subr.mxu0 0.0
        %2292 = vmatpush1.msra.mxu0 0.0
        %2293 = vmatprep.subr.mxu0 0.0
        %2294 = vmatpush1.msra.mxu0 0.0
        %2295 = vmatprep.subr.mxu0 0.0
        %2296 = vmatpush1.msra.mxu0 0.0
        %2297 = vmatprep.subr.mxu0 0.0
        %2298 = vmatpush1.msra.mxu0 0.0
        %2299 = vmatprep.subr.mxu0 0.0
        %2300 = vmatpush1.msra.mxu0 0.0
        %2301 = vmatprep.subr.mxu0 0.0
        %2302 = vmatpush1.msra.mxu0 0.0
        %2303 = vmatprep.subr.mxu0 0.0
        %2304 = vmatpush1.msra.mxu0 0.0
        %2305 = vmatprep.subr.mxu0 0.0
        %2306 = vmatpush1.msra.mxu0 0.0
        %2307 = vmatprep.subr.mxu0 0.0
        %2308 = vmatpush1.msra.mxu0 0.0
        %2309 = vmatprep.subr.mxu0 0.0
        %2310 = vmatpush1.msra.mxu0 0.0
        %2311 = vmatprep.subr.mxu0 0.0
        %2312 = vmatpush1.msra.mxu0 0.0
        %2313 = vmatprep.subr.mxu0 0.0
        %2314 = vmatpush1.msra.mxu0 0.0
        %2315 = vmatprep.subr.mxu0 0.0
        %2316 = vmatpush1.msra.mxu0 0.0
        %2317 = vmatprep.subr.mxu0 0.0
        %2318 = vmatpush1.msra.mxu0 0.0
        %2319 = vmatprep.subr.mxu0 0.0
        %2320 = vmatpush1.msra.mxu0 0.0
        %2321 = vmatprep.subr.mxu0 0.0
        %2322 = vmatpush1.msra.mxu0 0.0
        %2323 = vmatprep.subr.mxu0 0.0
        %2324 = vmatpush1.msra.mxu0 0.0
        %2325 = vmatprep.subr.mxu0 0.0
        %2326 = vmatpush1.msra.mxu0 0.0
        %2327 = vmatprep.mubr.f32.mxu0 0.0
        %2328 = vmatmul.mubr.f32.gmra.mrb[0].mxu0 %v2261
        %v2329 = vpop.f32.mrb[0].mxu0
        %v2330 = vadd.f32 %v2258, %v2329
        %v2331 = vpop.f32.mrb[0].mxu0
        %2332 = vdwg.mxu0
        %v2333 = vmul.f32 %v2330, 0.5
        %v2334 = vmul.f32 %v2330, 0.70710677
        %v2335 = verf.f32.pop %v2334
        %v2336 = vadd.f32 %v2335, 1.0
        %v2337 = vmul.f32 %v2333, %v2336
        %v2338 = vld [vmem:[%s13] sm:$0xff]
        %v2339 = vld [vmem:[%s13 + $0x8] sm:$0xff]
        %v2340 = vld [vmem:[%s13 + $0x10] sm:$0xff]
        %v2341 = vld [vmem:[%s13 + $0x18] sm:$0xff]
        %v2342 = vld [vmem:[%s13 + $0x20] sm:$0xff]
        %v2343 = vld [vmem:[%s13 + $0x28] sm:$0xff]
        %v2344 = vld [vmem:[%s13 + $0x30] sm:$0xff]
        %v2345 = vld [vmem:[%s13 + $0x38] sm:$0xff]
        %v2346 = vld [vmem:[%s13 + $0x40] sm:$0xff]
        %v2347 = vld [vmem:[%s13 + $0x48] sm:$0xff]
        %v2348 = vld [vmem:[%s13 + $0x50] sm:$0xff]
        %v2349 = vld [vmem:[%s13 + $0x58] sm:$0xff]
        %v2350 = vld [vmem:[%s13 + $0x60] sm:$0xff]
        %v2351 = vld [vmem:[%s13 + $0x68] sm:$0xff]
        %v2352 = vld [vmem:[%s13 + $0x70] sm:$0xff]
        %v2353 = vld [vmem:[%s13 + $0x78] sm:$0xff]
        %v2354 = vld [vmem:[%s14] sm:$0x1]
        %v2356 = vlaneseq
        %v2357 = vshrl.u32 %v2356, 7
        %v2358 = vsub.s32 0, %v2357
        %v2359 = vrot.slane %v2354, %v2358
        %2361 = vmatprep.subr.mxu0 0.0
        %2362 = vmatpush1.msra.mxu0 %v2338
        %2363 = vmatprep.subr.mxu0 0.0
        %2364 = vmatpush1.msra.mxu0 %v2339
        %2365 = vmatprep.subr.mxu0 0.0
        %2366 = vmatpush1.msra.mxu0 %v2340
        %2367 = vmatprep.subr.mxu0 0.0
        %2368 = vmatpush1.msra.mxu0 %v2341
        %2369 = vmatprep.subr.mxu0 0.0
        %2370 = vmatpush1.msra.mxu0 %v2342
        %2371 = vmatprep.subr.mxu0 0.0
        %2372 = vmatpush1.msra.mxu0 %v2343
        %2373 = vmatprep.subr.mxu0 0.0
        %2374 = vmatpush1.msra.mxu0 %v2344
        %2375 = vmatprep.subr.mxu0 0.0
        %2376 = vmatpush1.msra.mxu0 %v2345
        %2377 = vmatprep.subr.mxu0 0.0
        %2378 = vmatpush1.msra.mxu0 %v2346
        %2379 = vmatprep.subr.mxu0 0.0
        %2380 = vmatpush1.msra.mxu0 %v2347
        %2381 = vmatprep.subr.mxu0 0.0
        %2382 = vmatpush1.msra.mxu0 %v2348
        %2383 = vmatprep.subr.mxu0 0.0
        %2384 = vmatpush1.msra.mxu0 %v2349
        %2385 = vmatprep.subr.mxu0 0.0
        %2386 = vmatpush1.msra.mxu0 %v2350
        %2387 = vmatprep.subr.mxu0 0.0
        %2388 = vmatpush1.msra.mxu0 %v2351
        %2389 = vmatprep.subr.mxu0 0.0
        %2390 = vmatpush1.msra.mxu0 %v2352
        %2391 = vmatprep.subr.mxu0 0.0
        %2392 = vmatpush1.msra.mxu0 %v2353
        %2393 = vmatprep.subr.mxu0 0.0
        %2394 = vmatpush1.msra.mxu0 0.0
        %2395 = vmatprep.subr.mxu0 0.0
        %2396 = vmatpush1.msra.mxu0 0.0
        %2397 = vmatprep.subr.mxu0 0.0
        %2398 = vmatpush1.msra.mxu0 0.0
        %2399 = vmatprep.subr.mxu0 0.0
        %2400 = vmatpush1.msra.mxu0 0.0
        %2401 = vmatprep.subr.mxu0 0.0
        %2402 = vmatpush1.msra.mxu0 0.0
        %2403 = vmatprep.subr.mxu0 0.0
        %2404 = vmatpush1.msra.mxu0 0.0
        %2405 = vmatprep.subr.mxu0 0.0
        %2406 = vmatpush1.msra.mxu0 0.0
        %2407 = vmatprep.subr.mxu0 0.0
        %2408 = vmatpush1.msra.mxu0 0.0
        %2409 = vmatprep.subr.mxu0 0.0
        %2410 = vmatpush1.msra.mxu0 0.0
        %2411 = vmatprep.subr.mxu0 0.0
        %2412 = vmatpush1.msra.mxu0 0.0
        %2413 = vmatprep.subr.mxu0 0.0
        %2414 = vmatpush1.msra.mxu0 0.0
        %2415 = vmatprep.subr.mxu0 0.0
        %2416 = vmatpush1.msra.mxu0 0.0
        %2417 = vmatprep.subr.mxu0 0.0
        %2418 = vmatpush1.msra.mxu0 0.0
        %2419 = vmatprep.subr.mxu0 0.0
        %2420 = vmatpush1.msra.mxu0 0.0
        %2421 = vmatprep.subr.mxu0 0.0
        %2422 = vmatpush1.msra.mxu0 0.0
        %2423 = vmatprep.subr.mxu0 0.0
        %2424 = vmatpush1.msra.mxu0 0.0
        %2425 = vmatprep.mubr.f32.mxu0 0.0
        %2426 = vmatmul.mubr.f32.gmra.mrb[0].mxu0 %v2337
        %v2427 = vpop.f32.mrb[0].mxu0
        %v2428 = vadd.f32 %v2359, %v2427
        %v2429 = vpop.f32.mrb[0].mxu0
        %2430 = vdwg.mxu0
        %v2431 = vadd.f32 %v2219, %v2428
        %2432 = vst.msk [vmem:[%s563] sm:$0xff] %vm1053, %v2431
        %s2433 = sand.u32 %s384, 1
        %s2434 = scalar_lea.sflag [#allocation6], %s2433
        %s2435 = sand.u32 %s384, 1
        %s2436 = smul.addr %s2435, 8
        %s2437 = scalar_lea.vmem [#allocation9], %s2436
        // Predicated region
        $region93: #{tpu_custom_call.1} parent=79 // pred_check
          %p2438 = pneg %p394
        $region94: #{tpu_custom_call.1} parent=79 // pred_check_branch
          %2440 = sbr.rel (%p2438) target = $region96
        $region95: #{tpu_custom_call.1} parent=79 // pred_region
          %s2442 = ssub.s32 128, 128
          %2443 = vsyncadd %s2434, %s2442
          %s2444 = sadd.s32 %s40, %s39
          %s2445 = smul.addr %s2444, 128
          %s2446 = scalar_lea.hbm %s15, %s2445
          %s2448 = sshll.u32 %s2437, 4
          %s2449 = int_to_ptr.vmem [resolvable:$true] %s2448
          %2451 = dma.vmem_to_hbm [thread:$0]  %s2449, 128, %s2446, %s2434
        $region96: #{tpu_custom_call.1} parent=79 // pred_fallthru
          _
      $region80: #{tpu_custom_call.1} parent=5 // pred_fallthru
        _
      %p2452 = scmp.le.s32.totalorder 2, %s30
      // Predicated region
      $region97: #{tpu_custom_call.1} parent=5 // pred_check
        %p2453 = pneg %p2452
      $region98: #{tpu_custom_call.1} parent=5 // pred_check_branch
        %2455 = sbr.rel (%p2453) target = $region100
      $region99: #{tpu_custom_call.1} parent=5 // pred_region
        %s2456 = ssub.s32 %s30, 2
        // Predicated region
        $region101: #{tpu_custom_call.1} parent=99 // pred_check
          %p2457 = pneg %p400
        $region102: #{tpu_custom_call.1} parent=99 // pred_check_branch
          %2459 = sbr.rel (%p2457) target = $region104
        $region103: #{tpu_custom_call.1} parent=99 // pred_region
          %s2460 = sand.u32 %s385, 1
          %s2461 = scalar_lea.sflag [#allocation6], %s2460
          %s2462 = sand.u32 %s385, 1
          %s2463 = smul.addr %s2462, 8
          %s2464 = scalar_lea.vmem [#allocation9], %s2463
          %2465 = dma.done %s2461, 128
        $region104: #{tpu_custom_call.1} parent=99 // pred_fallthru
          _
      $region100: #{tpu_custom_call.1} parent=5 // pred_fallthru
        _
    $region6: #{tpu_custom_call.1} parent=1 // loop_footer
      %s34 = sadd.s32 1, %s30
    $region7: #{tpu_custom_call.1} parent=1 // loop_footer_branch
      %29 = sbr.rel target = $region3
    $region8: #{tpu_custom_call.1} parent=1 // loop_exit
      _
    %2466 = vsyncpa [#allocation5], 1
    %s2467 = scalar_lea.sflag [#allocation5], 1
    %2468 = vsyncpa %s2467, 1
    %2469 = vsyncpa [#allocation8], 1
    %s2470 = scalar_lea.sflag [#allocation8], 1
    %2471 = vsyncpa %s2470, 1
    %2472 = vsyncpa [#allocation6], 1
    %s2473 = scalar_lea.sflag [#allocation6], 1
    %2474 = vsyncpa %s2473, 1

</llo_original>
